<compile_context>
chip_gen: v7x
topology: tpu7x:2x2x1
jax: 0.10.0
libtpu: 0.0.40
codegen_flags: <defaults>
</compile_context>

<pallas_src>
import jax
import jax.numpy as jnp
from jax.experimental import pallas as pl
from jax.experimental.pallas import tpu as pltpu

INPUT_SIZE = 28 * 28            # 784
L1 = int(INPUT_SIZE * 0.8)      # 627
L2 = int(INPUT_SIZE * 0.5)      # 392
L3 = int(INPUT_SIZE * 0.2)      # 156
OUT = 10


def _round_up(x, m):
    return (x + m - 1) // m * m


# Lane-aligned (multiple-of-128) padded widths.
K_PAD = _round_up(INPUT_SIZE, 128)   # 896
L1_PAD = _round_up(L1, 128)          # 640
L2_PAD = _round_up(L2, 128)          # 512
L3_PAD = _round_up(L3, 128)          # 256
OUT_PAD = _round_up(OUT, 128)        # 128


def _mlp_kernel(x_ref,
                w1_ref, b1_ref,
                w2_ref, b2_ref,
                w3_ref, b3_ref,
                w4_ref, b4_ref,
                o_ref):
    # One batch tile per grid step; all (padded, bf16) weights are VMEM
    # resident across the grid. bf16 operands, f32 MXU accumulation.
    x = x_ref[...]                                         # (tb, 896) bf16

    h = jnp.dot(x, w1_ref[...], preferred_element_type=jnp.float32) + b1_ref[...]
    h = jnp.maximum(h, 0.0).astype(jnp.bfloat16)           # (tb, 640)

    h = jnp.dot(h, w2_ref[...], preferred_element_type=jnp.float32) + b2_ref[...]
    h = jnp.maximum(h, 0.0).astype(jnp.bfloat16)           # (tb, 512)

    h = jnp.dot(h, w3_ref[...], preferred_element_type=jnp.float32) + b3_ref[...]
    h = jnp.maximum(h, 0.0).astype(jnp.bfloat16)           # (tb, 256)

    out = jnp.dot(h, w4_ref[...], preferred_element_type=jnp.float32) + b4_ref[...]
    o_ref[...] = out.astype(o_ref.dtype)                   # (tb, 128) f32, lane-dense


def init_params(key):
    """nn.Linear-style init (uniform +-1/sqrt(fan_in)), weights stored as
    (in, out) = PyTorch weight.T, biases as (1, out). Unpadded, f32."""
    dims = [(INPUT_SIZE, L1), (L1, L2), (L2, L3), (L3, OUT)]
    params = []
    for fan_in, fan_out in dims:
        key, kw, kb = jax.random.split(key, 3)
        bound = 1.0 / jnp.sqrt(fan_in)
        w = jax.random.uniform(kw, (fan_in, fan_out), jnp.float32, -bound, bound)
        b = jax.random.uniform(kb, (1, fan_out), jnp.float32, -bound, bound)
        params.append((w, b))
    return params


def prepare_params(params):
    """Zero-pad every weight/bias to 128-aligned widths; weights -> bf16,
    biases stay f32 (added post f32 accumulation)."""
    dims_pad = [(K_PAD, L1_PAD), (L1_PAD, L2_PAD), (L2_PAD, L3_PAD), (L3_PAD, OUT_PAD)]
    prepped = []
    for (w, b), (kp, npad) in zip(params, dims_pad):
        wp = jnp.zeros((kp, npad), jnp.bfloat16)
        wp = wp.at[:w.shape[0], :w.shape[1]].set(w.astype(jnp.bfloat16))
        bp = jnp.zeros((1, npad), jnp.float32)
        bp = bp.at[:, :b.shape[1]].set(b)
        prepped.append((wp, bp))
    return prepped


def mlp_forward(x_nchw, prepped_params, *, batch_tile=256):
    """x_nchw: (B, 1, 28, 28) float32. Returns (B, 10) float32."""
    B = x_nchw.shape[0]
    x_flat = x_nchw.reshape(B, -1)                      # nn.Flatten()
    assert x_flat.shape[1] == INPUT_SIZE

    # Pad batch to a sublane multiple (8); tile larger batches for pipelining
    # and (on v7x) megacore sharding of the parallel batch axis.
    Bp = _round_up(max(B, 1), 8)
    if Bp <= batch_tile:
        tb = Bp
    else:
        tb = batch_tile
        Bp = _round_up(Bp, batch_tile)

    x_pad = jnp.zeros((Bp, K_PAD), jnp.bfloat16)
    x_pad = x_pad.at[:B, :INPUT_SIZE].set(x_flat.astype(jnp.bfloat16))

    (w1, b1), (w2, b2), (w3, b3), (w4, b4) = prepped_params

    def resident(shape):
        # Same block for every grid step -> weights/biases stay VMEM resident.
        return pl.BlockSpec(shape, lambda i: (0, 0))

    in_specs = [
        pl.BlockSpec((tb, K_PAD), lambda i: (i, 0)),
        resident(w1.shape), resident(b1.shape),
        resident(w2.shape), resident(b2.shape),
        resident(w3.shape), resident(b3.shape),
        resident(w4.shape), resident(b4.shape),
    ]
    out_spec = pl.BlockSpec((tb, OUT_PAD), lambda i: (i, 0))

    out_padded = pl.pallas_call(
        _mlp_kernel,
        out_shape=jax.ShapeDtypeStruct((Bp, OUT_PAD), jnp.float32),
        grid=(Bp // tb,),
        in_specs=in_specs,
        out_specs=out_spec,
        compiler_params=pltpu.CompilerParams(
            dimension_semantics=("parallel",)),
    )(x_pad, w1, b1, w2, b2, w3, b3, w4, b4)

    # Slice the lane-dense padded output back to the logical (B, 10) result.
    return out_padded[:B, :OUT]


if __name__ == "__main__":
    key = jax.random.PRNGKey(0)
    key, kx = jax.random.split(key)

    # Small MNIST-like batch implied by inputSize = 28*28.
    x = jax.random.normal(kx, (2, 1, 28, 28), jnp.float32)
    params = init_params(key)
    prepped = prepare_params(params)

    y = mlp_forward(x, prepped)
    jax.block_until_ready(y)

    # Reference in plain JAX mimicking the kernel numerics
    # (bf16 operands, f32 accumulation).
    act = x.reshape(x.shape[0], -1).astype(jnp.bfloat16)
    acc = None
    for i, (w, b) in enumerate(params):
        acc = jnp.dot(act, w.astype(jnp.bfloat16),
                      preferred_element_type=jnp.float32) + b
        if i < 3:
            act = jnp.maximum(acc, 0.0).astype(jnp.bfloat16)
    ref = acc

    assert y.shape == (2, 10)
    assert jnp.allclose(y, ref, atol=1e-2, rtol=1e-2), float(jnp.max(jnp.abs(y - ref)))

    print("KERNEL_OK")
</pallas_src>

<mosaic_0001>
module attributes {stable_mosaic.version = 11 : i64} {
  func.func @_mlp_kernel(%arg0: i32, %arg1: memref<8x896xbf16, #tpu.memory_space<vmem>>, %arg2: memref<896x640xbf16, #tpu.memory_space<vmem>>, %arg3: memref<1x640xf32, #tpu.memory_space<vmem>>, %arg4: memref<640x512xbf16, #tpu.memory_space<vmem>>, %arg5: memref<1x512xf32, #tpu.memory_space<vmem>>, %arg6: memref<512x256xbf16, #tpu.memory_space<vmem>>, %arg7: memref<1x256xf32, #tpu.memory_space<vmem>>, %arg8: memref<256x128xbf16, #tpu.memory_space<vmem>>, %arg9: memref<1x128xf32, #tpu.memory_space<vmem>>, %arg10: memref<8x128xf32, #tpu.memory_space<vmem>>) attributes {dimension_semantics = [#tpu.dimension_semantics<parallel>], iteration_bounds = array<i64: 1>, scalar_prefetch = 0 : i64, scratch_operands = 0 : i64, tpu.core_type = #tpu.core_type<tc>, window_params = [{transform_indices = @transform_0, window_bounds = array<i64: 8, 896>}, {pipeline_mode = #tpu.pipeline_mode<synchronous>, transform_indices = @transform_1, window_bounds = array<i64: 896, 640>}, {pipeline_mode = #tpu.pipeline_mode<synchronous>, transform_indices = @transform_2, window_bounds = array<i64: 1, 640>}, {pipeline_mode = #tpu.pipeline_mode<synchronous>, transform_indices = @transform_3, window_bounds = array<i64: 640, 512>}, {pipeline_mode = #tpu.pipeline_mode<synchronous>, transform_indices = @transform_4, window_bounds = array<i64: 1, 512>}, {pipeline_mode = #tpu.pipeline_mode<synchronous>, transform_indices = @transform_5, window_bounds = array<i64: 512, 256>}, {pipeline_mode = #tpu.pipeline_mode<synchronous>, transform_indices = @transform_6, window_bounds = array<i64: 1, 256>}, {pipeline_mode = #tpu.pipeline_mode<synchronous>, transform_indices = @transform_7, window_bounds = array<i64: 256, 128>}, {pipeline_mode = #tpu.pipeline_mode<synchronous>, transform_indices = @transform_8, window_bounds = array<i64: 1, 128>}, {transform_indices = @transform_9, window_bounds = array<i64: 8, 128>}]} {
    %c0 = arith.constant 0 : index
    %c0_0 = arith.constant 0 : index
    %0 = vector.load %arg1[%c0, %c0_0] : memref<8x896xbf16, #tpu.memory_space<vmem>>, vector<8x896xbf16>
    %c0_1 = arith.constant 0 : index
    %c0_2 = arith.constant 0 : index
    %1 = vector.load %arg2[%c0_1, %c0_2] : memref<896x640xbf16, #tpu.memory_space<vmem>>, vector<896x640xbf16>
    %cst = arith.constant dense<0.000000e+00> : vector<8x640xf32>
    %2 = tpu.matmul %0, %1, %cst {dimension_numbers = #tpu.dot_dimension_numbers<[1], [0], [0], [1], [0, 0, 1, 1], [], []>} : vector<8x896xbf16>, vector<896x640xbf16>, vector<8x640xf32> -> vector<8x640xf32>
    %c0_3 = arith.constant 0 : index
    %c0_4 = arith.constant 0 : index
    %3 = vector.load %arg3[%c0_3, %c0_4] : memref<1x640xf32, #tpu.memory_space<vmem>>, vector<1x640xf32>
    %4 = vector.broadcast %3 : vector<1x640xf32> to vector<8x640xf32>
    %5 = arith.addf %2, %4 : vector<8x640xf32>
    %cst_5 = arith.constant 0.000000e+00 : f32
    %6 = vector.broadcast %cst_5 : f32 to vector<8x640xf32>
    %7 = arith.maximumf %5, %6 : vector<8x640xf32>
    %8 = arith.truncf %7 : vector<8x640xf32> to vector<8x640xbf16>
    %c0_6 = arith.constant 0 : index
    %c0_7 = arith.constant 0 : index
    %9 = vector.load %arg4[%c0_6, %c0_7] : memref<640x512xbf16, #tpu.memory_space<vmem>>, vector<640x512xbf16>
    %cst_8 = arith.constant dense<0.000000e+00> : vector<8x512xf32>
    %10 = tpu.matmul %8, %9, %cst_8 {dimension_numbers = #tpu.dot_dimension_numbers<[1], [0], [0], [1], [0, 0, 1, 1], [], []>} : vector<8x640xbf16>, vector<640x512xbf16>, vector<8x512xf32> -> vector<8x512xf32>
    %c0_9 = arith.constant 0 : index
    %c0_10 = arith.constant 0 : index
    %11 = vector.load %arg5[%c0_9, %c0_10] : memref<1x512xf32, #tpu.memory_space<vmem>>, vector<1x512xf32>
    %12 = vector.broadcast %11 : vector<1x512xf32> to vector<8x512xf32>
    %13 = arith.addf %10, %12 : vector<8x512xf32>
    %cst_11 = arith.constant 0.000000e+00 : f32
    %14 = vector.broadcast %cst_11 : f32 to vector<8x512xf32>
    %15 = arith.maximumf %13, %14 : vector<8x512xf32>
    %16 = arith.truncf %15 : vector<8x512xf32> to vector<8x512xbf16>
    %c0_12 = arith.constant 0 : index
    %c0_13 = arith.constant 0 : index
    %17 = vector.load %arg6[%c0_12, %c0_13] : memref<512x256xbf16, #tpu.memory_space<vmem>>, vector<512x256xbf16>
    %cst_14 = arith.constant dense<0.000000e+00> : vector<8x256xf32>
    %18 = tpu.matmul %16, %17, %cst_14 {dimension_numbers = #tpu.dot_dimension_numbers<[1], [0], [0], [1], [0, 0, 1, 1], [], []>} : vector<8x512xbf16>, vector<512x256xbf16>, vector<8x256xf32> -> vector<8x256xf32>
    %c0_15 = arith.constant 0 : index
    %c0_16 = arith.constant 0 : index
    %19 = vector.load %arg7[%c0_15, %c0_16] : memref<1x256xf32, #tpu.memory_space<vmem>>, vector<1x256xf32>
    %20 = vector.broadcast %19 : vector<1x256xf32> to vector<8x256xf32>
    %21 = arith.addf %18, %20 : vector<8x256xf32>
    %cst_17 = arith.constant 0.000000e+00 : f32
    %22 = vector.broadcast %cst_17 : f32 to vector<8x256xf32>
    %23 = arith.maximumf %21, %22 : vector<8x256xf32>
    %24 = arith.truncf %23 : vector<8x256xf32> to vector<8x256xbf16>
    %c0_18 = arith.constant 0 : index
    %c0_19 = arith.constant 0 : index
    %25 = vector.load %arg8[%c0_18, %c0_19] : memref<256x128xbf16, #tpu.memory_space<vmem>>, vector<256x128xbf16>
    %cst_20 = arith.constant dense<0.000000e+00> : vector<8x128xf32>
    %26 = tpu.matmul %24, %25, %cst_20 {dimension_numbers = #tpu.dot_dimension_numbers<[1], [0], [0], [1], [0, 0, 1, 1], [], []>} : vector<8x256xbf16>, vector<256x128xbf16>, vector<8x128xf32> -> vector<8x128xf32>
    %c0_21 = arith.constant 0 : index
    %c0_22 = arith.constant 0 : index
    %27 = vector.load %arg9[%c0_21, %c0_22] : memref<1x128xf32, #tpu.memory_space<vmem>>, vector<1x128xf32>
    %28 = vector.broadcast %27 : vector<1x128xf32> to vector<8x128xf32>
    %29 = arith.addf %26, %28 : vector<8x128xf32>
    %c0_23 = arith.constant 0 : index
    %c0_24 = arith.constant 0 : index
    %30 = vector.load %arg10[%c0_23, %c0_24] : memref<8x128xf32, #tpu.memory_space<vmem>>, vector<8x128xf32>
    tpu.vector_store %arg10[%c0_23, %c0_24], %29 {strides = array<i32>} : memref<8x128xf32, #tpu.memory_space<vmem>>, vector<8x128xf32>,
    return
  }
  func.func @transform_0(%arg0: i32) -> (i32, i32) {
    %c0_i32 = arith.constant 0 : i32
    %c0_i32_0 = arith.constant 0 : i32
    return %arg0, %c0_i32 : i32, i32
  }
  func.func @transform_1(%arg0: i32) -> (i32, i32) {
    %c0_i32 = arith.constant 0 : i32
    %c0_i32_0 = arith.constant 0 : i32
    %c0_i32_1 = arith.constant 0 : i32
    return %c0_i32, %c0_i32_0 : i32, i32
  }
  func.func @transform_2(%arg0: i32) -> (i32, i32) {
    %c0_i32 = arith.constant 0 : i32
    %c0_i32_0 = arith.constant 0 : i32
    %c0_i32_1 = arith.constant 0 : i32
    return %c0_i32, %c0_i32_0 : i32, i32
  }
  func.func @transform_3(%arg0: i32) -> (i32, i32) {
    %c0_i32 = arith.constant 0 : i32
    %c0_i32_0 = arith.constant 0 : i32
    %c0_i32_1 = arith.constant 0 : i32
    return %c0_i32, %c0_i32_0 : i32, i32
  }
  func.func @transform_4(%arg0: i32) -> (i32, i32) {
    %c0_i32 = arith.constant 0 : i32
    %c0_i32_0 = arith.constant 0 : i32
    %c0_i32_1 = arith.constant 0 : i32
    return %c0_i32, %c0_i32_0 : i32, i32
  }
  func.func @transform_5(%arg0: i32) -> (i32, i32) {
    %c0_i32 = arith.constant 0 : i32
    %c0_i32_0 = arith.constant 0 : i32
    %c0_i32_1 = arith.constant 0 : i32
    return %c0_i32, %c0_i32_0 : i32, i32
  }
  func.func @transform_6(%arg0: i32) -> (i32, i32) {
    %c0_i32 = arith.constant 0 : i32
    %c0_i32_0 = arith.constant 0 : i32
    %c0_i32_1 = arith.constant 0 : i32
    return %c0_i32, %c0_i32_0 : i32, i32
  }
  func.func @transform_7(%arg0: i32) -> (i32, i32) {
    %c0_i32 = arith.constant 0 : i32
    %c0_i32_0 = arith.constant 0 : i32
    %c0_i32_1 = arith.constant 0 : i32
    return %c0_i32, %c0_i32_0 : i32, i32
  }
  func.func @transform_8(%arg0: i32) -> (i32, i32) {
    %c0_i32 = arith.constant 0 : i32
    %c0_i32_0 = arith.constant 0 : i32
    %c0_i32_1 = arith.constant 0 : i32
    return %c0_i32, %c0_i32_0 : i32, i32
  }
  func.func @transform_9(%arg0: i32) -> (i32, i32) {
    %c0_i32 = arith.constant 0 : i32
    %c0_i32_0 = arith.constant 0 : i32
    return %arg0, %c0_i32 : i32, i32
  }
}

</mosaic_0001>

<llo_original>
// kernel: tpu_custom_call.1
$region0: #{tpu_custom_call.1}
  #allocation0 [shape = 'u32[]', space=smem, size = 0x4, offset = 0x4, fixed_abs, tag = 'smem constant byte address 0x4 - core index']
  #allocation1 [shape = 'u32[144,128]{1,0:T(1,128)}', space=vmem, size = 0x12000, scoped, tag = 'internal scratch']
  %s0 = inlined_call_operand.hbm [shape: bf16[8,896], index: 0, kind: input, shape index: {}]
  %s1 = inlined_call_operand.hbm [shape: bf16[896,640], index: 1, kind: input, shape index: {}]
  %s2 = inlined_call_operand.hbm [shape: f32[1,640], index: 2, kind: input, shape index: {}]
  %s3 = inlined_call_operand.hbm [shape: bf16[640,512], index: 3, kind: input, shape index: {}]
  %s4 = inlined_call_operand.hbm [shape: f32[1,512], index: 4, kind: input, shape index: {}]
  %s5 = inlined_call_operand.hbm [shape: bf16[512,256], index: 5, kind: input, shape index: {}]
  %s6 = inlined_call_operand.hbm [shape: f32[1,256], index: 6, kind: input, shape index: {}]
  %s7 = inlined_call_operand.hbm [shape: bf16[256,128], index: 7, kind: input, shape index: {}]
  %s8 = inlined_call_operand.hbm [shape: f32[1,128], index: 8, kind: input, shape index: {}]
  %s9 = inlined_call_operand.hbm [shape: f32[8,128], index: 9, kind: output, shape index: {}]
  %s10 = sld [smem:[#allocation0]]
  $region82: #{tpu_custom_call.1} parent=0
    _
  %s12 = ssub.s32 1, %s10
  %s13 = scalar_select 0, %s12, %s10
  $region1: #{tpu_custom_call.1} parent=0
    #allocation2 [shape = 'u8[14336]{0}', space=vmem, size = 0x3800, scoped, tag = 'input window, operand 0, single buffered']
    #allocation3 [shape = 's32[1]{0}', space=sflag, size = 0x4, scoped, tag = 'scoped memory for tpu_custom_call.1']
    #allocation4 [shape = 's32[1]{0}', space=sflag, size = 0x4, scoped, tag = 'scoped memory for tpu_custom_call.1']
    #allocation5 [shape = 'u8[1146880]{0}', space=vmem, size = 0x118000, scoped, tag = 'input window, operand 1, single buffered']
    #allocation6 [shape = 's32[1]{0}', space=sflag, size = 0x4, scoped, tag = 'scoped memory for tpu_custom_call.1']
    #allocation7 [shape = 'u8[2560]{0}', space=vmem, size = 0xc00, scoped, tag = 'input window, operand 2, single buffered']
    #allocation8 [shape = 'u8[655360]{0}', space=vmem, size = 0xa0000, scoped, tag = 'input window, operand 3, single buffered']
    #allocation9 [shape = 's32[1]{0}', space=sflag, size = 0x4, scoped, tag = 'scoped memory for tpu_custom_call.1']
    #allocation10 [shape = 'u8[2048]{0}', space=vmem, size = 0x800, scoped, tag = 'input window, operand 4, single buffered']
    #allocation11 [shape = 'u8[262144]{0}', space=vmem, size = 0x40000, scoped, tag = 'input window, operand 5, single buffered']
    #allocation12 [shape = 's32[1]{0}', space=sflag, size = 0x4, scoped, tag = 'scoped memory for tpu_custom_call.1']
    #allocation13 [shape = 'u8[1024]{0}', space=vmem, size = 0x400, scoped, tag = 'input window, operand 6, single buffered']
    #allocation14 [shape = 'u8[65536]{0}', space=vmem, size = 0x10000, scoped, tag = 'input window, operand 7, single buffered']
    #allocation15 [shape = 's32[1]{0}', space=sflag, size = 0x4, scoped, tag = 'scoped memory for tpu_custom_call.1']
    #allocation16 [shape = 'u8[512]{0}', space=vmem, size = 0x400, scoped, tag = 'input window, operand 8, single buffered']
    #allocation17 [shape = 'u8[4096]{0}', space=vmem, size = 0x1000, scoped, tag = 'output window, operand 0, single buffered']
    %14 = vsyncpa [#allocation3], 0
    %15 = vsyncpa [#allocation6], 0
    %16 = vsyncpa [#allocation9], 0
    %17 = vsyncpa [#allocation12], 0
    %18 = vsyncpa [#allocation15], 0
    %19 = vsyncpa [#allocation4], 0
    // Predicated region
    $region2: #{tpu_custom_call.1} parent=1 // pred_check
      _
    $region3: #{tpu_custom_call.1} parent=1 // pred_check_branch
      %21 = sbr.rel (0) target = $region5
    $region4: #{tpu_custom_call.1} parent=1 // pred_region
      %s23 = ssub.s32 448, 448
      %24 = vsyncadd [#allocation3], %s23
      %s26 = sshll.u32 [#allocation2], 4
      %s27 = int_to_ptr.vmem [resolvable:$true] %s26
      %29 = dma.hbm_to_vmem [thread:$0]  %s0, 448, %s27, [#allocation3]
    $region5: #{tpu_custom_call.1} parent=1 // pred_fallthru
      _
    // Predicated region
    $region6: #{tpu_custom_call.1} parent=1 // pred_check
      _
    $region7: #{tpu_custom_call.1} parent=1 // pred_check_branch
      %31 = sbr.rel (0) target = $region9
    $region8: #{tpu_custom_call.1} parent=1 // pred_region
      %s33 = ssub.s32 35840, 35840
      %34 = vsyncadd [#allocation6], %s33
      %s35 = sshll.u32 [#allocation5], 4
      %s36 = int_to_ptr.vmem [resolvable:$true] %s35
      %41 = dma.hbm_to_vmem [thread:$0]  %s1, 35840, %s36, [#allocation6], 320, 320, 20
    $region9: #{tpu_custom_call.1} parent=1 // pred_fallthru
      _
    // Predicated region
    $region10: #{tpu_custom_call.1} parent=1 // pred_check
      _
    $region11: #{tpu_custom_call.1} parent=1 // pred_check_branch
      %43 = sbr.rel (0) target = $region13
    $region12: #{tpu_custom_call.1} parent=1 // pred_region
      %s45 = ssub.s32 80, 80
      %46 = vsyncadd [#allocation6], %s45
      %s48 = sshll.u32 [#allocation7], 4
      %s49 = int_to_ptr.vmem [resolvable:$true] %s48
      %51 = dma.hbm_to_vmem [thread:$0]  %s2, 80, %s49, [#allocation6]
    $region13: #{tpu_custom_call.1} parent=1 // pred_fallthru
      _
    // Predicated region
    $region14: #{tpu_custom_call.1} parent=1 // pred_check
      _
    $region15: #{tpu_custom_call.1} parent=1 // pred_check_branch
      %53 = sbr.rel (0) target = $region17
    $region16: #{tpu_custom_call.1} parent=1 // pred_region
      %s55 = ssub.s32 20480, 20480
      %56 = vsyncadd [#allocation9], %s55
      %s57 = sshll.u32 [#allocation8], 4
      %s58 = int_to_ptr.vmem [resolvable:$true] %s57
      %63 = dma.hbm_to_vmem [thread:$0]  %s3, 20480, %s58, [#allocation9], 256, 256, 16
    $region17: #{tpu_custom_call.1} parent=1 // pred_fallthru
      _
    // Predicated region
    $region18: #{tpu_custom_call.1} parent=1 // pred_check
      _
    $region19: #{tpu_custom_call.1} parent=1 // pred_check_branch
      %65 = sbr.rel (0) target = $region21
    $region20: #{tpu_custom_call.1} parent=1 // pred_region
      %s67 = ssub.s32 64, 64
      %68 = vsyncadd [#allocation9], %s67
      %s70 = sshll.u32 [#allocation10], 4
      %s71 = int_to_ptr.vmem [resolvable:$true] %s70
      %73 = dma.hbm_to_vmem [thread:$0]  %s4, 64, %s71, [#allocation9]
    $region21: #{tpu_custom_call.1} parent=1 // pred_fallthru
      _
    // Predicated region
    $region22: #{tpu_custom_call.1} parent=1 // pred_check
      _
    $region23: #{tpu_custom_call.1} parent=1 // pred_check_branch
      %75 = sbr.rel (0) target = $region25
    $region24: #{tpu_custom_call.1} parent=1 // pred_region
      %s77 = ssub.s32 8192, 8192
      %78 = vsyncadd [#allocation12], %s77
      %s79 = sshll.u32 [#allocation11], 4
      %s80 = int_to_ptr.vmem [resolvable:$true] %s79
      %85 = dma.hbm_to_vmem [thread:$0]  %s5, 8192, %s80, [#allocation12], 128, 128, 8
    $region25: #{tpu_custom_call.1} parent=1 // pred_fallthru
      _
    // Predicated region
    $region26: #{tpu_custom_call.1} parent=1 // pred_check
      _
    $region27: #{tpu_custom_call.1} parent=1 // pred_check_branch
      %87 = sbr.rel (0) target = $region29
    $region28: #{tpu_custom_call.1} parent=1 // pred_region
      %s89 = ssub.s32 32, 32
      %90 = vsyncadd [#allocation12], %s89
      %s92 = sshll.u32 [#allocation13], 4
      %s93 = int_to_ptr.vmem [resolvable:$true] %s92
      %95 = dma.hbm_to_vmem [thread:$0]  %s6, 32, %s93, [#allocation12]
    $region29: #{tpu_custom_call.1} parent=1 // pred_fallthru
      _
    // Predicated region
    $region30: #{tpu_custom_call.1} parent=1 // pred_check
      _
    $region31: #{tpu_custom_call.1} parent=1 // pred_check_branch
      %97 = sbr.rel (0) target = $region33
    $region32: #{tpu_custom_call.1} parent=1 // pred_region
      %s99 = ssub.s32 2048, 2048
      %100 = vsyncadd [#allocation15], %s99
      %s101 = sshll.u32 [#allocation14], 4
      %s102 = int_to_ptr.vmem [resolvable:$true] %s101
      %107 = dma.hbm_to_vmem [thread:$0]  %s7, 2048, %s102, [#allocation15], 64, 64, 4
    $region33: #{tpu_custom_call.1} parent=1 // pred_fallthru
      _
    // Predicated region
    $region34: #{tpu_custom_call.1} parent=1 // pred_check
      _
    $region35: #{tpu_custom_call.1} parent=1 // pred_check_branch
      %109 = sbr.rel (0) target = $region37
    $region36: #{tpu_custom_call.1} parent=1 // pred_region
      %s111 = ssub.s32 16, 16
      %112 = vsyncadd [#allocation15], %s111
      %s114 = sshll.u32 [#allocation16], 4
      %s115 = int_to_ptr.vmem [resolvable:$true] %s114
      %117 = dma.hbm_to_vmem [thread:$0]  %s8, 16, %s115, [#allocation15]
    $region37: #{tpu_custom_call.1} parent=1 // pred_fallthru
      _
    // Predicated region
    $region38: #{tpu_custom_call.1} parent=1 // pred_check
      _
    $region39: #{tpu_custom_call.1} parent=1 // pred_check_branch
      %119 = sbr.rel (0) target = $region41
    $region40: #{tpu_custom_call.1} parent=1 // pred_region
      %120 = dma.done [#allocation3], 448
    $region41: #{tpu_custom_call.1} parent=1 // pred_fallthru
      _
    // Predicated region
    $region42: #{tpu_custom_call.1} parent=1 // pred_check
      _
    $region43: #{tpu_custom_call.1} parent=1 // pred_check_branch
      %122 = sbr.rel (0) target = $region45
    $region44: #{tpu_custom_call.1} parent=1 // pred_region
      %123 = dma.done [#allocation6], 35840
    $region45: #{tpu_custom_call.1} parent=1 // pred_fallthru
      _
    // Predicated region
    $region46: #{tpu_custom_call.1} parent=1 // pred_check
      _
    $region47: #{tpu_custom_call.1} parent=1 // pred_check_branch
      %125 = sbr.rel (0) target = $region49
    $region48: #{tpu_custom_call.1} parent=1 // pred_region
      %126 = dma.done [#allocation6], 80
    $region49: #{tpu_custom_call.1} parent=1 // pred_fallthru
      _
    // Predicated region
    $region50: #{tpu_custom_call.1} parent=1 // pred_check
      _
    $region51: #{tpu_custom_call.1} parent=1 // pred_check_branch
      %128 = sbr.rel (0) target = $region53
    $region52: #{tpu_custom_call.1} parent=1 // pred_region
      %129 = dma.done [#allocation9], 20480
    $region53: #{tpu_custom_call.1} parent=1 // pred_fallthru
      _
    // Predicated region
    $region54: #{tpu_custom_call.1} parent=1 // pred_check
      _
    $region55: #{tpu_custom_call.1} parent=1 // pred_check_branch
      %131 = sbr.rel (0) target = $region57
    $region56: #{tpu_custom_call.1} parent=1 // pred_region
      %132 = dma.done [#allocation9], 64
    $region57: #{tpu_custom_call.1} parent=1 // pred_fallthru
      _
    // Predicated region
    $region58: #{tpu_custom_call.1} parent=1 // pred_check
      _
    $region59: #{tpu_custom_call.1} parent=1 // pred_check_branch
      %134 = sbr.rel (0) target = $region61
    $region60: #{tpu_custom_call.1} parent=1 // pred_region
      %135 = dma.done [#allocation12], 8192
    $region61: #{tpu_custom_call.1} parent=1 // pred_fallthru
      _
    // Predicated region
    $region62: #{tpu_custom_call.1} parent=1 // pred_check
      _
    $region63: #{tpu_custom_call.1} parent=1 // pred_check_branch
      %137 = sbr.rel (0) target = $region65
    $region64: #{tpu_custom_call.1} parent=1 // pred_region
      %138 = dma.done [#allocation12], 32
    $region65: #{tpu_custom_call.1} parent=1 // pred_fallthru
      _
    // Predicated region
    $region66: #{tpu_custom_call.1} parent=1 // pred_check
      _
    $region67: #{tpu_custom_call.1} parent=1 // pred_check_branch
      %140 = sbr.rel (0) target = $region69
    $region68: #{tpu_custom_call.1} parent=1 // pred_region
      %141 = dma.done [#allocation15], 2048
    $region69: #{tpu_custom_call.1} parent=1 // pred_fallthru
      _
    // Predicated region
    $region70: #{tpu_custom_call.1} parent=1 // pred_check
      _
    $region71: #{tpu_custom_call.1} parent=1 // pred_check_branch
      %143 = sbr.rel (0) target = $region73
    $region72: #{tpu_custom_call.1} parent=1 // pred_region
      %144 = dma.done [#allocation15], 16
    $region73: #{tpu_custom_call.1} parent=1 // pred_fallthru
      _
    %v146 = vld [vmem:[#allocation2] sm:$0xff]
    %v147 = vld [vmem:[#allocation2 + $0x8] sm:$0xff]
    %v148 = vld [vmem:[#allocation2 + $0x10] sm:$0xff]
    %v149 = vld [vmem:[#allocation2 + $0x18] sm:$0xf]
    %v150 = vld [vmem:[#allocation5] sm:$0xff]
    %v151 = vld [vmem:[#allocation5 + $0x8] sm:$0xff]
    %v152 = vld [vmem:[#allocation5 + $0x10] sm:$0xf]
    %v153 = vld [vmem:[#allocation5 + $0x14] sm:$0xff]
    %v154 = vld [vmem:[#allocation5 + $0x1c] sm:$0xff]
    %v155 = vld [vmem:[#allocation5 + $0x24] sm:$0xf]
    %v156 = vld [vmem:[#allocation5 + $0x28] sm:$0xff]
    %v157 = vld [vmem:[#allocation5 + $0x30] sm:$0xff]
    %v158 = vld [vmem:[#allocation5 + $0x38] sm:$0xf]
    %v159 = vld [vmem:[#allocation5 + $0x3c] sm:$0xff]
    %v160 = vld [vmem:[#allocation5 + $0x44] sm:$0xff]
    %v161 = vld [vmem:[#allocation5 + $0x4c] sm:$0xf]
    %v162 = vld [vmem:[#allocation5 + $0x50] sm:$0xff]
    %v163 = vld [vmem:[#allocation5 + $0x58] sm:$0xff]
    %v164 = vld [vmem:[#allocation5 + $0x60] sm:$0xf]
    %v165 = vld [vmem:[#allocation5 + $0x64] sm:$0xff]
    %v166 = vld [vmem:[#allocation5 + $0x6c] sm:$0xff]
    %v167 = vld [vmem:[#allocation5 + $0x74] sm:$0xf]
    %v168 = vld [vmem:[#allocation5 + $0x78] sm:$0xff]
    %v169 = vld [vmem:[#allocation5 + $0x80] sm:$0xff]
    %v170 = vld [vmem:[#allocation5 + $0x88] sm:$0xf]
    %v171 = vld [vmem:[#allocation5 + $0x8c] sm:$0xff]
    %v172 = vld [vmem:[#allocation5 + $0x94] sm:$0xff]
    %v173 = vld [vmem:[#allocation5 + $0x9c] sm:$0xf]
    %v174 = vld [vmem:[#allocation5 + $0xa0] sm:$0xff]
    %v175 = vld [vmem:[#allocation5 + $0xa8] sm:$0xff]
    %v176 = vld [vmem:[#allocation5 + $0xb0] sm:$0xf]
    %v177 = vld [vmem:[#allocation5 + $0xb4] sm:$0xff]
    %v178 = vld [vmem:[#allocation5 + $0xbc] sm:$0xff]
    %v179 = vld [vmem:[#allocation5 + $0xc4] sm:$0xf]
    %v180 = vld [vmem:[#allocation5 + $0xc8] sm:$0xff]
    %v181 = vld [vmem:[#allocation5 + $0xd0] sm:$0xff]
    %v182 = vld [vmem:[#allocation5 + $0xd8] sm:$0xf]
    %v183 = vld [vmem:[#allocation5 + $0xdc] sm:$0xff]
    %v184 = vld [vmem:[#allocation5 + $0xe4] sm:$0xff]
    %v185 = vld [vmem:[#allocation5 + $0xec] sm:$0xf]
    %v186 = vld [vmem:[#allocation5 + $0xf0] sm:$0xff]
    %v187 = vld [vmem:[#allocation5 + $0xf8] sm:$0xff]
    %v188 = vld [vmem:[#allocation5 + $0x100] sm:$0xf]
    %v189 = vld [vmem:[#allocation5 + $0x104] sm:$0xff]
    %v190 = vld [vmem:[#allocation5 + $0x10c] sm:$0xff]
    %v191 = vld [vmem:[#allocation5 + $0x114] sm:$0xf]
    %v192 = vld [vmem:[#allocation5 + $0x118] sm:$0xff]
    %v193 = vld [vmem:[#allocation5 + $0x120] sm:$0xff]
    %v194 = vld [vmem:[#allocation5 + $0x128] sm:$0xf]
    %v195 = vld [vmem:[#allocation5 + $0x12c] sm:$0xff]
    %v196 = vld [vmem:[#allocation5 + $0x134] sm:$0xff]
    %v197 = vld [vmem:[#allocation5 + $0x13c] sm:$0xf]
    %v198 = vld [vmem:[#allocation5 + $0x140] sm:$0xff]
    %v199 = vld [vmem:[#allocation5 + $0x148] sm:$0xff]
    %v200 = vld [vmem:[#allocation5 + $0x150] sm:$0xf]
    %v201 = vld [vmem:[#allocation5 + $0x154] sm:$0xff]
    %v202 = vld [vmem:[#allocation5 + $0x15c] sm:$0xff]
    %v203 = vld [vmem:[#allocation5 + $0x164] sm:$0xf]
    %v204 = vld [vmem:[#allocation5 + $0x168] sm:$0xff]
    %v205 = vld [vmem:[#allocation5 + $0x170] sm:$0xff]
    %v206 = vld [vmem:[#allocation5 + $0x178] sm:$0xf]
    %v207 = vld [vmem:[#allocation5 + $0x17c] sm:$0xff]
    %v208 = vld [vmem:[#allocation5 + $0x184] sm:$0xff]
    %v209 = vld [vmem:[#allocation5 + $0x18c] sm:$0xf]
    %v210 = vld [vmem:[#allocation5 + $0x190] sm:$0xff]
    %v211 = vld [vmem:[#allocation5 + $0x198] sm:$0xff]
    %v212 = vld [vmem:[#allocation5 + $0x1a0] sm:$0xf]
    %v213 = vld [vmem:[#allocation5 + $0x1a4] sm:$0xff]
    %v214 = vld [vmem:[#allocation5 + $0x1ac] sm:$0xff]
    %v215 = vld [vmem:[#allocation5 + $0x1b4] sm:$0xf]
    %v216 = vld [vmem:[#allocation5 + $0x1b8] sm:$0xff]
    %v217 = vld [vmem:[#allocation5 + $0x1c0] sm:$0xff]
    %v218 = vld [vmem:[#allocation5 + $0x1c8] sm:$0xf]
    %v219 = vld [vmem:[#allocation5 + $0x1cc] sm:$0xff]
    %v220 = vld [vmem:[#allocation5 + $0x1d4] sm:$0xff]
    %v221 = vld [vmem:[#allocation5 + $0x1dc] sm:$0xf]
    %v222 = vld [vmem:[#allocation5 + $0x1e0] sm:$0xff]
    %v223 = vld [vmem:[#allocation5 + $0x1e8] sm:$0xff]
    %v224 = vld [vmem:[#allocation5 + $0x1f0] sm:$0xf]
    %v225 = vld [vmem:[#allocation5 + $0x1f4] sm:$0xff]
    %v226 = vld [vmem:[#allocation5 + $0x1fc] sm:$0xff]
    %v227 = vld [vmem:[#allocation5 + $0x204] sm:$0xf]
    %v228 = vld [vmem:[#allocation5 + $0x208] sm:$0xff]
    %v229 = vld [vmem:[#allocation5 + $0x210] sm:$0xff]
    %v230 = vld [vmem:[#allocation5 + $0x218] sm:$0xf]
    %v231 = vld [vmem:[#allocation5 + $0x21c] sm:$0xff]
    %v232 = vld [vmem:[#allocation5 + $0x224] sm:$0xff]
    %v233 = vld [vmem:[#allocation5 + $0x22c] sm:$0xf]
    %v234 = vld [vmem:[#allocation5 + $0x230] sm:$0xff]
    %v235 = vld [vmem:[#allocation5 + $0x238] sm:$0xff]
    %v236 = vld [vmem:[#allocation5 + $0x240] sm:$0xf]
    %v237 = vld [vmem:[#allocation5 + $0x244] sm:$0xff]
    %v238 = vld [vmem:[#allocation5 + $0x24c] sm:$0xff]
    %v239 = vld [vmem:[#allocation5 + $0x254] sm:$0xf]
    %v240 = vld [vmem:[#allocation5 + $0x258] sm:$0xff]
    %v241 = vld [vmem:[#allocation5 + $0x260] sm:$0xff]
    %v242 = vld [vmem:[#allocation5 + $0x268] sm:$0xf]
    %v243 = vld [vmem:[#allocation5 + $0x26c] sm:$0xff]
    %v244 = vld [vmem:[#allocation5 + $0x274] sm:$0xff]
    %v245 = vld [vmem:[#allocation5 + $0x27c] sm:$0xf]
    %v246 = vld [vmem:[#allocation5 + $0x280] sm:$0xff]
    %v247 = vld [vmem:[#allocation5 + $0x288] sm:$0xff]
    %v248 = vld [vmem:[#allocation5 + $0x290] sm:$0xf]
    %v249 = vld [vmem:[#allocation5 + $0x294] sm:$0xff]
    %v250 = vld [vmem:[#allocation5 + $0x29c] sm:$0xff]
    %v251 = vld [vmem:[#allocation5 + $0x2a4] sm:$0xf]
    %v252 = vld [vmem:[#allocation5 + $0x2a8] sm:$0xff]
    %v253 = vld [vmem:[#allocation5 + $0x2b0] sm:$0xff]
    %v254 = vld [vmem:[#allocation5 + $0x2b8] sm:$0xf]
    %v255 = vld [vmem:[#allocation5 + $0x2bc] sm:$0xff]
    %v256 = vld [vmem:[#allocation5 + $0x2c4] sm:$0xff]
    %v257 = vld [vmem:[#allocation5 + $0x2cc] sm:$0xf]
    %v258 = vld [vmem:[#allocation5 + $0x2d0] sm:$0xff]
    %v259 = vld [vmem:[#allocation5 + $0x2d8] sm:$0xff]
    %v260 = vld [vmem:[#allocation5 + $0x2e0] sm:$0xf]
    %v261 = vld [vmem:[#allocation5 + $0x2e4] sm:$0xff]
    %v262 = vld [vmem:[#allocation5 + $0x2ec] sm:$0xff]
    %v263 = vld [vmem:[#allocation5 + $0x2f4] sm:$0xf]
    %v264 = vld [vmem:[#allocation5 + $0x2f8] sm:$0xff]
    %v265 = vld [vmem:[#allocation5 + $0x300] sm:$0xff]
    %v266 = vld [vmem:[#allocation5 + $0x308] sm:$0xf]
    %v267 = vld [vmem:[#allocation5 + $0x30c] sm:$0xff]
    %v268 = vld [vmem:[#allocation5 + $0x314] sm:$0xff]
    %v269 = vld [vmem:[#allocation5 + $0x31c] sm:$0xf]
    %v270 = vld [vmem:[#allocation5 + $0x320] sm:$0xff]
    %v271 = vld [vmem:[#allocation5 + $0x328] sm:$0xff]
    %v272 = vld [vmem:[#allocation5 + $0x330] sm:$0xf]
    %v273 = vld [vmem:[#allocation5 + $0x334] sm:$0xff]
    %v274 = vld [vmem:[#allocation5 + $0x33c] sm:$0xff]
    %v275 = vld [vmem:[#allocation5 + $0x344] sm:$0xf]
    %v276 = vld [vmem:[#allocation5 + $0x348] sm:$0xff]
    %v277 = vld [vmem:[#allocation5 + $0x350] sm:$0xff]
    %v278 = vld [vmem:[#allocation5 + $0x358] sm:$0xf]
    %v279 = vld [vmem:[#allocation5 + $0x35c] sm:$0xff]
    %v280 = vld [vmem:[#allocation5 + $0x364] sm:$0xff]
    %v281 = vld [vmem:[#allocation5 + $0x36c] sm:$0xf]
    %v282 = vld [vmem:[#allocation5 + $0x370] sm:$0xff]
    %v283 = vld [vmem:[#allocation5 + $0x378] sm:$0xff]
    %v284 = vld [vmem:[#allocation5 + $0x380] sm:$0xf]
    %v285 = vld [vmem:[#allocation5 + $0x384] sm:$0xff]
    %v286 = vld [vmem:[#allocation5 + $0x38c] sm:$0xff]
    %v287 = vld [vmem:[#allocation5 + $0x394] sm:$0xf]
    %v288 = vld [vmem:[#allocation5 + $0x398] sm:$0xff]
    %v289 = vld [vmem:[#allocation5 + $0x3a0] sm:$0xff]
    %v290 = vld [vmem:[#allocation5 + $0x3a8] sm:$0xf]
    %v291 = vld [vmem:[#allocation5 + $0x3ac] sm:$0xff]
    %v292 = vld [vmem:[#allocation5 + $0x3b4] sm:$0xff]
    %v293 = vld [vmem:[#allocation5 + $0x3bc] sm:$0xf]
    %v294 = vld [vmem:[#allocation5 + $0x3c0] sm:$0xff]
    %v295 = vld [vmem:[#allocation5 + $0x3c8] sm:$0xff]
    %v296 = vld [vmem:[#allocation5 + $0x3d0] sm:$0xf]
    %v297 = vld [vmem:[#allocation5 + $0x3d4] sm:$0xff]
    %v298 = vld [vmem:[#allocation5 + $0x3dc] sm:$0xff]
    %v299 = vld [vmem:[#allocation5 + $0x3e4] sm:$0xf]
    %v300 = vld [vmem:[#allocation5 + $0x3e8] sm:$0xff]
    %v301 = vld [vmem:[#allocation5 + $0x3f0] sm:$0xff]
    %v302 = vld [vmem:[#allocation5 + $0x3f8] sm:$0xf]
    %v303 = vld [vmem:[#allocation5 + $0x3fc] sm:$0xff]
    %v304 = vld [vmem:[#allocation5 + $0x404] sm:$0xff]
    %v305 = vld [vmem:[#allocation5 + $0x40c] sm:$0xf]
    %v306 = vld [vmem:[#allocation5 + $0x410] sm:$0xff]
    %v307 = vld [vmem:[#allocation5 + $0x418] sm:$0xff]
    %v308 = vld [vmem:[#allocation5 + $0x420] sm:$0xf]
    %v309 = vld [vmem:[#allocation5 + $0x424] sm:$0xff]
    %v310 = vld [vmem:[#allocation5 + $0x42c] sm:$0xff]
    %v311 = vld [vmem:[#allocation5 + $0x434] sm:$0xf]
    %v312 = vld [vmem:[#allocation5 + $0x438] sm:$0xff]
    %v313 = vld [vmem:[#allocation5 + $0x440] sm:$0xff]
    %v314 = vld [vmem:[#allocation5 + $0x448] sm:$0xf]
    %v315 = vld [vmem:[#allocation5 + $0x44c] sm:$0xff]
    %v316 = vld [vmem:[#allocation5 + $0x454] sm:$0xff]
    %v317 = vld [vmem:[#allocation5 + $0x45c] sm:$0xf]
    %v318 = vld [vmem:[#allocation5 + $0x460] sm:$0xff]
    %v319 = vld [vmem:[#allocation5 + $0x468] sm:$0xff]
    %v320 = vld [vmem:[#allocation5 + $0x470] sm:$0xf]
    %v321 = vld [vmem:[#allocation5 + $0x474] sm:$0xff]
    %v322 = vld [vmem:[#allocation5 + $0x47c] sm:$0xff]
    %v323 = vld [vmem:[#allocation5 + $0x484] sm:$0xf]
    %v324 = vld [vmem:[#allocation5 + $0x488] sm:$0xff]
    %v325 = vld [vmem:[#allocation5 + $0x490] sm:$0xff]
    %v326 = vld [vmem:[#allocation5 + $0x498] sm:$0xf]
    %v327 = vld [vmem:[#allocation5 + $0x49c] sm:$0xff]
    %v328 = vld [vmem:[#allocation5 + $0x4a4] sm:$0xff]
    %v329 = vld [vmem:[#allocation5 + $0x4ac] sm:$0xf]
    %v330 = vld [vmem:[#allocation5 + $0x4b0] sm:$0xff]
    %v331 = vld [vmem:[#allocation5 + $0x4b8] sm:$0xff]
    %v332 = vld [vmem:[#allocation5 + $0x4c0] sm:$0xf]
    %v333 = vld [vmem:[#allocation5 + $0x4c4] sm:$0xff]
    %v334 = vld [vmem:[#allocation5 + $0x4cc] sm:$0xff]
    %v335 = vld [vmem:[#allocation5 + $0x4d4] sm:$0xf]
    %v336 = vld [vmem:[#allocation5 + $0x4d8] sm:$0xff]
    %v337 = vld [vmem:[#allocation5 + $0x4e0] sm:$0xff]
    %v338 = vld [vmem:[#allocation5 + $0x4e8] sm:$0xf]
    %v339 = vld [vmem:[#allocation5 + $0x4ec] sm:$0xff]
    %v340 = vld [vmem:[#allocation5 + $0x4f4] sm:$0xff]
    %v341 = vld [vmem:[#allocation5 + $0x4fc] sm:$0xf]
    %v342 = vld [vmem:[#allocation5 + $0x500] sm:$0xff]
    %v343 = vld [vmem:[#allocation5 + $0x508] sm:$0xff]
    %v344 = vld [vmem:[#allocation5 + $0x510] sm:$0xf]
    %v345 = vld [vmem:[#allocation5 + $0x514] sm:$0xff]
    %v346 = vld [vmem:[#allocation5 + $0x51c] sm:$0xff]
    %v347 = vld [vmem:[#allocation5 + $0x524] sm:$0xf]
    %v348 = vld [vmem:[#allocation5 + $0x528] sm:$0xff]
    %v349 = vld [vmem:[#allocation5 + $0x530] sm:$0xff]
    %v350 = vld [vmem:[#allocation5 + $0x538] sm:$0xf]
    %v351 = vld [vmem:[#allocation5 + $0x53c] sm:$0xff]
    %v352 = vld [vmem:[#allocation5 + $0x544] sm:$0xff]
    %v353 = vld [vmem:[#allocation5 + $0x54c] sm:$0xf]
    %v354 = vld [vmem:[#allocation5 + $0x550] sm:$0xff]
    %v355 = vld [vmem:[#allocation5 + $0x558] sm:$0xff]
    %v356 = vld [vmem:[#allocation5 + $0x560] sm:$0xf]
    %v357 = vld [vmem:[#allocation5 + $0x564] sm:$0xff]
    %v358 = vld [vmem:[#allocation5 + $0x56c] sm:$0xff]
    %v359 = vld [vmem:[#allocation5 + $0x574] sm:$0xf]
    %v360 = vld [vmem:[#allocation5 + $0x578] sm:$0xff]
    %v361 = vld [vmem:[#allocation5 + $0x580] sm:$0xff]
    %v362 = vld [vmem:[#allocation5 + $0x588] sm:$0xf]
    %v363 = vld [vmem:[#allocation5 + $0x58c] sm:$0xff]
    %v364 = vld [vmem:[#allocation5 + $0x594] sm:$0xff]
    %v365 = vld [vmem:[#allocation5 + $0x59c] sm:$0xf]
    %v366 = vld [vmem:[#allocation5 + $0x5a0] sm:$0xff]
    %v367 = vld [vmem:[#allocation5 + $0x5a8] sm:$0xff]
    %v368 = vld [vmem:[#allocation5 + $0x5b0] sm:$0xf]
    %v369 = vld [vmem:[#allocation5 + $0x5b4] sm:$0xff]
    %v370 = vld [vmem:[#allocation5 + $0x5bc] sm:$0xff]
    %v371 = vld [vmem:[#allocation5 + $0x5c4] sm:$0xf]
    %v372 = vld [vmem:[#allocation5 + $0x5c8] sm:$0xff]
    %v373 = vld [vmem:[#allocation5 + $0x5d0] sm:$0xff]
    %v374 = vld [vmem:[#allocation5 + $0x5d8] sm:$0xf]
    %v375 = vld [vmem:[#allocation5 + $0x5dc] sm:$0xff]
    %v376 = vld [vmem:[#allocation5 + $0x5e4] sm:$0xff]
    %v377 = vld [vmem:[#allocation5 + $0x5ec] sm:$0xf]
    %v378 = vld [vmem:[#allocation5 + $0x5f0] sm:$0xff]
    %v379 = vld [vmem:[#allocation5 + $0x5f8] sm:$0xff]
    %v380 = vld [vmem:[#allocation5 + $0x600] sm:$0xf]
    %v381 = vld [vmem:[#allocation5 + $0x604] sm:$0xff]
    %v382 = vld [vmem:[#allocation5 + $0x60c] sm:$0xff]
    %v383 = vld [vmem:[#allocation5 + $0x614] sm:$0xf]
    %v384 = vld [vmem:[#allocation5 + $0x618] sm:$0xff]
    %v385 = vld [vmem:[#allocation5 + $0x620] sm:$0xff]
    %v386 = vld [vmem:[#allocation5 + $0x628] sm:$0xf]
    %v387 = vld [vmem:[#allocation5 + $0x62c] sm:$0xff]
    %v388 = vld [vmem:[#allocation5 + $0x634] sm:$0xff]
    %v389 = vld [vmem:[#allocation5 + $0x63c] sm:$0xf]
    %v390 = vld [vmem:[#allocation5 + $0x640] sm:$0xff]
    %v391 = vld [vmem:[#allocation5 + $0x648] sm:$0xff]
    %v392 = vld [vmem:[#allocation5 + $0x650] sm:$0xf]
    %v393 = vld [vmem:[#allocation5 + $0x654] sm:$0xff]
    %v394 = vld [vmem:[#allocation5 + $0x65c] sm:$0xff]
    %v395 = vld [vmem:[#allocation5 + $0x664] sm:$0xf]
    %v396 = vld [vmem:[#allocation5 + $0x668] sm:$0xff]
    %v397 = vld [vmem:[#allocation5 + $0x670] sm:$0xff]
    %v398 = vld [vmem:[#allocation5 + $0x678] sm:$0xf]
    %v399 = vld [vmem:[#allocation5 + $0x67c] sm:$0xff]
    %v400 = vld [vmem:[#allocation5 + $0x684] sm:$0xff]
    %v401 = vld [vmem:[#allocation5 + $0x68c] sm:$0xf]
    %v402 = vld [vmem:[#allocation5 + $0x690] sm:$0xff]
    %v403 = vld [vmem:[#allocation5 + $0x698] sm:$0xff]
    %v404 = vld [vmem:[#allocation5 + $0x6a0] sm:$0xf]
    %v405 = vld [vmem:[#allocation5 + $0x6a4] sm:$0xff]
    %v406 = vld [vmem:[#allocation5 + $0x6ac] sm:$0xff]
    %v407 = vld [vmem:[#allocation5 + $0x6b4] sm:$0xf]
    %v408 = vld [vmem:[#allocation5 + $0x6b8] sm:$0xff]
    %v409 = vld [vmem:[#allocation5 + $0x6c0] sm:$0xff]
    %v410 = vld [vmem:[#allocation5 + $0x6c8] sm:$0xf]
    %v411 = vld [vmem:[#allocation5 + $0x6cc] sm:$0xff]
    %v412 = vld [vmem:[#allocation5 + $0x6d4] sm:$0xff]
    %v413 = vld [vmem:[#allocation5 + $0x6dc] sm:$0xf]
    %v414 = vld [vmem:[#allocation5 + $0x6e0] sm:$0xff]
    %v415 = vld [vmem:[#allocation5 + $0x6e8] sm:$0xff]
    %v416 = vld [vmem:[#allocation5 + $0x6f0] sm:$0xf]
    %v417 = vld [vmem:[#allocation5 + $0x6f4] sm:$0xff]
    %v418 = vld [vmem:[#allocation5 + $0x6fc] sm:$0xff]
    %v419 = vld [vmem:[#allocation5 + $0x704] sm:$0xf]
    %v420 = vld [vmem:[#allocation5 + $0x708] sm:$0xff]
    %v421 = vld [vmem:[#allocation5 + $0x710] sm:$0xff]
    %v422 = vld [vmem:[#allocation5 + $0x718] sm:$0xf]
    %v423 = vld [vmem:[#allocation5 + $0x71c] sm:$0xff]
    %v424 = vld [vmem:[#allocation5 + $0x724] sm:$0xff]
    %v425 = vld [vmem:[#allocation5 + $0x72c] sm:$0xf]
    %v426 = vld [vmem:[#allocation5 + $0x730] sm:$0xff]
    %v427 = vld [vmem:[#allocation5 + $0x738] sm:$0xff]
    %v428 = vld [vmem:[#allocation5 + $0x740] sm:$0xf]
    %v429 = vld [vmem:[#allocation5 + $0x744] sm:$0xff]
    %v430 = vld [vmem:[#allocation5 + $0x74c] sm:$0xff]
    %v431 = vld [vmem:[#allocation5 + $0x754] sm:$0xf]
    %v432 = vld [vmem:[#allocation5 + $0x758] sm:$0xff]
    %v433 = vld [vmem:[#allocation5 + $0x760] sm:$0xff]
    %v434 = vld [vmem:[#allocation5 + $0x768] sm:$0xf]
    %v435 = vld [vmem:[#allocation5 + $0x76c] sm:$0xff]
    %v436 = vld [vmem:[#allocation5 + $0x774] sm:$0xff]
    %v437 = vld [vmem:[#allocation5 + $0x77c] sm:$0xf]
    %v438 = vld [vmem:[#allocation5 + $0x780] sm:$0xff]
    %v439 = vld [vmem:[#allocation5 + $0x788] sm:$0xff]
    %v440 = vld [vmem:[#allocation5 + $0x790] sm:$0xf]
    %v441 = vld [vmem:[#allocation5 + $0x794] sm:$0xff]
    %v442 = vld [vmem:[#allocation5 + $0x79c] sm:$0xff]
    %v443 = vld [vmem:[#allocation5 + $0x7a4] sm:$0xf]
    %v444 = vld [vmem:[#allocation5 + $0x7a8] sm:$0xff]
    %v445 = vld [vmem:[#allocation5 + $0x7b0] sm:$0xff]
    %v446 = vld [vmem:[#allocation5 + $0x7b8] sm:$0xf]
    %v447 = vld [vmem:[#allocation5 + $0x7bc] sm:$0xff]
    %v448 = vld [vmem:[#allocation5 + $0x7c4] sm:$0xff]
    %v449 = vld [vmem:[#allocation5 + $0x7cc] sm:$0xf]
    %v450 = vld [vmem:[#allocation5 + $0x7d0] sm:$0xff]
    %v451 = vld [vmem:[#allocation5 + $0x7d8] sm:$0xff]
    %v452 = vld [vmem:[#allocation5 + $0x7e0] sm:$0xf]
    %v453 = vld [vmem:[#allocation5 + $0x7e4] sm:$0xff]
    %v454 = vld [vmem:[#allocation5 + $0x7ec] sm:$0xff]
    %v455 = vld [vmem:[#allocation5 + $0x7f4] sm:$0xf]
    %v456 = vld [vmem:[#allocation5 + $0x7f8] sm:$0xff]
    %v457 = vld [vmem:[#allocation5 + $0x800] sm:$0xff]
    %v458 = vld [vmem:[#allocation5 + $0x808] sm:$0xf]
    %v459 = vld [vmem:[#allocation5 + $0x80c] sm:$0xff]
    %v460 = vld [vmem:[#allocation5 + $0x814] sm:$0xff]
    %v461 = vld [vmem:[#allocation5 + $0x81c] sm:$0xf]
    %v462 = vld [vmem:[#allocation5 + $0x820] sm:$0xff]
    %v463 = vld [vmem:[#allocation5 + $0x828] sm:$0xff]
    %v464 = vld [vmem:[#allocation5 + $0x830] sm:$0xf]
    %v465 = vld [vmem:[#allocation5 + $0x834] sm:$0xff]
    %v466 = vld [vmem:[#allocation5 + $0x83c] sm:$0xff]
    %v467 = vld [vmem:[#allocation5 + $0x844] sm:$0xf]
    %v468 = vld [vmem:[#allocation5 + $0x848] sm:$0xff]
    %v469 = vld [vmem:[#allocation5 + $0x850] sm:$0xff]
    %v470 = vld [vmem:[#allocation5 + $0x858] sm:$0xf]
    %v471 = vld [vmem:[#allocation5 + $0x85c] sm:$0xff]
    %v472 = vld [vmem:[#allocation5 + $0x864] sm:$0xff]
    %v473 = vld [vmem:[#allocation5 + $0x86c] sm:$0xf]
    %v474 = vld [vmem:[#allocation5 + $0x870] sm:$0xff]
    %v475 = vld [vmem:[#allocation5 + $0x878] sm:$0xff]
    %v476 = vld [vmem:[#allocation5 + $0x880] sm:$0xf]
    %v477 = vld [vmem:[#allocation5 + $0x884] sm:$0xff]
    %v478 = vld [vmem:[#allocation5 + $0x88c] sm:$0xff]
    %v479 = vld [vmem:[#allocation5 + $0x894] sm:$0xf]
    %v480 = vld [vmem:[#allocation5 + $0x898] sm:$0xff]
    %v481 = vld [vmem:[#allocation5 + $0x8a0] sm:$0xff]
    %v482 = vld [vmem:[#allocation5 + $0x8a8] sm:$0xf]
    %v483 = vld [vmem:[#allocation5 + $0x8ac] sm:$0xff]
    %v484 = vld [vmem:[#allocation5 + $0x8b4] sm:$0xff]
    %v485 = vld [vmem:[#allocation5 + $0x8bc] sm:$0xf]
    %v486 = vld [vmem:[#allocation7] sm:$0x1f]
    %v488 = vlaneseq
    %v489 = vshrl.u32 %v488, 7
    %v490 = vsub.s32 0, %v489
    %v491 = vrot.slane %v486, %v490
    %v492 = vlaneseq
    %v493 = vshrl.u32 %v492, 7
    %v494 = vsub.s32 1, %v493
    %v495 = vrot.slane %v486, %v494
    %v496 = vlaneseq
    %v497 = vshrl.u32 %v496, 7
    %v498 = vsub.s32 2, %v497
    %v499 = vrot.slane %v486, %v498
    %v500 = vlaneseq
    %v501 = vshrl.u32 %v500, 7
    %v502 = vsub.s32 3, %v501
    %v503 = vrot.slane %v486, %v502
    %v504 = vlaneseq
    %v505 = vshrl.u32 %v504, 7
    %v506 = vsub.s32 4, %v505
    %v507 = vrot.slane %v486, %v506
    %v517 = vunpack.c.l.b16 %v146
    %v518 = vunpack.c.h.b16 %v146
    %v519 = vunpack.c.l.b16 %v147
    %v520 = vunpack.c.h.b16 %v147
    %v521 = vunpack.c.l.b16 %v148
    %v522 = vunpack.c.h.b16 %v148
    %v523 = vunpack.c.l.b16 %v149
    %v524 = vpack.c.b16 %v517, %v517
    %v525 = vpack.c.b16 %v518, %v518
    %v526 = vpack.c.b16 %v519, %v519
    %v527 = vpack.c.b16 %v520, %v520
    %v528 = vpack.c.b16 %v521, %v521
    %v529 = vpack.c.b16 %v522, %v522
    %v530 = vpack.c.b16 %v523, %v523
    %v874 = vunpack.c.l.b16 %v150
    %v875 = vunpack.c.h.b16 %v150
    %v876 = vunpack.c.l.b16 %v151
    %v877 = vunpack.c.h.b16 %v151
    %v878 = vunpack.c.l.b16 %v152
    %v879 = vunpack.c.l.b16 %v153
    %v880 = vunpack.c.h.b16 %v153
    %v881 = vunpack.c.l.b16 %v154
    %v882 = vunpack.c.h.b16 %v154
    %v883 = vunpack.c.l.b16 %v155
    %v884 = vunpack.c.l.b16 %v156
    %v885 = vunpack.c.h.b16 %v156
    %v886 = vunpack.c.l.b16 %v157
    %v887 = vunpack.c.h.b16 %v157
    %v888 = vunpack.c.l.b16 %v158
    %v889 = vunpack.c.l.b16 %v159
    %v890 = vunpack.c.h.b16 %v159
    %v891 = vunpack.c.l.b16 %v160
    %v892 = vunpack.c.h.b16 %v160
    %v893 = vunpack.c.l.b16 %v161
    %v894 = vunpack.c.l.b16 %v162
    %v895 = vunpack.c.h.b16 %v162
    %v896 = vunpack.c.l.b16 %v163
    %v897 = vunpack.c.h.b16 %v163
    %v898 = vunpack.c.l.b16 %v164
    %v899 = vunpack.c.l.b16 %v165
    %v900 = vunpack.c.h.b16 %v165
    %v901 = vunpack.c.l.b16 %v166
    %v902 = vunpack.c.h.b16 %v166
    %v903 = vunpack.c.l.b16 %v167
    %v904 = vunpack.c.l.b16 %v168
    %v905 = vunpack.c.h.b16 %v168
    %v906 = vunpack.c.l.b16 %v169
    %v907 = vunpack.c.h.b16 %v169
    %v908 = vunpack.c.l.b16 %v170
    %v909 = vunpack.c.l.b16 %v171
    %v910 = vunpack.c.h.b16 %v171
    %v911 = vunpack.c.l.b16 %v172
    %v912 = vunpack.c.h.b16 %v172
    %v913 = vunpack.c.l.b16 %v173
    %v914 = vunpack.c.l.b16 %v174
    %v915 = vunpack.c.h.b16 %v174
    %v916 = vunpack.c.l.b16 %v175
    %v917 = vunpack.c.h.b16 %v175
    %v918 = vunpack.c.l.b16 %v176
    %v919 = vunpack.c.l.b16 %v177
    %v920 = vunpack.c.h.b16 %v177
    %v921 = vunpack.c.l.b16 %v178
    %v922 = vunpack.c.h.b16 %v178
    %v923 = vunpack.c.l.b16 %v179
    %v924 = vunpack.c.l.b16 %v180
    %v925 = vunpack.c.h.b16 %v180
    %v926 = vunpack.c.l.b16 %v181
    %v927 = vunpack.c.h.b16 %v181
    %v928 = vunpack.c.l.b16 %v182
    %v929 = vunpack.c.l.b16 %v183
    %v930 = vunpack.c.h.b16 %v183
    %v931 = vunpack.c.l.b16 %v184
    %v932 = vunpack.c.h.b16 %v184
    %v933 = vunpack.c.l.b16 %v185
    %v934 = vunpack.c.l.b16 %v186
    %v935 = vunpack.c.h.b16 %v186
    %v936 = vunpack.c.l.b16 %v187
    %v937 = vunpack.c.h.b16 %v187
    %v938 = vunpack.c.l.b16 %v188
    %v939 = vunpack.c.l.b16 %v189
    %v940 = vunpack.c.h.b16 %v189
    %v941 = vunpack.c.l.b16 %v190
    %v942 = vunpack.c.h.b16 %v190
    %v943 = vunpack.c.l.b16 %v191
    %v944 = vunpack.c.l.b16 %v192
    %v945 = vunpack.c.h.b16 %v192
    %v946 = vunpack.c.l.b16 %v193
    %v947 = vunpack.c.h.b16 %v193
    %v948 = vunpack.c.l.b16 %v194
    %v949 = vunpack.c.l.b16 %v195
    %v950 = vunpack.c.h.b16 %v195
    %v951 = vunpack.c.l.b16 %v196
    %v952 = vunpack.c.h.b16 %v196
    %v953 = vunpack.c.l.b16 %v197
    %v954 = vunpack.c.l.b16 %v198
    %v955 = vunpack.c.h.b16 %v198
    %v956 = vunpack.c.l.b16 %v199
    %v957 = vunpack.c.h.b16 %v199
    %v958 = vunpack.c.l.b16 %v200
    %v959 = vunpack.c.l.b16 %v201
    %v960 = vunpack.c.h.b16 %v201
    %v961 = vunpack.c.l.b16 %v202
    %v962 = vunpack.c.h.b16 %v202
    %v963 = vunpack.c.l.b16 %v203
    %v964 = vunpack.c.l.b16 %v204
    %v965 = vunpack.c.h.b16 %v204
    %v966 = vunpack.c.l.b16 %v205
    %v967 = vunpack.c.h.b16 %v205
    %v968 = vunpack.c.l.b16 %v206
    %v969 = vunpack.c.l.b16 %v207
    %v970 = vunpack.c.h.b16 %v207
    %v971 = vunpack.c.l.b16 %v208
    %v972 = vunpack.c.h.b16 %v208
    %v973 = vunpack.c.l.b16 %v209
    %v974 = vunpack.c.l.b16 %v210
    %v975 = vunpack.c.h.b16 %v210
    %v976 = vunpack.c.l.b16 %v211
    %v977 = vunpack.c.h.b16 %v211
    %v978 = vunpack.c.l.b16 %v212
    %v979 = vunpack.c.l.b16 %v213
    %v980 = vunpack.c.h.b16 %v213
    %v981 = vunpack.c.l.b16 %v214
    %v982 = vunpack.c.h.b16 %v214
    %v983 = vunpack.c.l.b16 %v215
    %v984 = vunpack.c.l.b16 %v216
    %v985 = vunpack.c.h.b16 %v216
    %v986 = vunpack.c.l.b16 %v217
    %v987 = vunpack.c.h.b16 %v217
    %v988 = vunpack.c.l.b16 %v218
    %v989 = vunpack.c.l.b16 %v219
    %v990 = vunpack.c.h.b16 %v219
    %v991 = vunpack.c.l.b16 %v220
    %v992 = vunpack.c.h.b16 %v220
    %v993 = vunpack.c.l.b16 %v221
    %v994 = vunpack.c.l.b16 %v222
    %v995 = vunpack.c.h.b16 %v222
    %v996 = vunpack.c.l.b16 %v223
    %v997 = vunpack.c.h.b16 %v223
    %v998 = vunpack.c.l.b16 %v224
    %v999 = vunpack.c.l.b16 %v225
    %v1000 = vunpack.c.h.b16 %v225
    %v1001 = vunpack.c.l.b16 %v226
    %v1002 = vunpack.c.h.b16 %v226
    %v1003 = vunpack.c.l.b16 %v227
    %v1004 = vunpack.c.l.b16 %v228
    %v1005 = vunpack.c.h.b16 %v228
    %v1006 = vunpack.c.l.b16 %v229
    %v1007 = vunpack.c.h.b16 %v229
    %v1008 = vunpack.c.l.b16 %v230
    %v1009 = vunpack.c.l.b16 %v231
    %v1010 = vunpack.c.h.b16 %v231
    %v1011 = vunpack.c.l.b16 %v232
    %v1012 = vunpack.c.h.b16 %v232
    %v1013 = vunpack.c.l.b16 %v233
    %v1014 = vunpack.c.l.b16 %v234
    %v1015 = vunpack.c.h.b16 %v234
    %v1016 = vunpack.c.l.b16 %v235
    %v1017 = vunpack.c.h.b16 %v235
    %v1018 = vunpack.c.l.b16 %v236
    %v1019 = vunpack.c.l.b16 %v237
    %v1020 = vunpack.c.h.b16 %v237
    %v1021 = vunpack.c.l.b16 %v238
    %v1022 = vunpack.c.h.b16 %v238
    %v1023 = vunpack.c.l.b16 %v239
    %v1024 = vunpack.c.l.b16 %v240
    %v1025 = vunpack.c.h.b16 %v240
    %v1026 = vunpack.c.l.b16 %v241
    %v1027 = vunpack.c.h.b16 %v241
    %v1028 = vunpack.c.l.b16 %v242
    %v1029 = vunpack.c.l.b16 %v243
    %v1030 = vunpack.c.h.b16 %v243
    %v1031 = vunpack.c.l.b16 %v244
    %v1032 = vunpack.c.h.b16 %v244
    %v1033 = vunpack.c.l.b16 %v245
    %v1034 = vunpack.c.l.b16 %v246
    %v1035 = vunpack.c.h.b16 %v246
    %v1036 = vunpack.c.l.b16 %v247
    %v1037 = vunpack.c.h.b16 %v247
    %v1038 = vunpack.c.l.b16 %v248
    %v1039 = vunpack.c.l.b16 %v249
    %v1040 = vunpack.c.h.b16 %v249
    %v1041 = vunpack.c.l.b16 %v250
    %v1042 = vunpack.c.h.b16 %v250
    %v1043 = vunpack.c.l.b16 %v251
    %v1044 = vunpack.c.l.b16 %v252
    %v1045 = vunpack.c.h.b16 %v252
    %v1046 = vunpack.c.l.b16 %v253
    %v1047 = vunpack.c.h.b16 %v253
    %v1048 = vunpack.c.l.b16 %v254
    %v1049 = vunpack.c.l.b16 %v255
    %v1050 = vunpack.c.h.b16 %v255
    %v1051 = vunpack.c.l.b16 %v256
    %v1052 = vunpack.c.h.b16 %v256
    %v1053 = vunpack.c.l.b16 %v257
    %v1054 = vunpack.c.l.b16 %v258
    %v1055 = vunpack.c.h.b16 %v258
    %v1056 = vunpack.c.l.b16 %v259
    %v1057 = vunpack.c.h.b16 %v259
    %v1058 = vunpack.c.l.b16 %v260
    %v1059 = vunpack.c.l.b16 %v261
    %v1060 = vunpack.c.h.b16 %v261
    %v1061 = vunpack.c.l.b16 %v262
    %v1062 = vunpack.c.h.b16 %v262
    %v1063 = vunpack.c.l.b16 %v263
    %v1064 = vunpack.c.l.b16 %v264
    %v1065 = vunpack.c.h.b16 %v264
    %v1066 = vunpack.c.l.b16 %v265
    %v1067 = vunpack.c.h.b16 %v265
    %v1068 = vunpack.c.l.b16 %v266
    %v1069 = vunpack.c.l.b16 %v267
    %v1070 = vunpack.c.h.b16 %v267
    %v1071 = vunpack.c.l.b16 %v268
    %v1072 = vunpack.c.h.b16 %v268
    %v1073 = vunpack.c.l.b16 %v269
    %v1074 = vunpack.c.l.b16 %v270
    %v1075 = vunpack.c.h.b16 %v270
    %v1076 = vunpack.c.l.b16 %v271
    %v1077 = vunpack.c.h.b16 %v271
    %v1078 = vunpack.c.l.b16 %v272
    %v1079 = vunpack.c.l.b16 %v273
    %v1080 = vunpack.c.h.b16 %v273
    %v1081 = vunpack.c.l.b16 %v274
    %v1082 = vunpack.c.h.b16 %v274
    %v1083 = vunpack.c.l.b16 %v275
    %v1084 = vunpack.c.l.b16 %v276
    %v1085 = vunpack.c.h.b16 %v276
    %v1086 = vunpack.c.l.b16 %v277
    %v1087 = vunpack.c.h.b16 %v277
    %v1088 = vunpack.c.l.b16 %v278
    %v1089 = vunpack.c.l.b16 %v279
    %v1090 = vunpack.c.h.b16 %v279
    %v1091 = vunpack.c.l.b16 %v280
    %v1092 = vunpack.c.h.b16 %v280
    %v1093 = vunpack.c.l.b16 %v281
    %v1094 = vunpack.c.l.b16 %v282
    %v1095 = vunpack.c.h.b16 %v282
    %v1096 = vunpack.c.l.b16 %v283
    %v1097 = vunpack.c.h.b16 %v283
    %v1098 = vunpack.c.l.b16 %v284
    %v1099 = vunpack.c.l.b16 %v285
    %v1100 = vunpack.c.h.b16 %v285
    %v1101 = vunpack.c.l.b16 %v286
    %v1102 = vunpack.c.h.b16 %v286
    %v1103 = vunpack.c.l.b16 %v287
    %v1104 = vunpack.c.l.b16 %v288
    %v1105 = vunpack.c.h.b16 %v288
    %v1106 = vunpack.c.l.b16 %v289
    %v1107 = vunpack.c.h.b16 %v289
    %v1108 = vunpack.c.l.b16 %v290
    %v1109 = vunpack.c.l.b16 %v291
    %v1110 = vunpack.c.h.b16 %v291
    %v1111 = vunpack.c.l.b16 %v292
    %v1112 = vunpack.c.h.b16 %v292
    %v1113 = vunpack.c.l.b16 %v293
    %v1114 = vunpack.c.l.b16 %v294
    %v1115 = vunpack.c.h.b16 %v294
    %v1116 = vunpack.c.l.b16 %v295
    %v1117 = vunpack.c.h.b16 %v295
    %v1118 = vunpack.c.l.b16 %v296
    %v1119 = vunpack.c.l.b16 %v297
    %v1120 = vunpack.c.h.b16 %v297
    %v1121 = vunpack.c.l.b16 %v298
    %v1122 = vunpack.c.h.b16 %v298
    %v1123 = vunpack.c.l.b16 %v299
    %v1124 = vunpack.c.l.b16 %v300
    %v1125 = vunpack.c.h.b16 %v300
    %v1126 = vunpack.c.l.b16 %v301
    %v1127 = vunpack.c.h.b16 %v301
    %v1128 = vunpack.c.l.b16 %v302
    %v1129 = vunpack.c.l.b16 %v303
    %v1130 = vunpack.c.h.b16 %v303
    %v1131 = vunpack.c.l.b16 %v304
    %v1132 = vunpack.c.h.b16 %v304
    %v1133 = vunpack.c.l.b16 %v305
    %v1134 = vunpack.c.l.b16 %v306
    %v1135 = vunpack.c.h.b16 %v306
    %v1136 = vunpack.c.l.b16 %v307
    %v1137 = vunpack.c.h.b16 %v307
    %v1138 = vunpack.c.l.b16 %v308
    %v1139 = vunpack.c.l.b16 %v309
    %v1140 = vunpack.c.h.b16 %v309
    %v1141 = vunpack.c.l.b16 %v310
    %v1142 = vunpack.c.h.b16 %v310
    %v1143 = vunpack.c.l.b16 %v311
    %v1144 = vunpack.c.l.b16 %v312
    %v1145 = vunpack.c.h.b16 %v312
    %v1146 = vunpack.c.l.b16 %v313
    %v1147 = vunpack.c.h.b16 %v313
    %v1148 = vunpack.c.l.b16 %v314
    %v1149 = vunpack.c.l.b16 %v315
    %v1150 = vunpack.c.h.b16 %v315
    %v1151 = vunpack.c.l.b16 %v316
    %v1152 = vunpack.c.h.b16 %v316
    %v1153 = vunpack.c.l.b16 %v317
    %v1154 = vunpack.c.l.b16 %v318
    %v1155 = vunpack.c.h.b16 %v318
    %v1156 = vunpack.c.l.b16 %v319
    %v1157 = vunpack.c.h.b16 %v319
    %v1158 = vunpack.c.l.b16 %v320
    %v1159 = vunpack.c.l.b16 %v321
    %v1160 = vunpack.c.h.b16 %v321
    %v1161 = vunpack.c.l.b16 %v322
    %v1162 = vunpack.c.h.b16 %v322
    %v1163 = vunpack.c.l.b16 %v323
    %v1164 = vunpack.c.l.b16 %v324
    %v1165 = vunpack.c.h.b16 %v324
    %v1166 = vunpack.c.l.b16 %v325
    %v1167 = vunpack.c.h.b16 %v325
    %v1168 = vunpack.c.l.b16 %v326
    %v1169 = vunpack.c.l.b16 %v327
    %v1170 = vunpack.c.h.b16 %v327
    %v1171 = vunpack.c.l.b16 %v328
    %v1172 = vunpack.c.h.b16 %v328
    %v1173 = vunpack.c.l.b16 %v329
    %v1174 = vunpack.c.l.b16 %v330
    %v1175 = vunpack.c.h.b16 %v330
    %v1176 = vunpack.c.l.b16 %v331
    %v1177 = vunpack.c.h.b16 %v331
    %v1178 = vunpack.c.l.b16 %v332
    %v1179 = vunpack.c.l.b16 %v333
    %v1180 = vunpack.c.h.b16 %v333
    %v1181 = vunpack.c.l.b16 %v334
    %v1182 = vunpack.c.h.b16 %v334
    %v1183 = vunpack.c.l.b16 %v335
    %v1184 = vunpack.c.l.b16 %v336
    %v1185 = vunpack.c.h.b16 %v336
    %v1186 = vunpack.c.l.b16 %v337
    %v1187 = vunpack.c.h.b16 %v337
    %v1188 = vunpack.c.l.b16 %v338
    %v1189 = vunpack.c.l.b16 %v339
    %v1190 = vunpack.c.h.b16 %v339
    %v1191 = vunpack.c.l.b16 %v340
    %v1192 = vunpack.c.h.b16 %v340
    %v1193 = vunpack.c.l.b16 %v341
    %v1194 = vunpack.c.l.b16 %v342
    %v1195 = vunpack.c.h.b16 %v342
    %v1196 = vunpack.c.l.b16 %v343
    %v1197 = vunpack.c.h.b16 %v343
    %v1198 = vunpack.c.l.b16 %v344
    %v1199 = vunpack.c.l.b16 %v345
    %v1200 = vunpack.c.h.b16 %v345
    %v1201 = vunpack.c.l.b16 %v346
    %v1202 = vunpack.c.h.b16 %v346
    %v1203 = vunpack.c.l.b16 %v347
    %v1204 = vunpack.c.l.b16 %v348
    %v1205 = vunpack.c.h.b16 %v348
    %v1206 = vunpack.c.l.b16 %v349
    %v1207 = vunpack.c.h.b16 %v349
    %v1208 = vunpack.c.l.b16 %v350
    %v1209 = vunpack.c.l.b16 %v351
    %v1210 = vunpack.c.h.b16 %v351
    %v1211 = vunpack.c.l.b16 %v352
    %v1212 = vunpack.c.h.b16 %v352
    %v1213 = vunpack.c.l.b16 %v353
    %v1214 = vunpack.c.l.b16 %v354
    %v1215 = vunpack.c.h.b16 %v354
    %v1216 = vunpack.c.l.b16 %v355
    %v1217 = vunpack.c.h.b16 %v355
    %v1218 = vunpack.c.l.b16 %v356
    %v1219 = vunpack.c.l.b16 %v357
    %v1220 = vunpack.c.h.b16 %v357
    %v1221 = vunpack.c.l.b16 %v358
    %v1222 = vunpack.c.h.b16 %v358
    %v1223 = vunpack.c.l.b16 %v359
    %v1224 = vunpack.c.l.b16 %v360
    %v1225 = vunpack.c.h.b16 %v360
    %v1226 = vunpack.c.l.b16 %v361
    %v1227 = vunpack.c.h.b16 %v361
    %v1228 = vunpack.c.l.b16 %v362
    %v1229 = vunpack.c.l.b16 %v363
    %v1230 = vunpack.c.h.b16 %v363
    %v1231 = vunpack.c.l.b16 %v364
    %v1232 = vunpack.c.h.b16 %v364
    %v1233 = vunpack.c.l.b16 %v365
    %v1234 = vunpack.c.l.b16 %v366
    %v1235 = vunpack.c.h.b16 %v366
    %v1236 = vunpack.c.l.b16 %v367
    %v1237 = vunpack.c.h.b16 %v367
    %v1238 = vunpack.c.l.b16 %v368
    %v1239 = vunpack.c.l.b16 %v369
    %v1240 = vunpack.c.h.b16 %v369
    %v1241 = vunpack.c.l.b16 %v370
    %v1242 = vunpack.c.h.b16 %v370
    %v1243 = vunpack.c.l.b16 %v371
    %v1244 = vunpack.c.l.b16 %v372
    %v1245 = vunpack.c.h.b16 %v372
    %v1246 = vunpack.c.l.b16 %v373
    %v1247 = vunpack.c.h.b16 %v373
    %v1248 = vunpack.c.l.b16 %v374
    %v1249 = vunpack.c.l.b16 %v375
    %v1250 = vunpack.c.h.b16 %v375
    %v1251 = vunpack.c.l.b16 %v376
    %v1252 = vunpack.c.h.b16 %v376
    %v1253 = vunpack.c.l.b16 %v377
    %v1254 = vunpack.c.l.b16 %v378
    %v1255 = vunpack.c.h.b16 %v378
    %v1256 = vunpack.c.l.b16 %v379
    %v1257 = vunpack.c.h.b16 %v379
    %v1258 = vunpack.c.l.b16 %v380
    %v1259 = vunpack.c.l.b16 %v381
    %v1260 = vunpack.c.h.b16 %v381
    %v1261 = vunpack.c.l.b16 %v382
    %v1262 = vunpack.c.h.b16 %v382
    %v1263 = vunpack.c.l.b16 %v383
    %v1264 = vunpack.c.l.b16 %v384
    %v1265 = vunpack.c.h.b16 %v384
    %v1266 = vunpack.c.l.b16 %v385
    %v1267 = vunpack.c.h.b16 %v385
    %v1268 = vunpack.c.l.b16 %v386
    %v1269 = vunpack.c.l.b16 %v387
    %v1270 = vunpack.c.h.b16 %v387
    %v1271 = vunpack.c.l.b16 %v388
    %v1272 = vunpack.c.h.b16 %v388
    %v1273 = vunpack.c.l.b16 %v389
    %v1274 = vunpack.c.l.b16 %v390
    %v1275 = vunpack.c.h.b16 %v390
    %v1276 = vunpack.c.l.b16 %v391
    %v1277 = vunpack.c.h.b16 %v391
    %v1278 = vunpack.c.l.b16 %v392
    %v1279 = vunpack.c.l.b16 %v393
    %v1280 = vunpack.c.h.b16 %v393
    %v1281 = vunpack.c.l.b16 %v394
    %v1282 = vunpack.c.h.b16 %v394
    %v1283 = vunpack.c.l.b16 %v395
    %v1284 = vunpack.c.l.b16 %v396
    %v1285 = vunpack.c.h.b16 %v396
    %v1286 = vunpack.c.l.b16 %v397
    %v1287 = vunpack.c.h.b16 %v397
    %v1288 = vunpack.c.l.b16 %v398
    %v1289 = vunpack.c.l.b16 %v399
    %v1290 = vunpack.c.h.b16 %v399
    %v1291 = vunpack.c.l.b16 %v400
    %v1292 = vunpack.c.h.b16 %v400
    %v1293 = vunpack.c.l.b16 %v401
    %v1294 = vunpack.c.l.b16 %v402
    %v1295 = vunpack.c.h.b16 %v402
    %v1296 = vunpack.c.l.b16 %v403
    %v1297 = vunpack.c.h.b16 %v403
    %v1298 = vunpack.c.l.b16 %v404
    %v1299 = vunpack.c.l.b16 %v405
    %v1300 = vunpack.c.h.b16 %v405
    %v1301 = vunpack.c.l.b16 %v406
    %v1302 = vunpack.c.h.b16 %v406
    %v1303 = vunpack.c.l.b16 %v407
    %v1304 = vunpack.c.l.b16 %v408
    %v1305 = vunpack.c.h.b16 %v408
    %v1306 = vunpack.c.l.b16 %v409
    %v1307 = vunpack.c.h.b16 %v409
    %v1308 = vunpack.c.l.b16 %v410
    %v1309 = vunpack.c.l.b16 %v411
    %v1310 = vunpack.c.h.b16 %v411
    %v1311 = vunpack.c.l.b16 %v412
    %v1312 = vunpack.c.h.b16 %v412
    %v1313 = vunpack.c.l.b16 %v413
    %v1314 = vunpack.c.l.b16 %v414
    %v1315 = vunpack.c.h.b16 %v414
    %v1316 = vunpack.c.l.b16 %v415
    %v1317 = vunpack.c.h.b16 %v415
    %v1318 = vunpack.c.l.b16 %v416
    %v1319 = vunpack.c.l.b16 %v417
    %v1320 = vunpack.c.h.b16 %v417
    %v1321 = vunpack.c.l.b16 %v418
    %v1322 = vunpack.c.h.b16 %v418
    %v1323 = vunpack.c.l.b16 %v419
    %v1324 = vunpack.c.l.b16 %v420
    %v1325 = vunpack.c.h.b16 %v420
    %v1326 = vunpack.c.l.b16 %v421
    %v1327 = vunpack.c.h.b16 %v421
    %v1328 = vunpack.c.l.b16 %v422
    %v1329 = vunpack.c.l.b16 %v423
    %v1330 = vunpack.c.h.b16 %v423
    %v1331 = vunpack.c.l.b16 %v424
    %v1332 = vunpack.c.h.b16 %v424
    %v1333 = vunpack.c.l.b16 %v425
    %v1334 = vunpack.c.l.b16 %v426
    %v1335 = vunpack.c.h.b16 %v426
    %v1336 = vunpack.c.l.b16 %v427
    %v1337 = vunpack.c.h.b16 %v427
    %v1338 = vunpack.c.l.b16 %v428
    %v1339 = vunpack.c.l.b16 %v429
    %v1340 = vunpack.c.h.b16 %v429
    %v1341 = vunpack.c.l.b16 %v430
    %v1342 = vunpack.c.h.b16 %v430
    %v1343 = vunpack.c.l.b16 %v431
    %v1344 = vunpack.c.l.b16 %v432
    %v1345 = vunpack.c.h.b16 %v432
    %v1346 = vunpack.c.l.b16 %v433
    %v1347 = vunpack.c.h.b16 %v433
    %v1348 = vunpack.c.l.b16 %v434
    %v1349 = vunpack.c.l.b16 %v435
    %v1350 = vunpack.c.h.b16 %v435
    %v1351 = vunpack.c.l.b16 %v436
    %v1352 = vunpack.c.h.b16 %v436
    %v1353 = vunpack.c.l.b16 %v437
    %v1354 = vunpack.c.l.b16 %v438
    %v1355 = vunpack.c.h.b16 %v438
    %v1356 = vunpack.c.l.b16 %v439
    %v1357 = vunpack.c.h.b16 %v439
    %v1358 = vunpack.c.l.b16 %v440
    %v1359 = vunpack.c.l.b16 %v441
    %v1360 = vunpack.c.h.b16 %v441
    %v1361 = vunpack.c.l.b16 %v442
    %v1362 = vunpack.c.h.b16 %v442
    %v1363 = vunpack.c.l.b16 %v443
    %v1364 = vunpack.c.l.b16 %v444
    %v1365 = vunpack.c.h.b16 %v444
    %v1366 = vunpack.c.l.b16 %v445
    %v1367 = vunpack.c.h.b16 %v445
    %v1368 = vunpack.c.l.b16 %v446
    %v1369 = vunpack.c.l.b16 %v447
    %v1370 = vunpack.c.h.b16 %v447
    %v1371 = vunpack.c.l.b16 %v448
    %v1372 = vunpack.c.h.b16 %v448
    %v1373 = vunpack.c.l.b16 %v449
    %v1374 = vunpack.c.l.b16 %v450
    %v1375 = vunpack.c.h.b16 %v450
    %v1376 = vunpack.c.l.b16 %v451
    %v1377 = vunpack.c.h.b16 %v451
    %v1378 = vunpack.c.l.b16 %v452
    %v1379 = vunpack.c.l.b16 %v453
    %v1380 = vunpack.c.h.b16 %v453
    %v1381 = vunpack.c.l.b16 %v454
    %v1382 = vunpack.c.h.b16 %v454
    %v1383 = vunpack.c.l.b16 %v455
    %v1384 = vunpack.c.l.b16 %v456
    %v1385 = vunpack.c.h.b16 %v456
    %v1386 = vunpack.c.l.b16 %v457
    %v1387 = vunpack.c.h.b16 %v457
    %v1388 = vunpack.c.l.b16 %v458
    %v1389 = vunpack.c.l.b16 %v459
    %v1390 = vunpack.c.h.b16 %v459
    %v1391 = vunpack.c.l.b16 %v460
    %v1392 = vunpack.c.h.b16 %v460
    %v1393 = vunpack.c.l.b16 %v461
    %v1394 = vunpack.c.l.b16 %v462
    %v1395 = vunpack.c.h.b16 %v462
    %v1396 = vunpack.c.l.b16 %v463
    %v1397 = vunpack.c.h.b16 %v463
    %v1398 = vunpack.c.l.b16 %v464
    %v1399 = vunpack.c.l.b16 %v465
    %v1400 = vunpack.c.h.b16 %v465
    %v1401 = vunpack.c.l.b16 %v466
    %v1402 = vunpack.c.h.b16 %v466
    %v1403 = vunpack.c.l.b16 %v467
    %v1404 = vunpack.c.l.b16 %v468
    %v1405 = vunpack.c.h.b16 %v468
    %v1406 = vunpack.c.l.b16 %v469
    %v1407 = vunpack.c.h.b16 %v469
    %v1408 = vunpack.c.l.b16 %v470
    %v1409 = vunpack.c.l.b16 %v471
    %v1410 = vunpack.c.h.b16 %v471
    %v1411 = vunpack.c.l.b16 %v472
    %v1412 = vunpack.c.h.b16 %v472
    %v1413 = vunpack.c.l.b16 %v473
    %v1414 = vunpack.c.l.b16 %v474
    %v1415 = vunpack.c.h.b16 %v474
    %v1416 = vunpack.c.l.b16 %v475
    %v1417 = vunpack.c.h.b16 %v475
    %v1418 = vunpack.c.l.b16 %v476
    %v1419 = vunpack.c.l.b16 %v477
    %v1420 = vunpack.c.h.b16 %v477
    %v1421 = vunpack.c.l.b16 %v478
    %v1422 = vunpack.c.h.b16 %v478
    %v1423 = vunpack.c.l.b16 %v479
    %v1424 = vunpack.c.l.b16 %v480
    %v1425 = vunpack.c.h.b16 %v480
    %v1426 = vunpack.c.l.b16 %v481
    %v1427 = vunpack.c.h.b16 %v481
    %v1428 = vunpack.c.l.b16 %v482
    %v1429 = vunpack.c.l.b16 %v483
    %v1430 = vunpack.c.h.b16 %v483
    %v1431 = vunpack.c.l.b16 %v484
    %v1432 = vunpack.c.h.b16 %v484
    %v1433 = vunpack.c.l.b16 %v485
    %v1434 = vpack.c.b16 %v879, %v874
    %v1435 = vpack.c.b16 %v880, %v875
    %v1436 = vpack.c.b16 %v881, %v876
    %v1437 = vpack.c.b16 %v882, %v877
    %v1438 = vpack.c.b16 %v883, %v878
    %v1439 = vpack.c.b16 %v889, %v884
    %v1440 = vpack.c.b16 %v890, %v885
    %v1441 = vpack.c.b16 %v891, %v886
    %v1442 = vpack.c.b16 %v892, %v887
    %v1443 = vpack.c.b16 %v893, %v888
    %v1444 = vpack.c.b16 %v899, %v894
    %v1445 = vpack.c.b16 %v900, %v895
    %v1446 = vpack.c.b16 %v901, %v896
    %v1447 = vpack.c.b16 %v902, %v897
    %v1448 = vpack.c.b16 %v903, %v898
    %v1449 = vpack.c.b16 %v909, %v904
    %v1450 = vpack.c.b16 %v910, %v905
    %v1451 = vpack.c.b16 %v911, %v906
    %v1452 = vpack.c.b16 %v912, %v907
    %v1453 = vpack.c.b16 %v913, %v908
    %v1454 = vpack.c.b16 %v919, %v914
    %v1455 = vpack.c.b16 %v920, %v915
    %v1456 = vpack.c.b16 %v921, %v916
    %v1457 = vpack.c.b16 %v922, %v917
    %v1458 = vpack.c.b16 %v923, %v918
    %v1459 = vpack.c.b16 %v929, %v924
    %v1460 = vpack.c.b16 %v930, %v925
    %v1461 = vpack.c.b16 %v931, %v926
    %v1462 = vpack.c.b16 %v932, %v927
    %v1463 = vpack.c.b16 %v933, %v928
    %v1464 = vpack.c.b16 %v939, %v934
    %v1465 = vpack.c.b16 %v940, %v935
    %v1466 = vpack.c.b16 %v941, %v936
    %v1467 = vpack.c.b16 %v942, %v937
    %v1468 = vpack.c.b16 %v943, %v938
    %v1469 = vpack.c.b16 %v949, %v944
    %v1470 = vpack.c.b16 %v950, %v945
    %v1471 = vpack.c.b16 %v951, %v946
    %v1472 = vpack.c.b16 %v952, %v947
    %v1473 = vpack.c.b16 %v953, %v948
    %v1474 = vpack.c.b16 %v959, %v954
    %v1475 = vpack.c.b16 %v960, %v955
    %v1476 = vpack.c.b16 %v961, %v956
    %v1477 = vpack.c.b16 %v962, %v957
    %v1478 = vpack.c.b16 %v963, %v958
    %v1479 = vpack.c.b16 %v969, %v964
    %v1480 = vpack.c.b16 %v970, %v965
    %v1481 = vpack.c.b16 %v971, %v966
    %v1482 = vpack.c.b16 %v972, %v967
    %v1483 = vpack.c.b16 %v973, %v968
    %v1484 = vpack.c.b16 %v979, %v974
    %v1485 = vpack.c.b16 %v980, %v975
    %v1486 = vpack.c.b16 %v981, %v976
    %v1487 = vpack.c.b16 %v982, %v977
    %v1488 = vpack.c.b16 %v983, %v978
    %v1489 = vpack.c.b16 %v989, %v984
    %v1490 = vpack.c.b16 %v990, %v985
    %v1491 = vpack.c.b16 %v991, %v986
    %v1492 = vpack.c.b16 %v992, %v987
    %v1493 = vpack.c.b16 %v993, %v988
    %v1494 = vpack.c.b16 %v999, %v994
    %v1495 = vpack.c.b16 %v1000, %v995
    %v1496 = vpack.c.b16 %v1001, %v996
    %v1497 = vpack.c.b16 %v1002, %v997
    %v1498 = vpack.c.b16 %v1003, %v998
    %v1499 = vpack.c.b16 %v1009, %v1004
    %v1500 = vpack.c.b16 %v1010, %v1005
    %v1501 = vpack.c.b16 %v1011, %v1006
    %v1502 = vpack.c.b16 %v1012, %v1007
    %v1503 = vpack.c.b16 %v1013, %v1008
    %v1504 = vpack.c.b16 %v1019, %v1014
    %v1505 = vpack.c.b16 %v1020, %v1015
    %v1506 = vpack.c.b16 %v1021, %v1016
    %v1507 = vpack.c.b16 %v1022, %v1017
    %v1508 = vpack.c.b16 %v1023, %v1018
    %v1509 = vpack.c.b16 %v1029, %v1024
    %v1510 = vpack.c.b16 %v1030, %v1025
    %v1511 = vpack.c.b16 %v1031, %v1026
    %v1512 = vpack.c.b16 %v1032, %v1027
    %v1513 = vpack.c.b16 %v1033, %v1028
    %v1514 = vpack.c.b16 %v1039, %v1034
    %v1515 = vpack.c.b16 %v1040, %v1035
    %v1516 = vpack.c.b16 %v1041, %v1036
    %v1517 = vpack.c.b16 %v1042, %v1037
    %v1518 = vpack.c.b16 %v1043, %v1038
    %v1519 = vpack.c.b16 %v1049, %v1044
    %v1520 = vpack.c.b16 %v1050, %v1045
    %v1521 = vpack.c.b16 %v1051, %v1046
    %v1522 = vpack.c.b16 %v1052, %v1047
    %v1523 = vpack.c.b16 %v1053, %v1048
    %v1524 = vpack.c.b16 %v1059, %v1054
    %v1525 = vpack.c.b16 %v1060, %v1055
    %v1526 = vpack.c.b16 %v1061, %v1056
    %v1527 = vpack.c.b16 %v1062, %v1057
    %v1528 = vpack.c.b16 %v1063, %v1058
    %v1529 = vpack.c.b16 %v1069, %v1064
    %v1530 = vpack.c.b16 %v1070, %v1065
    %v1531 = vpack.c.b16 %v1071, %v1066
    %v1532 = vpack.c.b16 %v1072, %v1067
    %v1533 = vpack.c.b16 %v1073, %v1068
    %v1534 = vpack.c.b16 %v1079, %v1074
    %v1535 = vpack.c.b16 %v1080, %v1075
    %v1536 = vpack.c.b16 %v1081, %v1076
    %v1537 = vpack.c.b16 %v1082, %v1077
    %v1538 = vpack.c.b16 %v1083, %v1078
    %v1539 = vpack.c.b16 %v1089, %v1084
    %v1540 = vpack.c.b16 %v1090, %v1085
    %v1541 = vpack.c.b16 %v1091, %v1086
    %v1542 = vpack.c.b16 %v1092, %v1087
    %v1543 = vpack.c.b16 %v1093, %v1088
    %v1544 = vpack.c.b16 %v1099, %v1094
    %v1545 = vpack.c.b16 %v1100, %v1095
    %v1546 = vpack.c.b16 %v1101, %v1096
    %v1547 = vpack.c.b16 %v1102, %v1097
    %v1548 = vpack.c.b16 %v1103, %v1098
    %v1549 = vpack.c.b16 %v1109, %v1104
    %v1550 = vpack.c.b16 %v1110, %v1105
    %v1551 = vpack.c.b16 %v1111, %v1106
    %v1552 = vpack.c.b16 %v1112, %v1107
    %v1553 = vpack.c.b16 %v1113, %v1108
    %v1554 = vpack.c.b16 %v1119, %v1114
    %v1555 = vpack.c.b16 %v1120, %v1115
    %v1556 = vpack.c.b16 %v1121, %v1116
    %v1557 = vpack.c.b16 %v1122, %v1117
    %v1558 = vpack.c.b16 %v1123, %v1118
    %v1559 = vpack.c.b16 %v1129, %v1124
    %v1560 = vpack.c.b16 %v1130, %v1125
    %v1561 = vpack.c.b16 %v1131, %v1126
    %v1562 = vpack.c.b16 %v1132, %v1127
    %v1563 = vpack.c.b16 %v1133, %v1128
    %v1564 = vpack.c.b16 %v1139, %v1134
    %v1565 = vpack.c.b16 %v1140, %v1135
    %v1566 = vpack.c.b16 %v1141, %v1136
    %v1567 = vpack.c.b16 %v1142, %v1137
    %v1568 = vpack.c.b16 %v1143, %v1138
    %v1569 = vpack.c.b16 %v1149, %v1144
    %v1570 = vpack.c.b16 %v1150, %v1145
    %v1571 = vpack.c.b16 %v1151, %v1146
    %v1572 = vpack.c.b16 %v1152, %v1147
    %v1573 = vpack.c.b16 %v1153, %v1148
    %v1574 = vpack.c.b16 %v1159, %v1154
    %v1575 = vpack.c.b16 %v1160, %v1155
    %v1576 = vpack.c.b16 %v1161, %v1156
    %v1577 = vpack.c.b16 %v1162, %v1157
    %v1578 = vpack.c.b16 %v1163, %v1158
    %v1579 = vpack.c.b16 %v1169, %v1164
    %v1580 = vpack.c.b16 %v1170, %v1165
    %v1581 = vpack.c.b16 %v1171, %v1166
    %v1582 = vpack.c.b16 %v1172, %v1167
    %v1583 = vpack.c.b16 %v1173, %v1168
    %v1584 = vpack.c.b16 %v1179, %v1174
    %v1585 = vpack.c.b16 %v1180, %v1175
    %v1586 = vpack.c.b16 %v1181, %v1176
    %v1587 = vpack.c.b16 %v1182, %v1177
    %v1588 = vpack.c.b16 %v1183, %v1178
    %v1589 = vpack.c.b16 %v1189, %v1184
    %v1590 = vpack.c.b16 %v1190, %v1185
    %v1591 = vpack.c.b16 %v1191, %v1186
    %v1592 = vpack.c.b16 %v1192, %v1187
    %v1593 = vpack.c.b16 %v1193, %v1188
    %v1594 = vpack.c.b16 %v1199, %v1194
    %v1595 = vpack.c.b16 %v1200, %v1195
    %v1596 = vpack.c.b16 %v1201, %v1196
    %v1597 = vpack.c.b16 %v1202, %v1197
    %v1598 = vpack.c.b16 %v1203, %v1198
    %v1599 = vpack.c.b16 %v1209, %v1204
    %v1600 = vpack.c.b16 %v1210, %v1205
    %v1601 = vpack.c.b16 %v1211, %v1206
    %v1602 = vpack.c.b16 %v1212, %v1207
    %v1603 = vpack.c.b16 %v1213, %v1208
    %v1604 = vpack.c.b16 %v1219, %v1214
    %v1605 = vpack.c.b16 %v1220, %v1215
    %v1606 = vpack.c.b16 %v1221, %v1216
    %v1607 = vpack.c.b16 %v1222, %v1217
    %v1608 = vpack.c.b16 %v1223, %v1218
    %v1609 = vpack.c.b16 %v1229, %v1224
    %v1610 = vpack.c.b16 %v1230, %v1225
    %v1611 = vpack.c.b16 %v1231, %v1226
    %v1612 = vpack.c.b16 %v1232, %v1227
    %v1613 = vpack.c.b16 %v1233, %v1228
    %v1614 = vpack.c.b16 %v1239, %v1234
    %v1615 = vpack.c.b16 %v1240, %v1235
    %v1616 = vpack.c.b16 %v1241, %v1236
    %v1617 = vpack.c.b16 %v1242, %v1237
    %v1618 = vpack.c.b16 %v1243, %v1238
    %v1619 = vpack.c.b16 %v1249, %v1244
    %v1620 = vpack.c.b16 %v1250, %v1245
    %v1621 = vpack.c.b16 %v1251, %v1246
    %v1622 = vpack.c.b16 %v1252, %v1247
    %v1623 = vpack.c.b16 %v1253, %v1248
    %v1624 = vpack.c.b16 %v1259, %v1254
    %v1625 = vpack.c.b16 %v1260, %v1255
    %v1626 = vpack.c.b16 %v1261, %v1256
    %v1627 = vpack.c.b16 %v1262, %v1257
    %v1628 = vpack.c.b16 %v1263, %v1258
    %v1629 = vpack.c.b16 %v1269, %v1264
    %v1630 = vpack.c.b16 %v1270, %v1265
    %v1631 = vpack.c.b16 %v1271, %v1266
    %v1632 = vpack.c.b16 %v1272, %v1267
    %v1633 = vpack.c.b16 %v1273, %v1268
    %v1634 = vpack.c.b16 %v1279, %v1274
    %v1635 = vpack.c.b16 %v1280, %v1275
    %v1636 = vpack.c.b16 %v1281, %v1276
    %v1637 = vpack.c.b16 %v1282, %v1277
    %v1638 = vpack.c.b16 %v1283, %v1278
    %v1639 = vpack.c.b16 %v1289, %v1284
    %v1640 = vpack.c.b16 %v1290, %v1285
    %v1641 = vpack.c.b16 %v1291, %v1286
    %v1642 = vpack.c.b16 %v1292, %v1287
    %v1643 = vpack.c.b16 %v1293, %v1288
    %v1644 = vpack.c.b16 %v1299, %v1294
    %v1645 = vpack.c.b16 %v1300, %v1295
    %v1646 = vpack.c.b16 %v1301, %v1296
    %v1647 = vpack.c.b16 %v1302, %v1297
    %v1648 = vpack.c.b16 %v1303, %v1298
    %v1649 = vpack.c.b16 %v1309, %v1304
    %v1650 = vpack.c.b16 %v1310, %v1305
    %v1651 = vpack.c.b16 %v1311, %v1306
    %v1652 = vpack.c.b16 %v1312, %v1307
    %v1653 = vpack.c.b16 %v1313, %v1308
    %v1654 = vpack.c.b16 %v1319, %v1314
    %v1655 = vpack.c.b16 %v1320, %v1315
    %v1656 = vpack.c.b16 %v1321, %v1316
    %v1657 = vpack.c.b16 %v1322, %v1317
    %v1658 = vpack.c.b16 %v1323, %v1318
    %v1659 = vpack.c.b16 %v1329, %v1324
    %v1660 = vpack.c.b16 %v1330, %v1325
    %v1661 = vpack.c.b16 %v1331, %v1326
    %v1662 = vpack.c.b16 %v1332, %v1327
    %v1663 = vpack.c.b16 %v1333, %v1328
    %v1664 = vpack.c.b16 %v1339, %v1334
    %v1665 = vpack.c.b16 %v1340, %v1335
    %v1666 = vpack.c.b16 %v1341, %v1336
    %v1667 = vpack.c.b16 %v1342, %v1337
    %v1668 = vpack.c.b16 %v1343, %v1338
    %v1669 = vpack.c.b16 %v1349, %v1344
    %v1670 = vpack.c.b16 %v1350, %v1345
    %v1671 = vpack.c.b16 %v1351, %v1346
    %v1672 = vpack.c.b16 %v1352, %v1347
    %v1673 = vpack.c.b16 %v1353, %v1348
    %v1674 = vpack.c.b16 %v1359, %v1354
    %v1675 = vpack.c.b16 %v1360, %v1355
    %v1676 = vpack.c.b16 %v1361, %v1356
    %v1677 = vpack.c.b16 %v1362, %v1357
    %v1678 = vpack.c.b16 %v1363, %v1358
    %v1679 = vpack.c.b16 %v1369, %v1364
    %v1680 = vpack.c.b16 %v1370, %v1365
    %v1681 = vpack.c.b16 %v1371, %v1366
    %v1682 = vpack.c.b16 %v1372, %v1367
    %v1683 = vpack.c.b16 %v1373, %v1368
    %v1684 = vpack.c.b16 %v1379, %v1374
    %v1685 = vpack.c.b16 %v1380, %v1375
    %v1686 = vpack.c.b16 %v1381, %v1376
    %v1687 = vpack.c.b16 %v1382, %v1377
    %v1688 = vpack.c.b16 %v1383, %v1378
    %v1689 = vpack.c.b16 %v1389, %v1384
    %v1690 = vpack.c.b16 %v1390, %v1385
    %v1691 = vpack.c.b16 %v1391, %v1386
    %v1692 = vpack.c.b16 %v1392, %v1387
    %v1693 = vpack.c.b16 %v1393, %v1388
    %v1694 = vpack.c.b16 %v1399, %v1394
    %v1695 = vpack.c.b16 %v1400, %v1395
    %v1696 = vpack.c.b16 %v1401, %v1396
    %v1697 = vpack.c.b16 %v1402, %v1397
    %v1698 = vpack.c.b16 %v1403, %v1398
    %v1699 = vpack.c.b16 %v1409, %v1404
    %v1700 = vpack.c.b16 %v1410, %v1405
    %v1701 = vpack.c.b16 %v1411, %v1406
    %v1702 = vpack.c.b16 %v1412, %v1407
    %v1703 = vpack.c.b16 %v1413, %v1408
    %v1704 = vpack.c.b16 %v1419, %v1414
    %v1705 = vpack.c.b16 %v1420, %v1415
    %v1706 = vpack.c.b16 %v1421, %v1416
    %v1707 = vpack.c.b16 %v1422, %v1417
    %v1708 = vpack.c.b16 %v1423, %v1418
    %v1709 = vpack.c.b16 %v1429, %v1424
    %v1710 = vpack.c.b16 %v1430, %v1425
    %v1711 = vpack.c.b16 %v1431, %v1426
    %v1712 = vpack.c.b16 %v1432, %v1427
    %v1713 = vpack.c.b16 %v1433, %v1428
    %1994 = vmatprep.subr.bf16.mxu0 %v1435
    %1995 = vmatpush1.bf16.msra.mxu0 %v1434
    %1996 = vmatprep.subr.bf16.mxu0 %v1440
    %1997 = vmatpush1.bf16.msra.mxu0 %v1439
    %1998 = vmatprep.subr.bf16.mxu0 %v1445
    %1999 = vmatpush1.bf16.msra.mxu0 %v1444
    %2000 = vmatprep.subr.bf16.mxu0 %v1450
    %2001 = vmatpush1.bf16.msra.mxu0 %v1449
    %2002 = vmatprep.subr.bf16.mxu0 %v1455
    %2003 = vmatpush1.bf16.msra.mxu0 %v1454
    %2004 = vmatprep.subr.bf16.mxu0 %v1460
    %2005 = vmatpush1.bf16.msra.mxu0 %v1459
    %2006 = vmatprep.subr.bf16.mxu0 %v1465
    %2007 = vmatpush1.bf16.msra.mxu0 %v1464
    %2008 = vmatprep.subr.bf16.mxu0 %v1470
    %2009 = vmatpush1.bf16.msra.mxu0 %v1469
    %2010 = vmatprep.subr.bf16.mxu0 %v1475
    %2011 = vmatpush1.bf16.msra.mxu0 %v1474
    %2012 = vmatprep.subr.bf16.mxu0 %v1480
    %2013 = vmatpush1.bf16.msra.mxu0 %v1479
    %2014 = vmatprep.subr.bf16.mxu0 %v1485
    %2015 = vmatpush1.bf16.msra.mxu0 %v1484
    %2016 = vmatprep.subr.bf16.mxu0 %v1490
    %2017 = vmatpush1.bf16.msra.mxu0 %v1489
    %2018 = vmatprep.subr.bf16.mxu0 %v1495
    %2019 = vmatpush1.bf16.msra.mxu0 %v1494
    %2020 = vmatprep.subr.bf16.mxu0 %v1500
    %2021 = vmatpush1.bf16.msra.mxu0 %v1499
    %2022 = vmatprep.subr.bf16.mxu0 %v1505
    %2023 = vmatpush1.bf16.msra.mxu0 %v1504
    %2024 = vmatprep.subr.bf16.mxu0 %v1510
    %2025 = vmatpush1.bf16.msra.mxu0 %v1509
    %2026 = vmatprep.mubr.bf16.mxu0 %v525
    %2027 = vmatmul.mubr.bf16.gmra.mrb[0].mxu0 %v524
    %v2028 = vpop.f32.mrb[0].mxu0
    %v2029 = vadd.f32 %v491, %v2028
    %v2030 = vpop.f32.mrb[0].mxu0
    %v2031 = vadd.f32 %v495, %v2030
    %v2032 = vpop.f32.mrb[0].mxu0
    %v2033 = vpop.f32.mrb[0].mxu0
    %2034 = vdwg.mxu0
    %2035 = vmatprep.subr.bf16.mxu0 %v1515
    %2036 = vmatpush1.bf16.msra.mxu0 %v1514
    %2037 = vmatprep.subr.bf16.mxu0 %v1520
    %2038 = vmatpush1.bf16.msra.mxu0 %v1519
    %2039 = vmatprep.subr.bf16.mxu0 %v1525
    %2040 = vmatpush1.bf16.msra.mxu0 %v1524
    %2041 = vmatprep.subr.bf16.mxu0 %v1530
    %2042 = vmatpush1.bf16.msra.mxu0 %v1529
    %2043 = vmatprep.subr.bf16.mxu0 %v1535
    %2044 = vmatpush1.bf16.msra.mxu0 %v1534
    %2045 = vmatprep.subr.bf16.mxu0 %v1540
    %2046 = vmatpush1.bf16.msra.mxu0 %v1539
    %2047 = vmatprep.subr.bf16.mxu0 %v1545
    %2048 = vmatpush1.bf16.msra.mxu0 %v1544
    %2049 = vmatprep.subr.bf16.mxu0 %v1550
    %2050 = vmatpush1.bf16.msra.mxu0 %v1549
    %2051 = vmatprep.subr.bf16.mxu0 %v1555
    %2052 = vmatpush1.bf16.msra.mxu0 %v1554
    %2053 = vmatprep.subr.bf16.mxu0 %v1560
    %2054 = vmatpush1.bf16.msra.mxu0 %v1559
    %2055 = vmatprep.subr.bf16.mxu0 %v1565
    %2056 = vmatpush1.bf16.msra.mxu0 %v1564
    %2057 = vmatprep.subr.bf16.mxu0 %v1570
    %2058 = vmatpush1.bf16.msra.mxu0 %v1569
    %2059 = vmatprep.subr.bf16.mxu0 %v1575
    %2060 = vmatpush1.bf16.msra.mxu0 %v1574
    %2061 = vmatprep.subr.bf16.mxu0 %v1580
    %2062 = vmatpush1.bf16.msra.mxu0 %v1579
    %2063 = vmatprep.subr.bf16.mxu0 %v1585
    %2064 = vmatpush1.bf16.msra.mxu0 %v1584
    %2065 = vmatprep.subr.bf16.mxu0 %v1590
    %2066 = vmatpush1.bf16.msra.mxu0 %v1589
    %2067 = vmatprep.mubr.bf16.mxu0 %v527
    %2068 = vmatmul.mubr.bf16.gmra.mrb[0].mxu0 %v526
    %v2069 = vpop.f32.mrb[0].mxu0
    %v2070 = vadd.f32 %v2029, %v2069
    %v2071 = vpop.f32.mrb[0].mxu0
    %v2072 = vadd.f32 %v2031, %v2071
    %v2073 = vpop.f32.mrb[0].mxu0
    %v2074 = vpop.f32.mrb[0].mxu0
    %2075 = vdwg.mxu0
    %2076 = vmatprep.subr.bf16.mxu0 %v1595
    %2077 = vmatpush1.bf16.msra.mxu0 %v1594
    %2078 = vmatprep.subr.bf16.mxu0 %v1600
    %2079 = vmatpush1.bf16.msra.mxu0 %v1599
    %2080 = vmatprep.subr.bf16.mxu0 %v1605
    %2081 = vmatpush1.bf16.msra.mxu0 %v1604
    %2082 = vmatprep.subr.bf16.mxu0 %v1610
    %2083 = vmatpush1.bf16.msra.mxu0 %v1609
    %2084 = vmatprep.subr.bf16.mxu0 %v1615
    %2085 = vmatpush1.bf16.msra.mxu0 %v1614
    %2086 = vmatprep.subr.bf16.mxu0 %v1620
    %2087 = vmatpush1.bf16.msra.mxu0 %v1619
    %2088 = vmatprep.subr.bf16.mxu0 %v1625
    %2089 = vmatpush1.bf16.msra.mxu0 %v1624
    %2090 = vmatprep.subr.bf16.mxu0 %v1630
    %2091 = vmatpush1.bf16.msra.mxu0 %v1629
    %2092 = vmatprep.subr.bf16.mxu0 %v1635
    %2093 = vmatpush1.bf16.msra.mxu0 %v1634
    %2094 = vmatprep.subr.bf16.mxu0 %v1640
    %2095 = vmatpush1.bf16.msra.mxu0 %v1639
    %2096 = vmatprep.subr.bf16.mxu0 %v1645
    %2097 = vmatpush1.bf16.msra.mxu0 %v1644
    %2098 = vmatprep.subr.bf16.mxu0 %v1650
    %2099 = vmatpush1.bf16.msra.mxu0 %v1649
    %2100 = vmatprep.subr.bf16.mxu0 %v1655
    %2101 = vmatpush1.bf16.msra.mxu0 %v1654
    %2102 = vmatprep.subr.bf16.mxu0 %v1660
    %2103 = vmatpush1.bf16.msra.mxu0 %v1659
    %2104 = vmatprep.subr.bf16.mxu0 %v1665
    %2105 = vmatpush1.bf16.msra.mxu0 %v1664
    %2106 = vmatprep.subr.bf16.mxu0 %v1670
    %2107 = vmatpush1.bf16.msra.mxu0 %v1669
    %2108 = vmatprep.mubr.bf16.mxu0 %v529
    %2109 = vmatmul.mubr.bf16.gmra.mrb[0].mxu0 %v528
    %v2110 = vpop.f32.mrb[0].mxu0
    %v2111 = vadd.f32 %v2070, %v2110
    %v2112 = vpop.f32.mrb[0].mxu0
    %v2113 = vadd.f32 %v2072, %v2112
    %v2114 = vpop.f32.mrb[0].mxu0
    %v2115 = vpop.f32.mrb[0].mxu0
    %2116 = vdwg.mxu0
    %2117 = vmatprep.subr.bf16.mxu0 %v1675
    %2118 = vmatpush1.bf16.msra.mxu0 %v1674
    %2119 = vmatprep.subr.bf16.mxu0 %v1680
    %2120 = vmatpush1.bf16.msra.mxu0 %v1679
    %2121 = vmatprep.subr.bf16.mxu0 %v1685
    %2122 = vmatpush1.bf16.msra.mxu0 %v1684
    %2123 = vmatprep.subr.bf16.mxu0 %v1690
    %2124 = vmatpush1.bf16.msra.mxu0 %v1689
    %2125 = vmatprep.subr.bf16.mxu0 %v1695
    %2126 = vmatpush1.bf16.msra.mxu0 %v1694
    %2127 = vmatprep.subr.bf16.mxu0 %v1700
    %2128 = vmatpush1.bf16.msra.mxu0 %v1699
    %2129 = vmatprep.subr.bf16.mxu0 %v1705
    %2130 = vmatpush1.bf16.msra.mxu0 %v1704
    %2131 = vmatprep.subr.bf16.mxu0 %v1710
    %2132 = vmatpush1.bf16.msra.mxu0 %v1709
    %2133 = vmatprep.subr.bf16.mxu0 0
    %2134 = vmatpush1.bf16.msra.mxu0 0
    %2135 = vmatprep.subr.bf16.mxu0 0
    %2136 = vmatpush1.bf16.msra.mxu0 0
    %2137 = vmatprep.subr.bf16.mxu0 0
    %2138 = vmatpush1.bf16.msra.mxu0 0
    %2139 = vmatprep.subr.bf16.mxu0 0
    %2140 = vmatpush1.bf16.msra.mxu0 0
    %2141 = vmatprep.subr.bf16.mxu0 0
    %2142 = vmatpush1.bf16.msra.mxu0 0
    %2143 = vmatprep.subr.bf16.mxu0 0
    %2144 = vmatpush1.bf16.msra.mxu0 0
    %2145 = vmatprep.subr.bf16.mxu0 0
    %2146 = vmatpush1.bf16.msra.mxu0 0
    %2147 = vmatprep.subr.bf16.mxu0 0
    %2148 = vmatpush1.bf16.msra.mxu0 0
    %2149 = vmatprep.mubr.bf16.mxu0 0
    %2150 = vmatmul.mubr.bf16.gmra.mrb[0].mxu0 %v530
    %v2151 = vpop.f32.mrb[0].mxu0
    %v2152 = vadd.f32 %v2111, %v2151
    %v2153 = vpop.f32.mrb[0].mxu0
    %v2154 = vadd.f32 %v2113, %v2153
    %v2155 = vpop.f32.mrb[0].mxu0
    %v2156 = vpop.f32.mrb[0].mxu0
    %2157 = vdwg.mxu0
    %2158 = vmatprep.subr.bf16.mxu0 %v1437
    %2159 = vmatpush1.bf16.msra.mxu0 %v1436
    %2160 = vmatprep.subr.bf16.mxu0 %v1442
    %2161 = vmatpush1.bf16.msra.mxu0 %v1441
    %2162 = vmatprep.subr.bf16.mxu0 %v1447
    %2163 = vmatpush1.bf16.msra.mxu0 %v1446
    %2164 = vmatprep.subr.bf16.mxu0 %v1452
    %2165 = vmatpush1.bf16.msra.mxu0 %v1451
    %2166 = vmatprep.subr.bf16.mxu0 %v1457
    %2167 = vmatpush1.bf16.msra.mxu0 %v1456
    %2168 = vmatprep.subr.bf16.mxu0 %v1462
    %2169 = vmatpush1.bf16.msra.mxu0 %v1461
    %2170 = vmatprep.subr.bf16.mxu0 %v1467
    %2171 = vmatpush1.bf16.msra.mxu0 %v1466
    %2172 = vmatprep.subr.bf16.mxu0 %v1472
    %2173 = vmatpush1.bf16.msra.mxu0 %v1471
    %2174 = vmatprep.subr.bf16.mxu0 %v1477
    %2175 = vmatpush1.bf16.msra.mxu0 %v1476
    %2176 = vmatprep.subr.bf16.mxu0 %v1482
    %2177 = vmatpush1.bf16.msra.mxu0 %v1481
    %2178 = vmatprep.subr.bf16.mxu0 %v1487
    %2179 = vmatpush1.bf16.msra.mxu0 %v1486
    %2180 = vmatprep.subr.bf16.mxu0 %v1492
    %2181 = vmatpush1.bf16.msra.mxu0 %v1491
    %2182 = vmatprep.subr.bf16.mxu0 %v1497
    %2183 = vmatpush1.bf16.msra.mxu0 %v1496
    %2184 = vmatprep.subr.bf16.mxu0 %v1502
    %2185 = vmatpush1.bf16.msra.mxu0 %v1501
    %2186 = vmatprep.subr.bf16.mxu0 %v1507
    %2187 = vmatpush1.bf16.msra.mxu0 %v1506
    %2188 = vmatprep.subr.bf16.mxu0 %v1512
    %2189 = vmatpush1.bf16.msra.mxu0 %v1511
    %2190 = vmatprep.mubr.bf16.mxu0 %v525
    %2191 = vmatmul.mubr.bf16.gmra.mrb[0].mxu0 %v524
    %v2192 = vpop.f32.mrb[0].mxu0
    %v2193 = vadd.f32 %v499, %v2192
    %v2194 = vpop.f32.mrb[0].mxu0
    %v2195 = vadd.f32 %v503, %v2194
    %v2196 = vpop.f32.mrb[0].mxu0
    %v2197 = vpop.f32.mrb[0].mxu0
    %2198 = vdwg.mxu0
    %2199 = vmatprep.subr.bf16.mxu0 %v1517
    %2200 = vmatpush1.bf16.msra.mxu0 %v1516
    %2201 = vmatprep.subr.bf16.mxu0 %v1522
    %2202 = vmatpush1.bf16.msra.mxu0 %v1521
    %2203 = vmatprep.subr.bf16.mxu0 %v1527
    %2204 = vmatpush1.bf16.msra.mxu0 %v1526
    %2205 = vmatprep.subr.bf16.mxu0 %v1532
    %2206 = vmatpush1.bf16.msra.mxu0 %v1531
    %2207 = vmatprep.subr.bf16.mxu0 %v1537
    %2208 = vmatpush1.bf16.msra.mxu0 %v1536
    %2209 = vmatprep.subr.bf16.mxu0 %v1542
    %2210 = vmatpush1.bf16.msra.mxu0 %v1541
    %2211 = vmatprep.subr.bf16.mxu0 %v1547
    %2212 = vmatpush1.bf16.msra.mxu0 %v1546
    %2213 = vmatprep.subr.bf16.mxu0 %v1552
    %2214 = vmatpush1.bf16.msra.mxu0 %v1551
    %2215 = vmatprep.subr.bf16.mxu0 %v1557
    %2216 = vmatpush1.bf16.msra.mxu0 %v1556
    %2217 = vmatprep.subr.bf16.mxu0 %v1562
    %2218 = vmatpush1.bf16.msra.mxu0 %v1561
    %2219 = vmatprep.subr.bf16.mxu0 %v1567
    %2220 = vmatpush1.bf16.msra.mxu0 %v1566
    %2221 = vmatprep.subr.bf16.mxu0 %v1572
    %2222 = vmatpush1.bf16.msra.mxu0 %v1571
    %2223 = vmatprep.subr.bf16.mxu0 %v1577
    %2224 = vmatpush1.bf16.msra.mxu0 %v1576
    %2225 = vmatprep.subr.bf16.mxu0 %v1582
    %2226 = vmatpush1.bf16.msra.mxu0 %v1581
    %2227 = vmatprep.subr.bf16.mxu0 %v1587
    %2228 = vmatpush1.bf16.msra.mxu0 %v1586
    %2229 = vmatprep.subr.bf16.mxu0 %v1592
    %2230 = vmatpush1.bf16.msra.mxu0 %v1591
    %2231 = vmatprep.mubr.bf16.mxu0 %v527
    %2232 = vmatmul.mubr.bf16.gmra.mrb[0].mxu0 %v526
    %v2233 = vpop.f32.mrb[0].mxu0
    %v2234 = vadd.f32 %v2193, %v2233
    %v2235 = vpop.f32.mrb[0].mxu0
    %v2236 = vadd.f32 %v2195, %v2235
    %v2237 = vpop.f32.mrb[0].mxu0
    %v2238 = vpop.f32.mrb[0].mxu0
    %2239 = vdwg.mxu0
    %2240 = vmatprep.subr.bf16.mxu0 %v1597
    %2241 = vmatpush1.bf16.msra.mxu0 %v1596
    %2242 = vmatprep.subr.bf16.mxu0 %v1602
    %2243 = vmatpush1.bf16.msra.mxu0 %v1601
    %2244 = vmatprep.subr.bf16.mxu0 %v1607
    %2245 = vmatpush1.bf16.msra.mxu0 %v1606
    %2246 = vmatprep.subr.bf16.mxu0 %v1612
    %2247 = vmatpush1.bf16.msra.mxu0 %v1611
    %2248 = vmatprep.subr.bf16.mxu0 %v1617
    %2249 = vmatpush1.bf16.msra.mxu0 %v1616
    %2250 = vmatprep.subr.bf16.mxu0 %v1622
    %2251 = vmatpush1.bf16.msra.mxu0 %v1621
    %2252 = vmatprep.subr.bf16.mxu0 %v1627
    %2253 = vmatpush1.bf16.msra.mxu0 %v1626
    %2254 = vmatprep.subr.bf16.mxu0 %v1632
    %2255 = vmatpush1.bf16.msra.mxu0 %v1631
    %2256 = vmatprep.subr.bf16.mxu0 %v1637
    %2257 = vmatpush1.bf16.msra.mxu0 %v1636
    %2258 = vmatprep.subr.bf16.mxu0 %v1642
    %2259 = vmatpush1.bf16.msra.mxu0 %v1641
    %2260 = vmatprep.subr.bf16.mxu0 %v1647
    %2261 = vmatpush1.bf16.msra.mxu0 %v1646
    %2262 = vmatprep.subr.bf16.mxu0 %v1652
    %2263 = vmatpush1.bf16.msra.mxu0 %v1651
    %2264 = vmatprep.subr.bf16.mxu0 %v1657
    %2265 = vmatpush1.bf16.msra.mxu0 %v1656
    %2266 = vmatprep.subr.bf16.mxu0 %v1662
    %2267 = vmatpush1.bf16.msra.mxu0 %v1661
    %2268 = vmatprep.subr.bf16.mxu0 %v1667
    %2269 = vmatpush1.bf16.msra.mxu0 %v1666
    %2270 = vmatprep.subr.bf16.mxu0 %v1672
    %2271 = vmatpush1.bf16.msra.mxu0 %v1671
    %2272 = vmatprep.mubr.bf16.mxu0 %v529
    %2273 = vmatmul.mubr.bf16.gmra.mrb[0].mxu0 %v528
    %v2274 = vpop.f32.mrb[0].mxu0
    %v2275 = vadd.f32 %v2234, %v2274
    %v2276 = vpop.f32.mrb[0].mxu0
    %v2277 = vadd.f32 %v2236, %v2276
    %v2278 = vpop.f32.mrb[0].mxu0
    %v2279 = vpop.f32.mrb[0].mxu0
    %2280 = vdwg.mxu0
    %2281 = vmatprep.subr.bf16.mxu0 %v1677
    %2282 = vmatpush1.bf16.msra.mxu0 %v1676
    %2283 = vmatprep.subr.bf16.mxu0 %v1682
    %2284 = vmatpush1.bf16.msra.mxu0 %v1681
    %2285 = vmatprep.subr.bf16.mxu0 %v1687
    %2286 = vmatpush1.bf16.msra.mxu0 %v1686
    %2287 = vmatprep.subr.bf16.mxu0 %v1692
    %2288 = vmatpush1.bf16.msra.mxu0 %v1691
    %2289 = vmatprep.subr.bf16.mxu0 %v1697
    %2290 = vmatpush1.bf16.msra.mxu0 %v1696
    %2291 = vmatprep.subr.bf16.mxu0 %v1702
    %2292 = vmatpush1.bf16.msra.mxu0 %v1701
    %2293 = vmatprep.subr.bf16.mxu0 %v1707
    %2294 = vmatpush1.bf16.msra.mxu0 %v1706
    %2295 = vmatprep.subr.bf16.mxu0 %v1712
    %2296 = vmatpush1.bf16.msra.mxu0 %v1711
    %2297 = vmatprep.subr.bf16.mxu0 0
    %2298 = vmatpush1.bf16.msra.mxu0 0
    %2299 = vmatprep.subr.bf16.mxu0 0
    %2300 = vmatpush1.bf16.msra.mxu0 0
    %2301 = vmatprep.subr.bf16.mxu0 0
    %2302 = vmatpush1.bf16.msra.mxu0 0
    %2303 = vmatprep.subr.bf16.mxu0 0
    %2304 = vmatpush1.bf16.msra.mxu0 0
    %2305 = vmatprep.subr.bf16.mxu0 0
    %2306 = vmatpush1.bf16.msra.mxu0 0
    %2307 = vmatprep.subr.bf16.mxu0 0
    %2308 = vmatpush1.bf16.msra.mxu0 0
    %2309 = vmatprep.subr.bf16.mxu0 0
    %2310 = vmatpush1.bf16.msra.mxu0 0
    %2311 = vmatprep.subr.bf16.mxu0 0
    %2312 = vmatpush1.bf16.msra.mxu0 0
    %2313 = vmatprep.mubr.bf16.mxu0 0
    %2314 = vmatmul.mubr.bf16.gmra.mrb[0].mxu0 %v530
    %v2315 = vpop.f32.mrb[0].mxu0
    %v2316 = vadd.f32 %v2275, %v2315
    %v2317 = vpop.f32.mrb[0].mxu0
    %v2318 = vadd.f32 %v2277, %v2317
    %v2319 = vpop.f32.mrb[0].mxu0
    %v2320 = vpop.f32.mrb[0].mxu0
    %2321 = vdwg.mxu0
    %2322 = vmatprep.subr.bf16.mxu0 0
    %2323 = vmatpush1.bf16.msra.mxu0 %v1438
    %2324 = vmatprep.subr.bf16.mxu0 0
    %2325 = vmatpush1.bf16.msra.mxu0 %v1443
    %2326 = vmatprep.subr.bf16.mxu0 0
    %2327 = vmatpush1.bf16.msra.mxu0 %v1448
    %2328 = vmatprep.subr.bf16.mxu0 0
    %2329 = vmatpush1.bf16.msra.mxu0 %v1453
    %2330 = vmatprep.subr.bf16.mxu0 0
    %2331 = vmatpush1.bf16.msra.mxu0 %v1458
    %2332 = vmatprep.subr.bf16.mxu0 0
    %2333 = vmatpush1.bf16.msra.mxu0 %v1463
    %2334 = vmatprep.subr.bf16.mxu0 0
    %2335 = vmatpush1.bf16.msra.mxu0 %v1468
    %2336 = vmatprep.subr.bf16.mxu0 0
    %2337 = vmatpush1.bf16.msra.mxu0 %v1473
    %2338 = vmatprep.subr.bf16.mxu0 0
    %2339 = vmatpush1.bf16.msra.mxu0 %v1478
    %2340 = vmatprep.subr.bf16.mxu0 0
    %2341 = vmatpush1.bf16.msra.mxu0 %v1483
    %2342 = vmatprep.subr.bf16.mxu0 0
    %2343 = vmatpush1.bf16.msra.mxu0 %v1488
    %2344 = vmatprep.subr.bf16.mxu0 0
    %2345 = vmatpush1.bf16.msra.mxu0 %v1493
    %2346 = vmatprep.subr.bf16.mxu0 0
    %2347 = vmatpush1.bf16.msra.mxu0 %v1498
    %2348 = vmatprep.subr.bf16.mxu0 0
    %2349 = vmatpush1.bf16.msra.mxu0 %v1503
    %2350 = vmatprep.subr.bf16.mxu0 0
    %2351 = vmatpush1.bf16.msra.mxu0 %v1508
    %2352 = vmatprep.subr.bf16.mxu0 0
    %2353 = vmatpush1.bf16.msra.mxu0 %v1513
    %2354 = vmatprep.mubr.bf16.mxu0 %v525
    %2355 = vmatmul.mubr.bf16.gmra.mrb[0].mxu0 %v524
    %v2356 = vpop.f32.mrb[0].mxu0
    %v2357 = vadd.f32 %v507, %v2356
    %v2358 = vpop.f32.mrb[0].mxu0
    %v2359 = vpop.f32.mrb[0].mxu0
    %v2360 = vpop.f32.mrb[0].mxu0
    %2361 = vdwg.mxu0
    %2362 = vmatprep.subr.bf16.mxu0 0
    %2363 = vmatpush1.bf16.msra.mxu0 %v1518
    %2364 = vmatprep.subr.bf16.mxu0 0
    %2365 = vmatpush1.bf16.msra.mxu0 %v1523
    %2366 = vmatprep.subr.bf16.mxu0 0
    %2367 = vmatpush1.bf16.msra.mxu0 %v1528
    %2368 = vmatprep.subr.bf16.mxu0 0
    %2369 = vmatpush1.bf16.msra.mxu0 %v1533
    %2370 = vmatprep.subr.bf16.mxu0 0
    %2371 = vmatpush1.bf16.msra.mxu0 %v1538
    %2372 = vmatprep.subr.bf16.mxu0 0
    %2373 = vmatpush1.bf16.msra.mxu0 %v1543
    %2374 = vmatprep.subr.bf16.mxu0 0
    %2375 = vmatpush1.bf16.msra.mxu0 %v1548
    %2376 = vmatprep.subr.bf16.mxu0 0
    %2377 = vmatpush1.bf16.msra.mxu0 %v1553
    %2378 = vmatprep.subr.bf16.mxu0 0
    %2379 = vmatpush1.bf16.msra.mxu0 %v1558
    %2380 = vmatprep.subr.bf16.mxu0 0
    %2381 = vmatpush1.bf16.msra.mxu0 %v1563
    %2382 = vmatprep.subr.bf16.mxu0 0
    %2383 = vmatpush1.bf16.msra.mxu0 %v1568
    %2384 = vmatprep.subr.bf16.mxu0 0
    %2385 = vmatpush1.bf16.msra.mxu0 %v1573
    %2386 = vmatprep.subr.bf16.mxu0 0
    %2387 = vmatpush1.bf16.msra.mxu0 %v1578
    %2388 = vmatprep.subr.bf16.mxu0 0
    %2389 = vmatpush1.bf16.msra.mxu0 %v1583
    %2390 = vmatprep.subr.bf16.mxu0 0
    %2391 = vmatpush1.bf16.msra.mxu0 %v1588
    %2392 = vmatprep.subr.bf16.mxu0 0
    %2393 = vmatpush1.bf16.msra.mxu0 %v1593
    %2394 = vmatprep.mubr.bf16.mxu0 %v527
    %2395 = vmatmul.mubr.bf16.gmra.mrb[0].mxu0 %v526
    %v2396 = vpop.f32.mrb[0].mxu0
    %v2397 = vadd.f32 %v2357, %v2396
    %v2398 = vpop.f32.mrb[0].mxu0
    %v2399 = vpop.f32.mrb[0].mxu0
    %v2400 = vpop.f32.mrb[0].mxu0
    %2401 = vdwg.mxu0
    %2402 = vmatprep.subr.bf16.mxu0 0
    %2403 = vmatpush1.bf16.msra.mxu0 %v1598
    %2404 = vmatprep.subr.bf16.mxu0 0
    %2405 = vmatpush1.bf16.msra.mxu0 %v1603
    %2406 = vmatprep.subr.bf16.mxu0 0
    %2407 = vmatpush1.bf16.msra.mxu0 %v1608
    %2408 = vmatprep.subr.bf16.mxu0 0
    %2409 = vmatpush1.bf16.msra.mxu0 %v1613
    %2410 = vmatprep.subr.bf16.mxu0 0
    %2411 = vmatpush1.bf16.msra.mxu0 %v1618
    %2412 = vmatprep.subr.bf16.mxu0 0
    %2413 = vmatpush1.bf16.msra.mxu0 %v1623
    %2414 = vmatprep.subr.bf16.mxu0 0
    %2415 = vmatpush1.bf16.msra.mxu0 %v1628
    %2416 = vmatprep.subr.bf16.mxu0 0
    %2417 = vmatpush1.bf16.msra.mxu0 %v1633
    %2418 = vmatprep.subr.bf16.mxu0 0
    %2419 = vmatpush1.bf16.msra.mxu0 %v1638
    %2420 = vmatprep.subr.bf16.mxu0 0
    %2421 = vmatpush1.bf16.msra.mxu0 %v1643
    %2422 = vmatprep.subr.bf16.mxu0 0
    %2423 = vmatpush1.bf16.msra.mxu0 %v1648
    %2424 = vmatprep.subr.bf16.mxu0 0
    %2425 = vmatpush1.bf16.msra.mxu0 %v1653
    %2426 = vmatprep.subr.bf16.mxu0 0
    %2427 = vmatpush1.bf16.msra.mxu0 %v1658
    %2428 = vmatprep.subr.bf16.mxu0 0
    %2429 = vmatpush1.bf16.msra.mxu0 %v1663
    %2430 = vmatprep.subr.bf16.mxu0 0
    %2431 = vmatpush1.bf16.msra.mxu0 %v1668
    %2432 = vmatprep.subr.bf16.mxu0 0
    %2433 = vmatpush1.bf16.msra.mxu0 %v1673
    %2434 = vmatprep.mubr.bf16.mxu0 %v529
    %2435 = vmatmul.mubr.bf16.gmra.mrb[0].mxu0 %v528
    %v2436 = vpop.f32.mrb[0].mxu0
    %v2437 = vadd.f32 %v2397, %v2436
    %v2438 = vpop.f32.mrb[0].mxu0
    %v2439 = vpop.f32.mrb[0].mxu0
    %v2440 = vpop.f32.mrb[0].mxu0
    %2441 = vdwg.mxu0
    %2442 = vmatprep.subr.bf16.mxu0 0
    %2443 = vmatpush1.bf16.msra.mxu0 %v1678
    %2444 = vmatprep.subr.bf16.mxu0 0
    %2445 = vmatpush1.bf16.msra.mxu0 %v1683
    %2446 = vmatprep.subr.bf16.mxu0 0
    %2447 = vmatpush1.bf16.msra.mxu0 %v1688
    %2448 = vmatprep.subr.bf16.mxu0 0
    %2449 = vmatpush1.bf16.msra.mxu0 %v1693
    %2450 = vmatprep.subr.bf16.mxu0 0
    %2451 = vmatpush1.bf16.msra.mxu0 %v1698
    %2452 = vmatprep.subr.bf16.mxu0 0
    %2453 = vmatpush1.bf16.msra.mxu0 %v1703
    %2454 = vmatprep.subr.bf16.mxu0 0
    %2455 = vmatpush1.bf16.msra.mxu0 %v1708
    %2456 = vmatprep.subr.bf16.mxu0 0
    %2457 = vmatpush1.bf16.msra.mxu0 %v1713
    %2458 = vmatprep.subr.bf16.mxu0 0
    %2459 = vmatpush1.bf16.msra.mxu0 0
    %2460 = vmatprep.subr.bf16.mxu0 0
    %2461 = vmatpush1.bf16.msra.mxu0 0
    %2462 = vmatprep.subr.bf16.mxu0 0
    %2463 = vmatpush1.bf16.msra.mxu0 0
    %2464 = vmatprep.subr.bf16.mxu0 0
    %2465 = vmatpush1.bf16.msra.mxu0 0
    %2466 = vmatprep.subr.bf16.mxu0 0
    %2467 = vmatpush1.bf16.msra.mxu0 0
    %2468 = vmatprep.subr.bf16.mxu0 0
    %2469 = vmatpush1.bf16.msra.mxu0 0
    %2470 = vmatprep.subr.bf16.mxu0 0
    %2471 = vmatpush1.bf16.msra.mxu0 0
    %2472 = vmatprep.subr.bf16.mxu0 0
    %2473 = vmatpush1.bf16.msra.mxu0 0
    %2474 = vmatprep.mubr.bf16.mxu0 0
    %2475 = vmatmul.mubr.bf16.gmra.mrb[0].mxu0 %v530
    %v2476 = vpop.f32.mrb[0].mxu0
    %v2477 = vadd.f32 %v2437, %v2476
    %v2478 = vpop.f32.mrb[0].mxu0
    %v2479 = vpop.f32.mrb[0].mxu0
    %v2480 = vpop.f32.mrb[0].mxu0
    %2481 = vdwg.mxu0
    %v2482 = vmax.f32 %v2152, 0.0
    %v2483 = vmax.f32 %v2154, 0.0
    %v2484 = vmax.f32 %v2316, 0.0
    %v2485 = vmax.f32 %v2318, 0.0
    %v2486 = vmax.f32 %v2477, 0.0
    %v2487 = vpack.c.bf16 %v2482, %v2482
    %v2488 = vpack.c.bf16 %v2483, %v2483
    %v2489 = vpack.c.bf16 %v2484, %v2484
    %v2490 = vpack.c.bf16 %v2485, %v2485
    %v2491 = vpack.c.bf16 %v2486, %v2486
    %v2492 = vld [vmem:[#allocation8] sm:$0xff]
    %v2493 = vld [vmem:[#allocation8 + $0x8] sm:$0xff]
    %v2494 = vld [vmem:[#allocation8 + $0x10] sm:$0xff]
    %v2495 = vld [vmem:[#allocation8 + $0x18] sm:$0xff]
    %v2496 = vld [vmem:[#allocation8 + $0x20] sm:$0xff]
    %v2497 = vld [vmem:[#allocation8 + $0x28] sm:$0xff]
    %v2498 = vld [vmem:[#allocation8 + $0x30] sm:$0xff]
    %v2499 = vld [vmem:[#allocation8 + $0x38] sm:$0xff]
    %v2500 = vld [vmem:[#allocation8 + $0x40] sm:$0xff]
    %v2501 = vld [vmem:[#allocation8 + $0x48] sm:$0xff]
    %v2502 = vld [vmem:[#allocation8 + $0x50] sm:$0xff]
    %v2503 = vld [vmem:[#allocation8 + $0x58] sm:$0xff]
    %v2504 = vld [vmem:[#allocation8 + $0x60] sm:$0xff]
    %v2505 = vld [vmem:[#allocation8 + $0x68] sm:$0xff]
    %v2506 = vld [vmem:[#allocation8 + $0x70] sm:$0xff]
    %v2507 = vld [vmem:[#allocation8 + $0x78] sm:$0xff]
    %v2508 = vld [vmem:[#allocation8 + $0x80] sm:$0xff]
    %v2509 = vld [vmem:[#allocation8 + $0x88] sm:$0xff]
    %v2510 = vld [vmem:[#allocation8 + $0x90] sm:$0xff]
    %v2511 = vld [vmem:[#allocation8 + $0x98] sm:$0xff]
    %v2512 = vld [vmem:[#allocation8 + $0xa0] sm:$0xff]
    %v2513 = vld [vmem:[#allocation8 + $0xa8] sm:$0xff]
    %v2514 = vld [vmem:[#allocation8 + $0xb0] sm:$0xff]
    %v2515 = vld [vmem:[#allocation8 + $0xb8] sm:$0xff]
    %v2516 = vld [vmem:[#allocation8 + $0xc0] sm:$0xff]
    %v2517 = vld [vmem:[#allocation8 + $0xc8] sm:$0xff]
    %v2518 = vld [vmem:[#allocation8 + $0xd0] sm:$0xff]
    %v2519 = vld [vmem:[#allocation8 + $0xd8] sm:$0xff]
    %v2520 = vld [vmem:[#allocation8 + $0xe0] sm:$0xff]
    %v2521 = vld [vmem:[#allocation8 + $0xe8] sm:$0xff]
    %v2522 = vld [vmem:[#allocation8 + $0xf0] sm:$0xff]
    %v2523 = vld [vmem:[#allocation8 + $0xf8] sm:$0xff]
    %v2524 = vld [vmem:[#allocation8 + $0x100] sm:$0xff]
    %v2525 = vld [vmem:[#allocation8 + $0x108] sm:$0xff]
    %v2526 = vld [vmem:[#allocation8 + $0x110] sm:$0xff]
    %v2527 = vld [vmem:[#allocation8 + $0x118] sm:$0xff]
    %v2528 = vld [vmem:[#allocation8 + $0x120] sm:$0xff]
    %v2529 = vld [vmem:[#allocation8 + $0x128] sm:$0xff]
    %v2530 = vld [vmem:[#allocation8 + $0x130] sm:$0xff]
    %v2531 = vld [vmem:[#allocation8 + $0x138] sm:$0xff]
    %v2532 = vld [vmem:[#allocation8 + $0x140] sm:$0xff]
    %v2533 = vld [vmem:[#allocation8 + $0x148] sm:$0xff]
    %v2534 = vld [vmem:[#allocation8 + $0x150] sm:$0xff]
    %v2535 = vld [vmem:[#allocation8 + $0x158] sm:$0xff]
    %v2536 = vld [vmem:[#allocation8 + $0x160] sm:$0xff]
    %v2537 = vld [vmem:[#allocation8 + $0x168] sm:$0xff]
    %v2538 = vld [vmem:[#allocation8 + $0x170] sm:$0xff]
    %v2539 = vld [vmem:[#allocation8 + $0x178] sm:$0xff]
    %v2540 = vld [vmem:[#allocation8 + $0x180] sm:$0xff]
    %v2541 = vld [vmem:[#allocation8 + $0x188] sm:$0xff]
    %v2542 = vld [vmem:[#allocation8 + $0x190] sm:$0xff]
    %v2543 = vld [vmem:[#allocation8 + $0x198] sm:$0xff]
    %v2544 = vld [vmem:[#allocation8 + $0x1a0] sm:$0xff]
    %v2545 = vld [vmem:[#allocation8 + $0x1a8] sm:$0xff]
    %v2546 = vld [vmem:[#allocation8 + $0x1b0] sm:$0xff]
    %v2547 = vld [vmem:[#allocation8 + $0x1b8] sm:$0xff]
    %v2548 = vld [vmem:[#allocation8 + $0x1c0] sm:$0xff]
    %v2549 = vld [vmem:[#allocation8 + $0x1c8] sm:$0xff]
    %v2550 = vld [vmem:[#allocation8 + $0x1d0] sm:$0xff]
    %v2551 = vld [vmem:[#allocation8 + $0x1d8] sm:$0xff]
    %v2552 = vld [vmem:[#allocation8 + $0x1e0] sm:$0xff]
    %v2553 = vld [vmem:[#allocation8 + $0x1e8] sm:$0xff]
    %v2554 = vld [vmem:[#allocation8 + $0x1f0] sm:$0xff]
    %v2555 = vld [vmem:[#allocation8 + $0x1f8] sm:$0xff]
    %v2556 = vld [vmem:[#allocation8 + $0x200] sm:$0xff]
    %v2557 = vld [vmem:[#allocation8 + $0x208] sm:$0xff]
    %v2558 = vld [vmem:[#allocation8 + $0x210] sm:$0xff]
    %v2559 = vld [vmem:[#allocation8 + $0x218] sm:$0xff]
    %v2560 = vld [vmem:[#allocation8 + $0x220] sm:$0xff]
    %v2561 = vld [vmem:[#allocation8 + $0x228] sm:$0xff]
    %v2562 = vld [vmem:[#allocation8 + $0x230] sm:$0xff]
    %v2563 = vld [vmem:[#allocation8 + $0x238] sm:$0xff]
    %v2564 = vld [vmem:[#allocation8 + $0x240] sm:$0xff]
    %v2565 = vld [vmem:[#allocation8 + $0x248] sm:$0xff]
    %v2566 = vld [vmem:[#allocation8 + $0x250] sm:$0xff]
    %v2567 = vld [vmem:[#allocation8 + $0x258] sm:$0xff]
    %v2568 = vld [vmem:[#allocation8 + $0x260] sm:$0xff]
    %v2569 = vld [vmem:[#allocation8 + $0x268] sm:$0xff]
    %v2570 = vld [vmem:[#allocation8 + $0x270] sm:$0xff]
    %v2571 = vld [vmem:[#allocation8 + $0x278] sm:$0xff]
    %v2572 = vld [vmem:[#allocation8 + $0x280] sm:$0xff]
    %v2573 = vld [vmem:[#allocation8 + $0x288] sm:$0xff]
    %v2574 = vld [vmem:[#allocation8 + $0x290] sm:$0xff]
    %v2575 = vld [vmem:[#allocation8 + $0x298] sm:$0xff]
    %v2576 = vld [vmem:[#allocation8 + $0x2a0] sm:$0xff]
    %v2577 = vld [vmem:[#allocation8 + $0x2a8] sm:$0xff]
    %v2578 = vld [vmem:[#allocation8 + $0x2b0] sm:$0xff]
    %v2579 = vld [vmem:[#allocation8 + $0x2b8] sm:$0xff]
    %v2580 = vld [vmem:[#allocation8 + $0x2c0] sm:$0xff]
    %v2581 = vld [vmem:[#allocation8 + $0x2c8] sm:$0xff]
    %v2582 = vld [vmem:[#allocation8 + $0x2d0] sm:$0xff]
    %v2583 = vld [vmem:[#allocation8 + $0x2d8] sm:$0xff]
    %v2584 = vld [vmem:[#allocation8 + $0x2e0] sm:$0xff]
    %v2585 = vld [vmem:[#allocation8 + $0x2e8] sm:$0xff]
    %v2586 = vld [vmem:[#allocation8 + $0x2f0] sm:$0xff]
    %v2587 = vld [vmem:[#allocation8 + $0x2f8] sm:$0xff]
    %v2588 = vld [vmem:[#allocation8 + $0x300] sm:$0xff]
    %v2589 = vld [vmem:[#allocation8 + $0x308] sm:$0xff]
    %v2590 = vld [vmem:[#allocation8 + $0x310] sm:$0xff]
    %v2591 = vld [vmem:[#allocation8 + $0x318] sm:$0xff]
    %v2592 = vld [vmem:[#allocation8 + $0x320] sm:$0xff]
    %v2593 = vld [vmem:[#allocation8 + $0x328] sm:$0xff]
    %v2594 = vld [vmem:[#allocation8 + $0x330] sm:$0xff]
    %v2595 = vld [vmem:[#allocation8 + $0x338] sm:$0xff]
    %v2596 = vld [vmem:[#allocation8 + $0x340] sm:$0xff]
    %v2597 = vld [vmem:[#allocation8 + $0x348] sm:$0xff]
    %v2598 = vld [vmem:[#allocation8 + $0x350] sm:$0xff]
    %v2599 = vld [vmem:[#allocation8 + $0x358] sm:$0xff]
    %v2600 = vld [vmem:[#allocation8 + $0x360] sm:$0xff]
    %v2601 = vld [vmem:[#allocation8 + $0x368] sm:$0xff]
    %v2602 = vld [vmem:[#allocation8 + $0x370] sm:$0xff]
    %v2603 = vld [vmem:[#allocation8 + $0x378] sm:$0xff]
    %v2604 = vld [vmem:[#allocation8 + $0x380] sm:$0xff]
    %v2605 = vld [vmem:[#allocation8 + $0x388] sm:$0xff]
    %v2606 = vld [vmem:[#allocation8 + $0x390] sm:$0xff]
    %v2607 = vld [vmem:[#allocation8 + $0x398] sm:$0xff]
    %v2608 = vld [vmem:[#allocation8 + $0x3a0] sm:$0xff]
    %v2609 = vld [vmem:[#allocation8 + $0x3a8] sm:$0xff]
    %v2610 = vld [vmem:[#allocation8 + $0x3b0] sm:$0xff]
    %v2611 = vld [vmem:[#allocation8 + $0x3b8] sm:$0xff]
    %v2612 = vld [vmem:[#allocation8 + $0x3c0] sm:$0xff]
    %v2613 = vld [vmem:[#allocation8 + $0x3c8] sm:$0xff]
    %v2614 = vld [vmem:[#allocation8 + $0x3d0] sm:$0xff]
    %v2615 = vld [vmem:[#allocation8 + $0x3d8] sm:$0xff]
    %v2616 = vld [vmem:[#allocation8 + $0x3e0] sm:$0xff]
    %v2617 = vld [vmem:[#allocation8 + $0x3e8] sm:$0xff]
    %v2618 = vld [vmem:[#allocation8 + $0x3f0] sm:$0xff]
    %v2619 = vld [vmem:[#allocation8 + $0x3f8] sm:$0xff]
    %v2620 = vld [vmem:[#allocation8 + $0x400] sm:$0xff]
    %v2621 = vld [vmem:[#allocation8 + $0x408] sm:$0xff]
    %v2622 = vld [vmem:[#allocation8 + $0x410] sm:$0xff]
    %v2623 = vld [vmem:[#allocation8 + $0x418] sm:$0xff]
    %v2624 = vld [vmem:[#allocation8 + $0x420] sm:$0xff]
    %v2625 = vld [vmem:[#allocation8 + $0x428] sm:$0xff]
    %v2626 = vld [vmem:[#allocation8 + $0x430] sm:$0xff]
    %v2627 = vld [vmem:[#allocation8 + $0x438] sm:$0xff]
    %v2628 = vld [vmem:[#allocation8 + $0x440] sm:$0xff]
    %v2629 = vld [vmem:[#allocation8 + $0x448] sm:$0xff]
    %v2630 = vld [vmem:[#allocation8 + $0x450] sm:$0xff]
    %v2631 = vld [vmem:[#allocation8 + $0x458] sm:$0xff]
    %v2632 = vld [vmem:[#allocation8 + $0x460] sm:$0xff]
    %v2633 = vld [vmem:[#allocation8 + $0x468] sm:$0xff]
    %v2634 = vld [vmem:[#allocation8 + $0x470] sm:$0xff]
    %v2635 = vld [vmem:[#allocation8 + $0x478] sm:$0xff]
    %v2636 = vld [vmem:[#allocation8 + $0x480] sm:$0xff]
    %v2637 = vld [vmem:[#allocation8 + $0x488] sm:$0xff]
    %v2638 = vld [vmem:[#allocation8 + $0x490] sm:$0xff]
    %v2639 = vld [vmem:[#allocation8 + $0x498] sm:$0xff]
    %v2640 = vld [vmem:[#allocation8 + $0x4a0] sm:$0xff]
    %v2641 = vld [vmem:[#allocation8 + $0x4a8] sm:$0xff]
    %v2642 = vld [vmem:[#allocation8 + $0x4b0] sm:$0xff]
    %v2643 = vld [vmem:[#allocation8 + $0x4b8] sm:$0xff]
    %v2644 = vld [vmem:[#allocation8 + $0x4c0] sm:$0xff]
    %v2645 = vld [vmem:[#allocation8 + $0x4c8] sm:$0xff]
    %v2646 = vld [vmem:[#allocation8 + $0x4d0] sm:$0xff]
    %v2647 = vld [vmem:[#allocation8 + $0x4d8] sm:$0xff]
    %v2648 = vld [vmem:[#allocation8 + $0x4e0] sm:$0xff]
    %v2649 = vld [vmem:[#allocation8 + $0x4e8] sm:$0xff]
    %v2650 = vld [vmem:[#allocation8 + $0x4f0] sm:$0xff]
    %v2651 = vld [vmem:[#allocation8 + $0x4f8] sm:$0xff]
    %v2652 = vld [vmem:[#allocation10] sm:$0xf]
    %v2654 = vlaneseq
    %v2655 = vshrl.u32 %v2654, 7
    %v2656 = vsub.s32 0, %v2655
    %v2657 = vrot.slane %v2652, %v2656
    %v2658 = vlaneseq
    %v2659 = vshrl.u32 %v2658, 7
    %v2660 = vsub.s32 1, %v2659
    %v2661 = vrot.slane %v2652, %v2660
    %v2662 = vlaneseq
    %v2663 = vshrl.u32 %v2662, 7
    %v2664 = vsub.s32 2, %v2663
    %v2665 = vrot.slane %v2652, %v2664
    %v2666 = vlaneseq
    %v2667 = vshrl.u32 %v2666, 7
    %v2668 = vsub.s32 3, %v2667
    %v2669 = vrot.slane %v2652, %v2668
    %v2834 = vunpack.c.l.b16 %v2492
    %v2835 = vunpack.c.h.b16 %v2492
    %v2836 = vunpack.c.l.b16 %v2493
    %v2837 = vunpack.c.h.b16 %v2493
    %v2838 = vunpack.c.l.b16 %v2494
    %v2839 = vunpack.c.h.b16 %v2494
    %v2840 = vunpack.c.l.b16 %v2495
    %v2841 = vunpack.c.h.b16 %v2495
    %v2842 = vunpack.c.l.b16 %v2496
    %v2843 = vunpack.c.h.b16 %v2496
    %v2844 = vunpack.c.l.b16 %v2497
    %v2845 = vunpack.c.h.b16 %v2497
    %v2846 = vunpack.c.l.b16 %v2498
    %v2847 = vunpack.c.h.b16 %v2498
    %v2848 = vunpack.c.l.b16 %v2499
    %v2849 = vunpack.c.h.b16 %v2499
    %v2850 = vunpack.c.l.b16 %v2500
    %v2851 = vunpack.c.h.b16 %v2500
    %v2852 = vunpack.c.l.b16 %v2501
    %v2853 = vunpack.c.h.b16 %v2501
    %v2854 = vunpack.c.l.b16 %v2502
    %v2855 = vunpack.c.h.b16 %v2502
    %v2856 = vunpack.c.l.b16 %v2503
    %v2857 = vunpack.c.h.b16 %v2503
    %v2858 = vunpack.c.l.b16 %v2504
    %v2859 = vunpack.c.h.b16 %v2504
    %v2860 = vunpack.c.l.b16 %v2505
    %v2861 = vunpack.c.h.b16 %v2505
    %v2862 = vunpack.c.l.b16 %v2506
    %v2863 = vunpack.c.h.b16 %v2506
    %v2864 = vunpack.c.l.b16 %v2507
    %v2865 = vunpack.c.h.b16 %v2507
    %v2866 = vunpack.c.l.b16 %v2508
    %v2867 = vunpack.c.h.b16 %v2508
    %v2868 = vunpack.c.l.b16 %v2509
    %v2869 = vunpack.c.h.b16 %v2509
    %v2870 = vunpack.c.l.b16 %v2510
    %v2871 = vunpack.c.h.b16 %v2510
    %v2872 = vunpack.c.l.b16 %v2511
    %v2873 = vunpack.c.h.b16 %v2511
    %v2874 = vunpack.c.l.b16 %v2512
    %v2875 = vunpack.c.h.b16 %v2512
    %v2876 = vunpack.c.l.b16 %v2513
    %v2877 = vunpack.c.h.b16 %v2513
    %v2878 = vunpack.c.l.b16 %v2514
    %v2879 = vunpack.c.h.b16 %v2514
    %v2880 = vunpack.c.l.b16 %v2515
    %v2881 = vunpack.c.h.b16 %v2515
    %v2882 = vunpack.c.l.b16 %v2516
    %v2883 = vunpack.c.h.b16 %v2516
    %v2884 = vunpack.c.l.b16 %v2517
    %v2885 = vunpack.c.h.b16 %v2517
    %v2886 = vunpack.c.l.b16 %v2518
    %v2887 = vunpack.c.h.b16 %v2518
    %v2888 = vunpack.c.l.b16 %v2519
    %v2889 = vunpack.c.h.b16 %v2519
    %v2890 = vunpack.c.l.b16 %v2520
    %v2891 = vunpack.c.h.b16 %v2520
    %v2892 = vunpack.c.l.b16 %v2521
    %v2893 = vunpack.c.h.b16 %v2521
    %v2894 = vunpack.c.l.b16 %v2522
    %v2895 = vunpack.c.h.b16 %v2522
    %v2896 = vunpack.c.l.b16 %v2523
    %v2897 = vunpack.c.h.b16 %v2523
    %v2898 = vunpack.c.l.b16 %v2524
    %v2899 = vunpack.c.h.b16 %v2524
    %v2900 = vunpack.c.l.b16 %v2525
    %v2901 = vunpack.c.h.b16 %v2525
    %v2902 = vunpack.c.l.b16 %v2526
    %v2903 = vunpack.c.h.b16 %v2526
    %v2904 = vunpack.c.l.b16 %v2527
    %v2905 = vunpack.c.h.b16 %v2527
    %v2906 = vunpack.c.l.b16 %v2528
    %v2907 = vunpack.c.h.b16 %v2528
    %v2908 = vunpack.c.l.b16 %v2529
    %v2909 = vunpack.c.h.b16 %v2529
    %v2910 = vunpack.c.l.b16 %v2530
    %v2911 = vunpack.c.h.b16 %v2530
    %v2912 = vunpack.c.l.b16 %v2531
    %v2913 = vunpack.c.h.b16 %v2531
    %v2914 = vunpack.c.l.b16 %v2532
    %v2915 = vunpack.c.h.b16 %v2532
    %v2916 = vunpack.c.l.b16 %v2533
    %v2917 = vunpack.c.h.b16 %v2533
    %v2918 = vunpack.c.l.b16 %v2534
    %v2919 = vunpack.c.h.b16 %v2534
    %v2920 = vunpack.c.l.b16 %v2535
    %v2921 = vunpack.c.h.b16 %v2535
    %v2922 = vunpack.c.l.b16 %v2536
    %v2923 = vunpack.c.h.b16 %v2536
    %v2924 = vunpack.c.l.b16 %v2537
    %v2925 = vunpack.c.h.b16 %v2537
    %v2926 = vunpack.c.l.b16 %v2538
    %v2927 = vunpack.c.h.b16 %v2538
    %v2928 = vunpack.c.l.b16 %v2539
    %v2929 = vunpack.c.h.b16 %v2539
    %v2930 = vunpack.c.l.b16 %v2540
    %v2931 = vunpack.c.h.b16 %v2540
    %v2932 = vunpack.c.l.b16 %v2541
    %v2933 = vunpack.c.h.b16 %v2541
    %v2934 = vunpack.c.l.b16 %v2542
    %v2935 = vunpack.c.h.b16 %v2542
    %v2936 = vunpack.c.l.b16 %v2543
    %v2937 = vunpack.c.h.b16 %v2543
    %v2938 = vunpack.c.l.b16 %v2544
    %v2939 = vunpack.c.h.b16 %v2544
    %v2940 = vunpack.c.l.b16 %v2545
    %v2941 = vunpack.c.h.b16 %v2545
    %v2942 = vunpack.c.l.b16 %v2546
    %v2943 = vunpack.c.h.b16 %v2546
    %v2944 = vunpack.c.l.b16 %v2547
    %v2945 = vunpack.c.h.b16 %v2547
    %v2946 = vunpack.c.l.b16 %v2548
    %v2947 = vunpack.c.h.b16 %v2548
    %v2948 = vunpack.c.l.b16 %v2549
    %v2949 = vunpack.c.h.b16 %v2549
    %v2950 = vunpack.c.l.b16 %v2550
    %v2951 = vunpack.c.h.b16 %v2550
    %v2952 = vunpack.c.l.b16 %v2551
    %v2953 = vunpack.c.h.b16 %v2551
    %v2954 = vunpack.c.l.b16 %v2552
    %v2955 = vunpack.c.h.b16 %v2552
    %v2956 = vunpack.c.l.b16 %v2553
    %v2957 = vunpack.c.h.b16 %v2553
    %v2958 = vunpack.c.l.b16 %v2554
    %v2959 = vunpack.c.h.b16 %v2554
    %v2960 = vunpack.c.l.b16 %v2555
    %v2961 = vunpack.c.h.b16 %v2555
    %v2962 = vunpack.c.l.b16 %v2556
    %v2963 = vunpack.c.h.b16 %v2556
    %v2964 = vunpack.c.l.b16 %v2557
    %v2965 = vunpack.c.h.b16 %v2557
    %v2966 = vunpack.c.l.b16 %v2558
    %v2967 = vunpack.c.h.b16 %v2558
    %v2968 = vunpack.c.l.b16 %v2559
    %v2969 = vunpack.c.h.b16 %v2559
    %v2970 = vunpack.c.l.b16 %v2560
    %v2971 = vunpack.c.h.b16 %v2560
    %v2972 = vunpack.c.l.b16 %v2561
    %v2973 = vunpack.c.h.b16 %v2561
    %v2974 = vunpack.c.l.b16 %v2562
    %v2975 = vunpack.c.h.b16 %v2562
    %v2976 = vunpack.c.l.b16 %v2563
    %v2977 = vunpack.c.h.b16 %v2563
    %v2978 = vunpack.c.l.b16 %v2564
    %v2979 = vunpack.c.h.b16 %v2564
    %v2980 = vunpack.c.l.b16 %v2565
    %v2981 = vunpack.c.h.b16 %v2565
    %v2982 = vunpack.c.l.b16 %v2566
    %v2983 = vunpack.c.h.b16 %v2566
    %v2984 = vunpack.c.l.b16 %v2567
    %v2985 = vunpack.c.h.b16 %v2567
    %v2986 = vunpack.c.l.b16 %v2568
    %v2987 = vunpack.c.h.b16 %v2568
    %v2988 = vunpack.c.l.b16 %v2569
    %v2989 = vunpack.c.h.b16 %v2569
    %v2990 = vunpack.c.l.b16 %v2570
    %v2991 = vunpack.c.h.b16 %v2570
    %v2992 = vunpack.c.l.b16 %v2571
    %v2993 = vunpack.c.h.b16 %v2571
    %v2994 = vunpack.c.l.b16 %v2572
    %v2995 = vunpack.c.h.b16 %v2572
    %v2996 = vunpack.c.l.b16 %v2573
    %v2997 = vunpack.c.h.b16 %v2573
    %v2998 = vunpack.c.l.b16 %v2574
    %v2999 = vunpack.c.h.b16 %v2574
    %v3000 = vunpack.c.l.b16 %v2575
    %v3001 = vunpack.c.h.b16 %v2575
    %v3002 = vunpack.c.l.b16 %v2576
    %v3003 = vunpack.c.h.b16 %v2576
    %v3004 = vunpack.c.l.b16 %v2577
    %v3005 = vunpack.c.h.b16 %v2577
    %v3006 = vunpack.c.l.b16 %v2578
    %v3007 = vunpack.c.h.b16 %v2578
    %v3008 = vunpack.c.l.b16 %v2579
    %v3009 = vunpack.c.h.b16 %v2579
    %v3010 = vunpack.c.l.b16 %v2580
    %v3011 = vunpack.c.h.b16 %v2580
    %v3012 = vunpack.c.l.b16 %v2581
    %v3013 = vunpack.c.h.b16 %v2581
    %v3014 = vunpack.c.l.b16 %v2582
    %v3015 = vunpack.c.h.b16 %v2582
    %v3016 = vunpack.c.l.b16 %v2583
    %v3017 = vunpack.c.h.b16 %v2583
    %v3018 = vunpack.c.l.b16 %v2584
    %v3019 = vunpack.c.h.b16 %v2584
    %v3020 = vunpack.c.l.b16 %v2585
    %v3021 = vunpack.c.h.b16 %v2585
    %v3022 = vunpack.c.l.b16 %v2586
    %v3023 = vunpack.c.h.b16 %v2586
    %v3024 = vunpack.c.l.b16 %v2587
    %v3025 = vunpack.c.h.b16 %v2587
    %v3026 = vunpack.c.l.b16 %v2588
    %v3027 = vunpack.c.h.b16 %v2588
    %v3028 = vunpack.c.l.b16 %v2589
    %v3029 = vunpack.c.h.b16 %v2589
    %v3030 = vunpack.c.l.b16 %v2590
    %v3031 = vunpack.c.h.b16 %v2590
    %v3032 = vunpack.c.l.b16 %v2591
    %v3033 = vunpack.c.h.b16 %v2591
    %v3034 = vunpack.c.l.b16 %v2592
    %v3035 = vunpack.c.h.b16 %v2592
    %v3036 = vunpack.c.l.b16 %v2593
    %v3037 = vunpack.c.h.b16 %v2593
    %v3038 = vunpack.c.l.b16 %v2594
    %v3039 = vunpack.c.h.b16 %v2594
    %v3040 = vunpack.c.l.b16 %v2595
    %v3041 = vunpack.c.h.b16 %v2595
    %v3042 = vunpack.c.l.b16 %v2596
    %v3043 = vunpack.c.h.b16 %v2596
    %v3044 = vunpack.c.l.b16 %v2597
    %v3045 = vunpack.c.h.b16 %v2597
    %v3046 = vunpack.c.l.b16 %v2598
    %v3047 = vunpack.c.h.b16 %v2598
    %v3048 = vunpack.c.l.b16 %v2599
    %v3049 = vunpack.c.h.b16 %v2599
    %v3050 = vunpack.c.l.b16 %v2600
    %v3051 = vunpack.c.h.b16 %v2600
    %v3052 = vunpack.c.l.b16 %v2601
    %v3053 = vunpack.c.h.b16 %v2601
    %v3054 = vunpack.c.l.b16 %v2602
    %v3055 = vunpack.c.h.b16 %v2602
    %v3056 = vunpack.c.l.b16 %v2603
    %v3057 = vunpack.c.h.b16 %v2603
    %v3058 = vunpack.c.l.b16 %v2604
    %v3059 = vunpack.c.h.b16 %v2604
    %v3060 = vunpack.c.l.b16 %v2605
    %v3061 = vunpack.c.h.b16 %v2605
    %v3062 = vunpack.c.l.b16 %v2606
    %v3063 = vunpack.c.h.b16 %v2606
    %v3064 = vunpack.c.l.b16 %v2607
    %v3065 = vunpack.c.h.b16 %v2607
    %v3066 = vunpack.c.l.b16 %v2608
    %v3067 = vunpack.c.h.b16 %v2608
    %v3068 = vunpack.c.l.b16 %v2609
    %v3069 = vunpack.c.h.b16 %v2609
    %v3070 = vunpack.c.l.b16 %v2610
    %v3071 = vunpack.c.h.b16 %v2610
    %v3072 = vunpack.c.l.b16 %v2611
    %v3073 = vunpack.c.h.b16 %v2611
    %v3074 = vunpack.c.l.b16 %v2612
    %v3075 = vunpack.c.h.b16 %v2612
    %v3076 = vunpack.c.l.b16 %v2613
    %v3077 = vunpack.c.h.b16 %v2613
    %v3078 = vunpack.c.l.b16 %v2614
    %v3079 = vunpack.c.h.b16 %v2614
    %v3080 = vunpack.c.l.b16 %v2615
    %v3081 = vunpack.c.h.b16 %v2615
    %v3082 = vunpack.c.l.b16 %v2616
    %v3083 = vunpack.c.h.b16 %v2616
    %v3084 = vunpack.c.l.b16 %v2617
    %v3085 = vunpack.c.h.b16 %v2617
    %v3086 = vunpack.c.l.b16 %v2618
    %v3087 = vunpack.c.h.b16 %v2618
    %v3088 = vunpack.c.l.b16 %v2619
    %v3089 = vunpack.c.h.b16 %v2619
    %v3090 = vunpack.c.l.b16 %v2620
    %v3091 = vunpack.c.h.b16 %v2620
    %v3092 = vunpack.c.l.b16 %v2621
    %v3093 = vunpack.c.h.b16 %v2621
    %v3094 = vunpack.c.l.b16 %v2622
    %v3095 = vunpack.c.h.b16 %v2622
    %v3096 = vunpack.c.l.b16 %v2623
    %v3097 = vunpack.c.h.b16 %v2623
    %v3098 = vunpack.c.l.b16 %v2624
    %v3099 = vunpack.c.h.b16 %v2624
    %v3100 = vunpack.c.l.b16 %v2625
    %v3101 = vunpack.c.h.b16 %v2625
    %v3102 = vunpack.c.l.b16 %v2626
    %v3103 = vunpack.c.h.b16 %v2626
    %v3104 = vunpack.c.l.b16 %v2627
    %v3105 = vunpack.c.h.b16 %v2627
    %v3106 = vunpack.c.l.b16 %v2628
    %v3107 = vunpack.c.h.b16 %v2628
    %v3108 = vunpack.c.l.b16 %v2629
    %v3109 = vunpack.c.h.b16 %v2629
    %v3110 = vunpack.c.l.b16 %v2630
    %v3111 = vunpack.c.h.b16 %v2630
    %v3112 = vunpack.c.l.b16 %v2631
    %v3113 = vunpack.c.h.b16 %v2631
    %v3114 = vunpack.c.l.b16 %v2632
    %v3115 = vunpack.c.h.b16 %v2632
    %v3116 = vunpack.c.l.b16 %v2633
    %v3117 = vunpack.c.h.b16 %v2633
    %v3118 = vunpack.c.l.b16 %v2634
    %v3119 = vunpack.c.h.b16 %v2634
    %v3120 = vunpack.c.l.b16 %v2635
    %v3121 = vunpack.c.h.b16 %v2635
    %v3122 = vunpack.c.l.b16 %v2636
    %v3123 = vunpack.c.h.b16 %v2636
    %v3124 = vunpack.c.l.b16 %v2637
    %v3125 = vunpack.c.h.b16 %v2637
    %v3126 = vunpack.c.l.b16 %v2638
    %v3127 = vunpack.c.h.b16 %v2638
    %v3128 = vunpack.c.l.b16 %v2639
    %v3129 = vunpack.c.h.b16 %v2639
    %v3130 = vunpack.c.l.b16 %v2640
    %v3131 = vunpack.c.h.b16 %v2640
    %v3132 = vunpack.c.l.b16 %v2641
    %v3133 = vunpack.c.h.b16 %v2641
    %v3134 = vunpack.c.l.b16 %v2642
    %v3135 = vunpack.c.h.b16 %v2642
    %v3136 = vunpack.c.l.b16 %v2643
    %v3137 = vunpack.c.h.b16 %v2643
    %v3138 = vunpack.c.l.b16 %v2644
    %v3139 = vunpack.c.h.b16 %v2644
    %v3140 = vunpack.c.l.b16 %v2645
    %v3141 = vunpack.c.h.b16 %v2645
    %v3142 = vunpack.c.l.b16 %v2646
    %v3143 = vunpack.c.h.b16 %v2646
    %v3144 = vunpack.c.l.b16 %v2647
    %v3145 = vunpack.c.h.b16 %v2647
    %v3146 = vunpack.c.l.b16 %v2648
    %v3147 = vunpack.c.h.b16 %v2648
    %v3148 = vunpack.c.l.b16 %v2649
    %v3149 = vunpack.c.h.b16 %v2649
    %v3150 = vunpack.c.l.b16 %v2650
    %v3151 = vunpack.c.h.b16 %v2650
    %v3152 = vunpack.c.l.b16 %v2651
    %v3153 = vunpack.c.h.b16 %v2651
    %v3154 = vpack.c.b16 %v2838, %v2834
    %v3155 = vpack.c.b16 %v2839, %v2835
    %v3156 = vpack.c.b16 %v2840, %v2836
    %v3157 = vpack.c.b16 %v2841, %v2837
    %v3158 = vpack.c.b16 %v2846, %v2842
    %v3159 = vpack.c.b16 %v2847, %v2843
    %v3160 = vpack.c.b16 %v2848, %v2844
    %v3161 = vpack.c.b16 %v2849, %v2845
    %v3162 = vpack.c.b16 %v2854, %v2850
    %v3163 = vpack.c.b16 %v2855, %v2851
    %v3164 = vpack.c.b16 %v2856, %v2852
    %v3165 = vpack.c.b16 %v2857, %v2853
    %v3166 = vpack.c.b16 %v2862, %v2858
    %v3167 = vpack.c.b16 %v2863, %v2859
    %v3168 = vpack.c.b16 %v2864, %v2860
    %v3169 = vpack.c.b16 %v2865, %v2861
    %v3170 = vpack.c.b16 %v2870, %v2866
    %v3171 = vpack.c.b16 %v2871, %v2867
    %v3172 = vpack.c.b16 %v2872, %v2868
    %v3173 = vpack.c.b16 %v2873, %v2869
    %v3174 = vpack.c.b16 %v2878, %v2874
    %v3175 = vpack.c.b16 %v2879, %v2875
    %v3176 = vpack.c.b16 %v2880, %v2876
    %v3177 = vpack.c.b16 %v2881, %v2877
    %v3178 = vpack.c.b16 %v2886, %v2882
    %v3179 = vpack.c.b16 %v2887, %v2883
    %v3180 = vpack.c.b16 %v2888, %v2884
    %v3181 = vpack.c.b16 %v2889, %v2885
    %v3182 = vpack.c.b16 %v2894, %v2890
    %v3183 = vpack.c.b16 %v2895, %v2891
    %v3184 = vpack.c.b16 %v2896, %v2892
    %v3185 = vpack.c.b16 %v2897, %v2893
    %v3186 = vpack.c.b16 %v2902, %v2898
    %v3187 = vpack.c.b16 %v2903, %v2899
    %v3188 = vpack.c.b16 %v2904, %v2900
    %v3189 = vpack.c.b16 %v2905, %v2901
    %v3190 = vpack.c.b16 %v2910, %v2906
    %v3191 = vpack.c.b16 %v2911, %v2907
    %v3192 = vpack.c.b16 %v2912, %v2908
    %v3193 = vpack.c.b16 %v2913, %v2909
    %v3194 = vpack.c.b16 %v2918, %v2914
    %v3195 = vpack.c.b16 %v2919, %v2915
    %v3196 = vpack.c.b16 %v2920, %v2916
    %v3197 = vpack.c.b16 %v2921, %v2917
    %v3198 = vpack.c.b16 %v2926, %v2922
    %v3199 = vpack.c.b16 %v2927, %v2923
    %v3200 = vpack.c.b16 %v2928, %v2924
    %v3201 = vpack.c.b16 %v2929, %v2925
    %v3202 = vpack.c.b16 %v2934, %v2930
    %v3203 = vpack.c.b16 %v2935, %v2931
    %v3204 = vpack.c.b16 %v2936, %v2932
    %v3205 = vpack.c.b16 %v2937, %v2933
    %v3206 = vpack.c.b16 %v2942, %v2938
    %v3207 = vpack.c.b16 %v2943, %v2939
    %v3208 = vpack.c.b16 %v2944, %v2940
    %v3209 = vpack.c.b16 %v2945, %v2941
    %v3210 = vpack.c.b16 %v2950, %v2946
    %v3211 = vpack.c.b16 %v2951, %v2947
    %v3212 = vpack.c.b16 %v2952, %v2948
    %v3213 = vpack.c.b16 %v2953, %v2949
    %v3214 = vpack.c.b16 %v2958, %v2954
    %v3215 = vpack.c.b16 %v2959, %v2955
    %v3216 = vpack.c.b16 %v2960, %v2956
    %v3217 = vpack.c.b16 %v2961, %v2957
    %v3218 = vpack.c.b16 %v2966, %v2962
    %v3219 = vpack.c.b16 %v2967, %v2963
    %v3220 = vpack.c.b16 %v2968, %v2964
    %v3221 = vpack.c.b16 %v2969, %v2965
    %v3222 = vpack.c.b16 %v2974, %v2970
    %v3223 = vpack.c.b16 %v2975, %v2971
    %v3224 = vpack.c.b16 %v2976, %v2972
    %v3225 = vpack.c.b16 %v2977, %v2973
    %v3226 = vpack.c.b16 %v2982, %v2978
    %v3227 = vpack.c.b16 %v2983, %v2979
    %v3228 = vpack.c.b16 %v2984, %v2980
    %v3229 = vpack.c.b16 %v2985, %v2981
    %v3230 = vpack.c.b16 %v2990, %v2986
    %v3231 = vpack.c.b16 %v2991, %v2987
    %v3232 = vpack.c.b16 %v2992, %v2988
    %v3233 = vpack.c.b16 %v2993, %v2989
    %v3234 = vpack.c.b16 %v2998, %v2994
    %v3235 = vpack.c.b16 %v2999, %v2995
    %v3236 = vpack.c.b16 %v3000, %v2996
    %v3237 = vpack.c.b16 %v3001, %v2997
    %v3238 = vpack.c.b16 %v3006, %v3002
    %v3239 = vpack.c.b16 %v3007, %v3003
    %v3240 = vpack.c.b16 %v3008, %v3004
    %v3241 = vpack.c.b16 %v3009, %v3005
    %v3242 = vpack.c.b16 %v3014, %v3010
    %v3243 = vpack.c.b16 %v3015, %v3011
    %v3244 = vpack.c.b16 %v3016, %v3012
    %v3245 = vpack.c.b16 %v3017, %v3013
    %v3246 = vpack.c.b16 %v3022, %v3018
    %v3247 = vpack.c.b16 %v3023, %v3019
    %v3248 = vpack.c.b16 %v3024, %v3020
    %v3249 = vpack.c.b16 %v3025, %v3021
    %v3250 = vpack.c.b16 %v3030, %v3026
    %v3251 = vpack.c.b16 %v3031, %v3027
    %v3252 = vpack.c.b16 %v3032, %v3028
    %v3253 = vpack.c.b16 %v3033, %v3029
    %v3254 = vpack.c.b16 %v3038, %v3034
    %v3255 = vpack.c.b16 %v3039, %v3035
    %v3256 = vpack.c.b16 %v3040, %v3036
    %v3257 = vpack.c.b16 %v3041, %v3037
    %v3258 = vpack.c.b16 %v3046, %v3042
    %v3259 = vpack.c.b16 %v3047, %v3043
    %v3260 = vpack.c.b16 %v3048, %v3044
    %v3261 = vpack.c.b16 %v3049, %v3045
    %v3262 = vpack.c.b16 %v3054, %v3050
    %v3263 = vpack.c.b16 %v3055, %v3051
    %v3264 = vpack.c.b16 %v3056, %v3052
    %v3265 = vpack.c.b16 %v3057, %v3053
    %v3266 = vpack.c.b16 %v3062, %v3058
    %v3267 = vpack.c.b16 %v3063, %v3059
    %v3268 = vpack.c.b16 %v3064, %v3060
    %v3269 = vpack.c.b16 %v3065, %v3061
    %v3270 = vpack.c.b16 %v3070, %v3066
    %v3271 = vpack.c.b16 %v3071, %v3067
    %v3272 = vpack.c.b16 %v3072, %v3068
    %v3273 = vpack.c.b16 %v3073, %v3069
    %v3274 = vpack.c.b16 %v3078, %v3074
    %v3275 = vpack.c.b16 %v3079, %v3075
    %v3276 = vpack.c.b16 %v3080, %v3076
    %v3277 = vpack.c.b16 %v3081, %v3077
    %v3278 = vpack.c.b16 %v3086, %v3082
    %v3279 = vpack.c.b16 %v3087, %v3083
    %v3280 = vpack.c.b16 %v3088, %v3084
    %v3281 = vpack.c.b16 %v3089, %v3085
    %v3282 = vpack.c.b16 %v3094, %v3090
    %v3283 = vpack.c.b16 %v3095, %v3091
    %v3284 = vpack.c.b16 %v3096, %v3092
    %v3285 = vpack.c.b16 %v3097, %v3093
    %v3286 = vpack.c.b16 %v3102, %v3098
    %v3287 = vpack.c.b16 %v3103, %v3099
    %v3288 = vpack.c.b16 %v3104, %v3100
    %v3289 = vpack.c.b16 %v3105, %v3101
    %v3290 = vpack.c.b16 %v3110, %v3106
    %v3291 = vpack.c.b16 %v3111, %v3107
    %v3292 = vpack.c.b16 %v3112, %v3108
    %v3293 = vpack.c.b16 %v3113, %v3109
    %v3294 = vpack.c.b16 %v3118, %v3114
    %v3295 = vpack.c.b16 %v3119, %v3115
    %v3296 = vpack.c.b16 %v3120, %v3116
    %v3297 = vpack.c.b16 %v3121, %v3117
    %v3298 = vpack.c.b16 %v3126, %v3122
    %v3299 = vpack.c.b16 %v3127, %v3123
    %v3300 = vpack.c.b16 %v3128, %v3124
    %v3301 = vpack.c.b16 %v3129, %v3125
    %v3302 = vpack.c.b16 %v3134, %v3130
    %v3303 = vpack.c.b16 %v3135, %v3131
    %v3304 = vpack.c.b16 %v3136, %v3132
    %v3305 = vpack.c.b16 %v3137, %v3133
    %v3306 = vpack.c.b16 %v3142, %v3138
    %v3307 = vpack.c.b16 %v3143, %v3139
    %v3308 = vpack.c.b16 %v3144, %v3140
    %v3309 = vpack.c.b16 %v3145, %v3141
    %v3310 = vpack.c.b16 %v3150, %v3146
    %v3311 = vpack.c.b16 %v3151, %v3147
    %v3312 = vpack.c.b16 %v3152, %v3148
    %v3313 = vpack.c.b16 %v3153, %v3149
    %3474 = vmatprep.subr.bf16.mxu0 %v3155
    %3475 = vmatpush1.bf16.msra.mxu0 %v3154
    %3476 = vmatprep.subr.bf16.mxu0 %v3159
    %3477 = vmatpush1.bf16.msra.mxu0 %v3158
    %3478 = vmatprep.subr.bf16.mxu0 %v3163
    %3479 = vmatpush1.bf16.msra.mxu0 %v3162
    %3480 = vmatprep.subr.bf16.mxu0 %v3167
    %3481 = vmatpush1.bf16.msra.mxu0 %v3166
    %3482 = vmatprep.subr.bf16.mxu0 %v3171
    %3483 = vmatpush1.bf16.msra.mxu0 %v3170
    %3484 = vmatprep.subr.bf16.mxu0 %v3175
    %3485 = vmatpush1.bf16.msra.mxu0 %v3174
    %3486 = vmatprep.subr.bf16.mxu0 %v3179
    %3487 = vmatpush1.bf16.msra.mxu0 %v3178
    %3488 = vmatprep.subr.bf16.mxu0 %v3183
    %3489 = vmatpush1.bf16.msra.mxu0 %v3182
    %3490 = vmatprep.subr.bf16.mxu0 %v3187
    %3491 = vmatpush1.bf16.msra.mxu0 %v3186
    %3492 = vmatprep.subr.bf16.mxu0 %v3191
    %3493 = vmatpush1.bf16.msra.mxu0 %v3190
    %3494 = vmatprep.subr.bf16.mxu0 %v3195
    %3495 = vmatpush1.bf16.msra.mxu0 %v3194
    %3496 = vmatprep.subr.bf16.mxu0 %v3199
    %3497 = vmatpush1.bf16.msra.mxu0 %v3198
    %3498 = vmatprep.subr.bf16.mxu0 %v3203
    %3499 = vmatpush1.bf16.msra.mxu0 %v3202
    %3500 = vmatprep.subr.bf16.mxu0 %v3207
    %3501 = vmatpush1.bf16.msra.mxu0 %v3206
    %3502 = vmatprep.subr.bf16.mxu0 %v3211
    %3503 = vmatpush1.bf16.msra.mxu0 %v3210
    %3504 = vmatprep.subr.bf16.mxu0 %v3215
    %3505 = vmatpush1.bf16.msra.mxu0 %v3214
    %3506 = vmatprep.mubr.bf16.mxu0 %v2488
    %3507 = vmatmul.mubr.bf16.gmra.mrb[0].mxu0 %v2487
    %v3508 = vpop.f32.mrb[0].mxu0
    %v3509 = vadd.f32 %v2657, %v3508
    %v3510 = vpop.f32.mrb[0].mxu0
    %v3511 = vadd.f32 %v2661, %v3510
    %v3512 = vpop.f32.mrb[0].mxu0
    %v3513 = vpop.f32.mrb[0].mxu0
    %3514 = vdwg.mxu0
    %3515 = vmatprep.subr.bf16.mxu0 %v3219
    %3516 = vmatpush1.bf16.msra.mxu0 %v3218
    %3517 = vmatprep.subr.bf16.mxu0 %v3223
    %3518 = vmatpush1.bf16.msra.mxu0 %v3222
    %3519 = vmatprep.subr.bf16.mxu0 %v3227
    %3520 = vmatpush1.bf16.msra.mxu0 %v3226
    %3521 = vmatprep.subr.bf16.mxu0 %v3231
    %3522 = vmatpush1.bf16.msra.mxu0 %v3230
    %3523 = vmatprep.subr.bf16.mxu0 %v3235
    %3524 = vmatpush1.bf16.msra.mxu0 %v3234
    %3525 = vmatprep.subr.bf16.mxu0 %v3239
    %3526 = vmatpush1.bf16.msra.mxu0 %v3238
    %3527 = vmatprep.subr.bf16.mxu0 %v3243
    %3528 = vmatpush1.bf16.msra.mxu0 %v3242
    %3529 = vmatprep.subr.bf16.mxu0 %v3247
    %3530 = vmatpush1.bf16.msra.mxu0 %v3246
    %3531 = vmatprep.subr.bf16.mxu0 %v3251
    %3532 = vmatpush1.bf16.msra.mxu0 %v3250
    %3533 = vmatprep.subr.bf16.mxu0 %v3255
    %3534 = vmatpush1.bf16.msra.mxu0 %v3254
    %3535 = vmatprep.subr.bf16.mxu0 %v3259
    %3536 = vmatpush1.bf16.msra.mxu0 %v3258
    %3537 = vmatprep.subr.bf16.mxu0 %v3263
    %3538 = vmatpush1.bf16.msra.mxu0 %v3262
    %3539 = vmatprep.subr.bf16.mxu0 %v3267
    %3540 = vmatpush1.bf16.msra.mxu0 %v3266
    %3541 = vmatprep.subr.bf16.mxu0 %v3271
    %3542 = vmatpush1.bf16.msra.mxu0 %v3270
    %3543 = vmatprep.subr.bf16.mxu0 %v3275
    %3544 = vmatpush1.bf16.msra.mxu0 %v3274
    %3545 = vmatprep.subr.bf16.mxu0 %v3279
    %3546 = vmatpush1.bf16.msra.mxu0 %v3278
    %3547 = vmatprep.mubr.bf16.mxu0 %v2490
    %3548 = vmatmul.mubr.bf16.gmra.mrb[0].mxu0 %v2489
    %v3549 = vpop.f32.mrb[0].mxu0
    %v3550 = vadd.f32 %v3509, %v3549
    %v3551 = vpop.f32.mrb[0].mxu0
    %v3552 = vadd.f32 %v3511, %v3551
    %v3553 = vpop.f32.mrb[0].mxu0
    %v3554 = vpop.f32.mrb[0].mxu0
    %3555 = vdwg.mxu0
    %3556 = vmatprep.subr.bf16.mxu0 %v3283
    %3557 = vmatpush1.bf16.msra.mxu0 %v3282
    %3558 = vmatprep.subr.bf16.mxu0 %v3287
    %3559 = vmatpush1.bf16.msra.mxu0 %v3286
    %3560 = vmatprep.subr.bf16.mxu0 %v3291
    %3561 = vmatpush1.bf16.msra.mxu0 %v3290
    %3562 = vmatprep.subr.bf16.mxu0 %v3295
    %3563 = vmatpush1.bf16.msra.mxu0 %v3294
    %3564 = vmatprep.subr.bf16.mxu0 %v3299
    %3565 = vmatpush1.bf16.msra.mxu0 %v3298
    %3566 = vmatprep.subr.bf16.mxu0 %v3303
    %3567 = vmatpush1.bf16.msra.mxu0 %v3302
    %3568 = vmatprep.subr.bf16.mxu0 %v3307
    %3569 = vmatpush1.bf16.msra.mxu0 %v3306
    %3570 = vmatprep.subr.bf16.mxu0 %v3311
    %3571 = vmatpush1.bf16.msra.mxu0 %v3310
    %3572 = vmatprep.subr.bf16.mxu0 0
    %3573 = vmatpush1.bf16.msra.mxu0 0
    %3574 = vmatprep.subr.bf16.mxu0 0
    %3575 = vmatpush1.bf16.msra.mxu0 0
    %3576 = vmatprep.subr.bf16.mxu0 0
    %3577 = vmatpush1.bf16.msra.mxu0 0
    %3578 = vmatprep.subr.bf16.mxu0 0
    %3579 = vmatpush1.bf16.msra.mxu0 0
    %3580 = vmatprep.subr.bf16.mxu0 0
    %3581 = vmatpush1.bf16.msra.mxu0 0
    %3582 = vmatprep.subr.bf16.mxu0 0
    %3583 = vmatpush1.bf16.msra.mxu0 0
    %3584 = vmatprep.subr.bf16.mxu0 0
    %3585 = vmatpush1.bf16.msra.mxu0 0
    %3586 = vmatprep.subr.bf16.mxu0 0
    %3587 = vmatpush1.bf16.msra.mxu0 0
    %3588 = vmatprep.mubr.bf16.mxu0 0
    %3589 = vmatmul.mubr.bf16.gmra.mrb[0].mxu0 %v2491
    %v3590 = vpop.f32.mrb[0].mxu0
    %v3591 = vadd.f32 %v3550, %v3590
    %v3592 = vpop.f32.mrb[0].mxu0
    %v3593 = vadd.f32 %v3552, %v3592
    %v3594 = vpop.f32.mrb[0].mxu0
    %v3595 = vpop.f32.mrb[0].mxu0
    %3596 = vdwg.mxu0
    %3597 = vmatprep.subr.bf16.mxu0 %v3157
    %3598 = vmatpush1.bf16.msra.mxu0 %v3156
    %3599 = vmatprep.subr.bf16.mxu0 %v3161
    %3600 = vmatpush1.bf16.msra.mxu0 %v3160
    %3601 = vmatprep.subr.bf16.mxu0 %v3165
    %3602 = vmatpush1.bf16.msra.mxu0 %v3164
    %3603 = vmatprep.subr.bf16.mxu0 %v3169
    %3604 = vmatpush1.bf16.msra.mxu0 %v3168
    %3605 = vmatprep.subr.bf16.mxu0 %v3173
    %3606 = vmatpush1.bf16.msra.mxu0 %v3172
    %3607 = vmatprep.subr.bf16.mxu0 %v3177
    %3608 = vmatpush1.bf16.msra.mxu0 %v3176
    %3609 = vmatprep.subr.bf16.mxu0 %v3181
    %3610 = vmatpush1.bf16.msra.mxu0 %v3180
    %3611 = vmatprep.subr.bf16.mxu0 %v3185
    %3612 = vmatpush1.bf16.msra.mxu0 %v3184
    %3613 = vmatprep.subr.bf16.mxu0 %v3189
    %3614 = vmatpush1.bf16.msra.mxu0 %v3188
    %3615 = vmatprep.subr.bf16.mxu0 %v3193
    %3616 = vmatpush1.bf16.msra.mxu0 %v3192
    %3617 = vmatprep.subr.bf16.mxu0 %v3197
    %3618 = vmatpush1.bf16.msra.mxu0 %v3196
    %3619 = vmatprep.subr.bf16.mxu0 %v3201
    %3620 = vmatpush1.bf16.msra.mxu0 %v3200
    %3621 = vmatprep.subr.bf16.mxu0 %v3205
    %3622 = vmatpush1.bf16.msra.mxu0 %v3204
    %3623 = vmatprep.subr.bf16.mxu0 %v3209
    %3624 = vmatpush1.bf16.msra.mxu0 %v3208
    %3625 = vmatprep.subr.bf16.mxu0 %v3213
    %3626 = vmatpush1.bf16.msra.mxu0 %v3212
    %3627 = vmatprep.subr.bf16.mxu0 %v3217
    %3628 = vmatpush1.bf16.msra.mxu0 %v3216
    %3629 = vmatprep.mubr.bf16.mxu0 %v2488
    %3630 = vmatmul.mubr.bf16.gmra.mrb[0].mxu0 %v2487
    %v3631 = vpop.f32.mrb[0].mxu0
    %v3632 = vadd.f32 %v2665, %v3631
    %v3633 = vpop.f32.mrb[0].mxu0
    %v3634 = vadd.f32 %v2669, %v3633
    %v3635 = vpop.f32.mrb[0].mxu0
    %v3636 = vpop.f32.mrb[0].mxu0
    %3637 = vdwg.mxu0
    %3638 = vmatprep.subr.bf16.mxu0 %v3221
    %3639 = vmatpush1.bf16.msra.mxu0 %v3220
    %3640 = vmatprep.subr.bf16.mxu0 %v3225
    %3641 = vmatpush1.bf16.msra.mxu0 %v3224
    %3642 = vmatprep.subr.bf16.mxu0 %v3229
    %3643 = vmatpush1.bf16.msra.mxu0 %v3228
    %3644 = vmatprep.subr.bf16.mxu0 %v3233
    %3645 = vmatpush1.bf16.msra.mxu0 %v3232
    %3646 = vmatprep.subr.bf16.mxu0 %v3237
    %3647 = vmatpush1.bf16.msra.mxu0 %v3236
    %3648 = vmatprep.subr.bf16.mxu0 %v3241
    %3649 = vmatpush1.bf16.msra.mxu0 %v3240
    %3650 = vmatprep.subr.bf16.mxu0 %v3245
    %3651 = vmatpush1.bf16.msra.mxu0 %v3244
    %3652 = vmatprep.subr.bf16.mxu0 %v3249
    %3653 = vmatpush1.bf16.msra.mxu0 %v3248
    %3654 = vmatprep.subr.bf16.mxu0 %v3253
    %3655 = vmatpush1.bf16.msra.mxu0 %v3252
    %3656 = vmatprep.subr.bf16.mxu0 %v3257
    %3657 = vmatpush1.bf16.msra.mxu0 %v3256
    %3658 = vmatprep.subr.bf16.mxu0 %v3261
    %3659 = vmatpush1.bf16.msra.mxu0 %v3260
    %3660 = vmatprep.subr.bf16.mxu0 %v3265
    %3661 = vmatpush1.bf16.msra.mxu0 %v3264
    %3662 = vmatprep.subr.bf16.mxu0 %v3269
    %3663 = vmatpush1.bf16.msra.mxu0 %v3268
    %3664 = vmatprep.subr.bf16.mxu0 %v3273
    %3665 = vmatpush1.bf16.msra.mxu0 %v3272
    %3666 = vmatprep.subr.bf16.mxu0 %v3277
    %3667 = vmatpush1.bf16.msra.mxu0 %v3276
    %3668 = vmatprep.subr.bf16.mxu0 %v3281
    %3669 = vmatpush1.bf16.msra.mxu0 %v3280
    %3670 = vmatprep.mubr.bf16.mxu0 %v2490
    %3671 = vmatmul.mubr.bf16.gmra.mrb[0].mxu0 %v2489
    %v3672 = vpop.f32.mrb[0].mxu0
    %v3673 = vadd.f32 %v3632, %v3672
    %v3674 = vpop.f32.mrb[0].mxu0
    %v3675 = vadd.f32 %v3634, %v3674
    %v3676 = vpop.f32.mrb[0].mxu0
    %v3677 = vpop.f32.mrb[0].mxu0
    %3678 = vdwg.mxu0
    %3679 = vmatprep.subr.bf16.mxu0 %v3285
    %3680 = vmatpush1.bf16.msra.mxu0 %v3284
    %3681 = vmatprep.subr.bf16.mxu0 %v3289
    %3682 = vmatpush1.bf16.msra.mxu0 %v3288
    %3683 = vmatprep.subr.bf16.mxu0 %v3293
    %3684 = vmatpush1.bf16.msra.mxu0 %v3292
    %3685 = vmatprep.subr.bf16.mxu0 %v3297
    %3686 = vmatpush1.bf16.msra.mxu0 %v3296
    %3687 = vmatprep.subr.bf16.mxu0 %v3301
    %3688 = vmatpush1.bf16.msra.mxu0 %v3300
    %3689 = vmatprep.subr.bf16.mxu0 %v3305
    %3690 = vmatpush1.bf16.msra.mxu0 %v3304
    %3691 = vmatprep.subr.bf16.mxu0 %v3309
    %3692 = vmatpush1.bf16.msra.mxu0 %v3308
    %3693 = vmatprep.subr.bf16.mxu0 %v3313
    %3694 = vmatpush1.bf16.msra.mxu0 %v3312
    %3695 = vmatprep.subr.bf16.mxu0 0
    %3696 = vmatpush1.bf16.msra.mxu0 0
    %3697 = vmatprep.subr.bf16.mxu0 0
    %3698 = vmatpush1.bf16.msra.mxu0 0
    %3699 = vmatprep.subr.bf16.mxu0 0
    %3700 = vmatpush1.bf16.msra.mxu0 0
    %3701 = vmatprep.subr.bf16.mxu0 0
    %3702 = vmatpush1.bf16.msra.mxu0 0
    %3703 = vmatprep.subr.bf16.mxu0 0
    %3704 = vmatpush1.bf16.msra.mxu0 0
    %3705 = vmatprep.subr.bf16.mxu0 0
    %3706 = vmatpush1.bf16.msra.mxu0 0
    %3707 = vmatprep.subr.bf16.mxu0 0
    %3708 = vmatpush1.bf16.msra.mxu0 0
    %3709 = vmatprep.subr.bf16.mxu0 0
    %3710 = vmatpush1.bf16.msra.mxu0 0
    %3711 = vmatprep.mubr.bf16.mxu0 0
    %3712 = vmatmul.mubr.bf16.gmra.mrb[0].mxu0 %v2491
    %v3713 = vpop.f32.mrb[0].mxu0
    %v3714 = vadd.f32 %v3673, %v3713
    %v3715 = vpop.f32.mrb[0].mxu0
    %v3716 = vadd.f32 %v3675, %v3715
    %v3717 = vpop.f32.mrb[0].mxu0
    %v3718 = vpop.f32.mrb[0].mxu0
    %3719 = vdwg.mxu0
    %v3720 = vmax.f32 %v3591, 0.0
    %v3721 = vmax.f32 %v3593, 0.0
    %v3722 = vmax.f32 %v3714, 0.0
    %v3723 = vmax.f32 %v3716, 0.0
    %v3724 = vpack.c.bf16 %v3720, %v3720
    %v3725 = vpack.c.bf16 %v3721, %v3721
    %v3726 = vpack.c.bf16 %v3722, %v3722
    %v3727 = vpack.c.bf16 %v3723, %v3723
    %v3728 = vld [vmem:[#allocation11] sm:$0xff]
    %v3729 = vld [vmem:[#allocation11 + $0x8] sm:$0xff]
    %v3730 = vld [vmem:[#allocation11 + $0x10] sm:$0xff]
    %v3731 = vld [vmem:[#allocation11 + $0x18] sm:$0xff]
    %v3732 = vld [vmem:[#allocation11 + $0x20] sm:$0xff]
    %v3733 = vld [vmem:[#allocation11 + $0x28] sm:$0xff]
    %v3734 = vld [vmem:[#allocation11 + $0x30] sm:$0xff]
    %v3735 = vld [vmem:[#allocation11 + $0x38] sm:$0xff]
    %v3736 = vld [vmem:[#allocation11 + $0x40] sm:$0xff]
    %v3737 = vld [vmem:[#allocation11 + $0x48] sm:$0xff]
    %v3738 = vld [vmem:[#allocation11 + $0x50] sm:$0xff]
    %v3739 = vld [vmem:[#allocation11 + $0x58] sm:$0xff]
    %v3740 = vld [vmem:[#allocation11 + $0x60] sm:$0xff]
    %v3741 = vld [vmem:[#allocation11 + $0x68] sm:$0xff]
    %v3742 = vld [vmem:[#allocation11 + $0x70] sm:$0xff]
    %v3743 = vld [vmem:[#allocation11 + $0x78] sm:$0xff]
    %v3744 = vld [vmem:[#allocation11 + $0x80] sm:$0xff]
    %v3745 = vld [vmem:[#allocation11 + $0x88] sm:$0xff]
    %v3746 = vld [vmem:[#allocation11 + $0x90] sm:$0xff]
    %v3747 = vld [vmem:[#allocation11 + $0x98] sm:$0xff]
    %v3748 = vld [vmem:[#allocation11 + $0xa0] sm:$0xff]
    %v3749 = vld [vmem:[#allocation11 + $0xa8] sm:$0xff]
    %v3750 = vld [vmem:[#allocation11 + $0xb0] sm:$0xff]
    %v3751 = vld [vmem:[#allocation11 + $0xb8] sm:$0xff]
    %v3752 = vld [vmem:[#allocation11 + $0xc0] sm:$0xff]
    %v3753 = vld [vmem:[#allocation11 + $0xc8] sm:$0xff]
    %v3754 = vld [vmem:[#allocation11 + $0xd0] sm:$0xff]
    %v3755 = vld [vmem:[#allocation11 + $0xd8] sm:$0xff]
    %v3756 = vld [vmem:[#allocation11 + $0xe0] sm:$0xff]
    %v3757 = vld [vmem:[#allocation11 + $0xe8] sm:$0xff]
    %v3758 = vld [vmem:[#allocation11 + $0xf0] sm:$0xff]
    %v3759 = vld [vmem:[#allocation11 + $0xf8] sm:$0xff]
    %v3760 = vld [vmem:[#allocation11 + $0x100] sm:$0xff]
    %v3761 = vld [vmem:[#allocation11 + $0x108] sm:$0xff]
    %v3762 = vld [vmem:[#allocation11 + $0x110] sm:$0xff]
    %v3763 = vld [vmem:[#allocation11 + $0x118] sm:$0xff]
    %v3764 = vld [vmem:[#allocation11 + $0x120] sm:$0xff]
    %v3765 = vld [vmem:[#allocation11 + $0x128] sm:$0xff]
    %v3766 = vld [vmem:[#allocation11 + $0x130] sm:$0xff]
    %v3767 = vld [vmem:[#allocation11 + $0x138] sm:$0xff]
    %v3768 = vld [vmem:[#allocation11 + $0x140] sm:$0xff]
    %v3769 = vld [vmem:[#allocation11 + $0x148] sm:$0xff]
    %v3770 = vld [vmem:[#allocation11 + $0x150] sm:$0xff]
    %v3771 = vld [vmem:[#allocation11 + $0x158] sm:$0xff]
    %v3772 = vld [vmem:[#allocation11 + $0x160] sm:$0xff]
    %v3773 = vld [vmem:[#allocation11 + $0x168] sm:$0xff]
    %v3774 = vld [vmem:[#allocation11 + $0x170] sm:$0xff]
    %v3775 = vld [vmem:[#allocation11 + $0x178] sm:$0xff]
    %v3776 = vld [vmem:[#allocation11 + $0x180] sm:$0xff]
    %v3777 = vld [vmem:[#allocation11 + $0x188] sm:$0xff]
    %v3778 = vld [vmem:[#allocation11 + $0x190] sm:$0xff]
    %v3779 = vld [vmem:[#allocation11 + $0x198] sm:$0xff]
    %v3780 = vld [vmem:[#allocation11 + $0x1a0] sm:$0xff]
    %v3781 = vld [vmem:[#allocation11 + $0x1a8] sm:$0xff]
    %v3782 = vld [vmem:[#allocation11 + $0x1b0] sm:$0xff]
    %v3783 = vld [vmem:[#allocation11 + $0x1b8] sm:$0xff]
    %v3784 = vld [vmem:[#allocation11 + $0x1c0] sm:$0xff]
    %v3785 = vld [vmem:[#allocation11 + $0x1c8] sm:$0xff]
    %v3786 = vld [vmem:[#allocation11 + $0x1d0] sm:$0xff]
    %v3787 = vld [vmem:[#allocation11 + $0x1d8] sm:$0xff]
    %v3788 = vld [vmem:[#allocation11 + $0x1e0] sm:$0xff]
    %v3789 = vld [vmem:[#allocation11 + $0x1e8] sm:$0xff]
    %v3790 = vld [vmem:[#allocation11 + $0x1f0] sm:$0xff]
    %v3791 = vld [vmem:[#allocation11 + $0x1f8] sm:$0xff]
    %v3792 = vld [vmem:[#allocation13] sm:$0x3]
    %v3794 = vlaneseq
    %v3795 = vshrl.u32 %v3794, 7
    %v3796 = vsub.s32 0, %v3795
    %v3797 = vrot.slane %v3792, %v3796
    %v3798 = vlaneseq
    %v3799 = vshrl.u32 %v3798, 7
    %v3800 = vsub.s32 1, %v3799
    %v3801 = vrot.slane %v3792, %v3800
    %v3868 = vunpack.c.l.b16 %v3728
    %v3869 = vunpack.c.h.b16 %v3728
    %v3870 = vunpack.c.l.b16 %v3729
    %v3871 = vunpack.c.h.b16 %v3729
    %v3872 = vunpack.c.l.b16 %v3730
    %v3873 = vunpack.c.h.b16 %v3730
    %v3874 = vunpack.c.l.b16 %v3731
    %v3875 = vunpack.c.h.b16 %v3731
    %v3876 = vunpack.c.l.b16 %v3732
    %v3877 = vunpack.c.h.b16 %v3732
    %v3878 = vunpack.c.l.b16 %v3733
    %v3879 = vunpack.c.h.b16 %v3733
    %v3880 = vunpack.c.l.b16 %v3734
    %v3881 = vunpack.c.h.b16 %v3734
    %v3882 = vunpack.c.l.b16 %v3735
    %v3883 = vunpack.c.h.b16 %v3735
    %v3884 = vunpack.c.l.b16 %v3736
    %v3885 = vunpack.c.h.b16 %v3736
    %v3886 = vunpack.c.l.b16 %v3737
    %v3887 = vunpack.c.h.b16 %v3737
    %v3888 = vunpack.c.l.b16 %v3738
    %v3889 = vunpack.c.h.b16 %v3738
    %v3890 = vunpack.c.l.b16 %v3739
    %v3891 = vunpack.c.h.b16 %v3739
    %v3892 = vunpack.c.l.b16 %v3740
    %v3893 = vunpack.c.h.b16 %v3740
    %v3894 = vunpack.c.l.b16 %v3741
    %v3895 = vunpack.c.h.b16 %v3741
    %v3896 = vunpack.c.l.b16 %v3742
    %v3897 = vunpack.c.h.b16 %v3742
    %v3898 = vunpack.c.l.b16 %v3743
    %v3899 = vunpack.c.h.b16 %v3743
    %v3900 = vunpack.c.l.b16 %v3744
    %v3901 = vunpack.c.h.b16 %v3744
    %v3902 = vunpack.c.l.b16 %v3745
    %v3903 = vunpack.c.h.b16 %v3745
    %v3904 = vunpack.c.l.b16 %v3746
    %v3905 = vunpack.c.h.b16 %v3746
    %v3906 = vunpack.c.l.b16 %v3747
    %v3907 = vunpack.c.h.b16 %v3747
    %v3908 = vunpack.c.l.b16 %v3748
    %v3909 = vunpack.c.h.b16 %v3748
    %v3910 = vunpack.c.l.b16 %v3749
    %v3911 = vunpack.c.h.b16 %v3749
    %v3912 = vunpack.c.l.b16 %v3750
    %v3913 = vunpack.c.h.b16 %v3750
    %v3914 = vunpack.c.l.b16 %v3751
    %v3915 = vunpack.c.h.b16 %v3751
    %v3916 = vunpack.c.l.b16 %v3752
    %v3917 = vunpack.c.h.b16 %v3752
    %v3918 = vunpack.c.l.b16 %v3753
    %v3919 = vunpack.c.h.b16 %v3753
    %v3920 = vunpack.c.l.b16 %v3754
    %v3921 = vunpack.c.h.b16 %v3754
    %v3922 = vunpack.c.l.b16 %v3755
    %v3923 = vunpack.c.h.b16 %v3755
    %v3924 = vunpack.c.l.b16 %v3756
    %v3925 = vunpack.c.h.b16 %v3756
    %v3926 = vunpack.c.l.b16 %v3757
    %v3927 = vunpack.c.h.b16 %v3757
    %v3928 = vunpack.c.l.b16 %v3758
    %v3929 = vunpack.c.h.b16 %v3758
    %v3930 = vunpack.c.l.b16 %v3759
    %v3931 = vunpack.c.h.b16 %v3759
    %v3932 = vunpack.c.l.b16 %v3760
    %v3933 = vunpack.c.h.b16 %v3760
    %v3934 = vunpack.c.l.b16 %v3761
    %v3935 = vunpack.c.h.b16 %v3761
    %v3936 = vunpack.c.l.b16 %v3762
    %v3937 = vunpack.c.h.b16 %v3762
    %v3938 = vunpack.c.l.b16 %v3763
    %v3939 = vunpack.c.h.b16 %v3763
    %v3940 = vunpack.c.l.b16 %v3764
    %v3941 = vunpack.c.h.b16 %v3764
    %v3942 = vunpack.c.l.b16 %v3765
    %v3943 = vunpack.c.h.b16 %v3765
    %v3944 = vunpack.c.l.b16 %v3766
    %v3945 = vunpack.c.h.b16 %v3766
    %v3946 = vunpack.c.l.b16 %v3767
    %v3947 = vunpack.c.h.b16 %v3767
    %v3948 = vunpack.c.l.b16 %v3768
    %v3949 = vunpack.c.h.b16 %v3768
    %v3950 = vunpack.c.l.b16 %v3769
    %v3951 = vunpack.c.h.b16 %v3769
    %v3952 = vunpack.c.l.b16 %v3770
    %v3953 = vunpack.c.h.b16 %v3770
    %v3954 = vunpack.c.l.b16 %v3771
    %v3955 = vunpack.c.h.b16 %v3771
    %v3956 = vunpack.c.l.b16 %v3772
    %v3957 = vunpack.c.h.b16 %v3772
    %v3958 = vunpack.c.l.b16 %v3773
    %v3959 = vunpack.c.h.b16 %v3773
    %v3960 = vunpack.c.l.b16 %v3774
    %v3961 = vunpack.c.h.b16 %v3774
    %v3962 = vunpack.c.l.b16 %v3775
    %v3963 = vunpack.c.h.b16 %v3775
    %v3964 = vunpack.c.l.b16 %v3776
    %v3965 = vunpack.c.h.b16 %v3776
    %v3966 = vunpack.c.l.b16 %v3777
    %v3967 = vunpack.c.h.b16 %v3777
    %v3968 = vunpack.c.l.b16 %v3778
    %v3969 = vunpack.c.h.b16 %v3778
    %v3970 = vunpack.c.l.b16 %v3779
    %v3971 = vunpack.c.h.b16 %v3779
    %v3972 = vunpack.c.l.b16 %v3780
    %v3973 = vunpack.c.h.b16 %v3780
    %v3974 = vunpack.c.l.b16 %v3781
    %v3975 = vunpack.c.h.b16 %v3781
    %v3976 = vunpack.c.l.b16 %v3782
    %v3977 = vunpack.c.h.b16 %v3782
    %v3978 = vunpack.c.l.b16 %v3783
    %v3979 = vunpack.c.h.b16 %v3783
    %v3980 = vunpack.c.l.b16 %v3784
    %v3981 = vunpack.c.h.b16 %v3784
    %v3982 = vunpack.c.l.b16 %v3785
    %v3983 = vunpack.c.h.b16 %v3785
    %v3984 = vunpack.c.l.b16 %v3786
    %v3985 = vunpack.c.h.b16 %v3786
    %v3986 = vunpack.c.l.b16 %v3787
    %v3987 = vunpack.c.h.b16 %v3787
    %v3988 = vunpack.c.l.b16 %v3788
    %v3989 = vunpack.c.h.b16 %v3788
    %v3990 = vunpack.c.l.b16 %v3789
    %v3991 = vunpack.c.h.b16 %v3789
    %v3992 = vunpack.c.l.b16 %v3790
    %v3993 = vunpack.c.h.b16 %v3790
    %v3994 = vunpack.c.l.b16 %v3791
    %v3995 = vunpack.c.h.b16 %v3791
    %v3996 = vpack.c.b16 %v3870, %v3868
    %v3997 = vpack.c.b16 %v3871, %v3869
    %v3998 = vpack.c.b16 %v3874, %v3872
    %v3999 = vpack.c.b16 %v3875, %v3873
    %v4000 = vpack.c.b16 %v3878, %v3876
    %v4001 = vpack.c.b16 %v3879, %v3877
    %v4002 = vpack.c.b16 %v3882, %v3880
    %v4003 = vpack.c.b16 %v3883, %v3881
    %v4004 = vpack.c.b16 %v3886, %v3884
    %v4005 = vpack.c.b16 %v3887, %v3885
    %v4006 = vpack.c.b16 %v3890, %v3888
    %v4007 = vpack.c.b16 %v3891, %v3889
    %v4008 = vpack.c.b16 %v3894, %v3892
    %v4009 = vpack.c.b16 %v3895, %v3893
    %v4010 = vpack.c.b16 %v3898, %v3896
    %v4011 = vpack.c.b16 %v3899, %v3897
    %v4012 = vpack.c.b16 %v3902, %v3900
    %v4013 = vpack.c.b16 %v3903, %v3901
    %v4014 = vpack.c.b16 %v3906, %v3904
    %v4015 = vpack.c.b16 %v3907, %v3905
    %v4016 = vpack.c.b16 %v3910, %v3908
    %v4017 = vpack.c.b16 %v3911, %v3909
    %v4018 = vpack.c.b16 %v3914, %v3912
    %v4019 = vpack.c.b16 %v3915, %v3913
    %v4020 = vpack.c.b16 %v3918, %v3916
    %v4021 = vpack.c.b16 %v3919, %v3917
    %v4022 = vpack.c.b16 %v3922, %v3920
    %v4023 = vpack.c.b16 %v3923, %v3921
    %v4024 = vpack.c.b16 %v3926, %v3924
    %v4025 = vpack.c.b16 %v3927, %v3925
    %v4026 = vpack.c.b16 %v3930, %v3928
    %v4027 = vpack.c.b16 %v3931, %v3929
    %v4028 = vpack.c.b16 %v3934, %v3932
    %v4029 = vpack.c.b16 %v3935, %v3933
    %v4030 = vpack.c.b16 %v3938, %v3936
    %v4031 = vpack.c.b16 %v3939, %v3937
    %v4032 = vpack.c.b16 %v3942, %v3940
    %v4033 = vpack.c.b16 %v3943, %v3941
    %v4034 = vpack.c.b16 %v3946, %v3944
    %v4035 = vpack.c.b16 %v3947, %v3945
    %v4036 = vpack.c.b16 %v3950, %v3948
    %v4037 = vpack.c.b16 %v3951, %v3949
    %v4038 = vpack.c.b16 %v3954, %v3952
    %v4039 = vpack.c.b16 %v3955, %v3953
    %v4040 = vpack.c.b16 %v3958, %v3956
    %v4041 = vpack.c.b16 %v3959, %v3957
    %v4042 = vpack.c.b16 %v3962, %v3960
    %v4043 = vpack.c.b16 %v3963, %v3961
    %v4044 = vpack.c.b16 %v3966, %v3964
    %v4045 = vpack.c.b16 %v3967, %v3965
    %v4046 = vpack.c.b16 %v3970, %v3968
    %v4047 = vpack.c.b16 %v3971, %v3969
    %v4048 = vpack.c.b16 %v3974, %v3972
    %v4049 = vpack.c.b16 %v3975, %v3973
    %v4050 = vpack.c.b16 %v3978, %v3976
    %v4051 = vpack.c.b16 %v3979, %v3977
    %v4052 = vpack.c.b16 %v3982, %v3980
    %v4053 = vpack.c.b16 %v3983, %v3981
    %v4054 = vpack.c.b16 %v3986, %v3984
    %v4055 = vpack.c.b16 %v3987, %v3985
    %v4056 = vpack.c.b16 %v3990, %v3988
    %v4057 = vpack.c.b16 %v3991, %v3989
    %v4058 = vpack.c.b16 %v3994, %v3992
    %v4059 = vpack.c.b16 %v3995, %v3993
    %4124 = vmatprep.subr.bf16.mxu0 %v3997
    %4125 = vmatpush1.bf16.msra.mxu0 %v3996
    %4126 = vmatprep.subr.bf16.mxu0 %v3999
    %4127 = vmatpush1.bf16.msra.mxu0 %v3998
    %4128 = vmatprep.subr.bf16.mxu0 %v4001
    %4129 = vmatpush1.bf16.msra.mxu0 %v4000
    %4130 = vmatprep.subr.bf16.mxu0 %v4003
    %4131 = vmatpush1.bf16.msra.mxu0 %v4002
    %4132 = vmatprep.subr.bf16.mxu0 %v4005
    %4133 = vmatpush1.bf16.msra.mxu0 %v4004
    %4134 = vmatprep.subr.bf16.mxu0 %v4007
    %4135 = vmatpush1.bf16.msra.mxu0 %v4006
    %4136 = vmatprep.subr.bf16.mxu0 %v4009
    %4137 = vmatpush1.bf16.msra.mxu0 %v4008
    %4138 = vmatprep.subr.bf16.mxu0 %v4011
    %4139 = vmatpush1.bf16.msra.mxu0 %v4010
    %4140 = vmatprep.subr.bf16.mxu0 %v4013
    %4141 = vmatpush1.bf16.msra.mxu0 %v4012
    %4142 = vmatprep.subr.bf16.mxu0 %v4015
    %4143 = vmatpush1.bf16.msra.mxu0 %v4014
    %4144 = vmatprep.subr.bf16.mxu0 %v4017
    %4145 = vmatpush1.bf16.msra.mxu0 %v4016
    %4146 = vmatprep.subr.bf16.mxu0 %v4019
    %4147 = vmatpush1.bf16.msra.mxu0 %v4018
    %4148 = vmatprep.subr.bf16.mxu0 %v4021
    %4149 = vmatpush1.bf16.msra.mxu0 %v4020
    %4150 = vmatprep.subr.bf16.mxu0 %v4023
    %4151 = vmatpush1.bf16.msra.mxu0 %v4022
    %4152 = vmatprep.subr.bf16.mxu0 %v4025
    %4153 = vmatpush1.bf16.msra.mxu0 %v4024
    %4154 = vmatprep.subr.bf16.mxu0 %v4027
    %4155 = vmatpush1.bf16.msra.mxu0 %v4026
    %4156 = vmatprep.mubr.bf16.mxu0 %v3725
    %4157 = vmatmul.mubr.bf16.gmra.mrb[0].mxu0 %v3724
    %v4158 = vpop.f32.mrb[0].mxu0
    %v4159 = vadd.f32 %v3797, %v4158
    %v4160 = vpop.f32.mrb[0].mxu0
    %v4161 = vadd.f32 %v3801, %v4160
    %v4162 = vpop.f32.mrb[0].mxu0
    %v4163 = vpop.f32.mrb[0].mxu0
    %4164 = vdwg.mxu0
    %4165 = vmatprep.subr.bf16.mxu0 %v4029
    %4166 = vmatpush1.bf16.msra.mxu0 %v4028
    %4167 = vmatprep.subr.bf16.mxu0 %v4031
    %4168 = vmatpush1.bf16.msra.mxu0 %v4030
    %4169 = vmatprep.subr.bf16.mxu0 %v4033
    %4170 = vmatpush1.bf16.msra.mxu0 %v4032
    %4171 = vmatprep.subr.bf16.mxu0 %v4035
    %4172 = vmatpush1.bf16.msra.mxu0 %v4034
    %4173 = vmatprep.subr.bf16.mxu0 %v4037
    %4174 = vmatpush1.bf16.msra.mxu0 %v4036
    %4175 = vmatprep.subr.bf16.mxu0 %v4039
    %4176 = vmatpush1.bf16.msra.mxu0 %v4038
    %4177 = vmatprep.subr.bf16.mxu0 %v4041
    %4178 = vmatpush1.bf16.msra.mxu0 %v4040
    %4179 = vmatprep.subr.bf16.mxu0 %v4043
    %4180 = vmatpush1.bf16.msra.mxu0 %v4042
    %4181 = vmatprep.subr.bf16.mxu0 %v4045
    %4182 = vmatpush1.bf16.msra.mxu0 %v4044
    %4183 = vmatprep.subr.bf16.mxu0 %v4047
    %4184 = vmatpush1.bf16.msra.mxu0 %v4046
    %4185 = vmatprep.subr.bf16.mxu0 %v4049
    %4186 = vmatpush1.bf16.msra.mxu0 %v4048
    %4187 = vmatprep.subr.bf16.mxu0 %v4051
    %4188 = vmatpush1.bf16.msra.mxu0 %v4050
    %4189 = vmatprep.subr.bf16.mxu0 %v4053
    %4190 = vmatpush1.bf16.msra.mxu0 %v4052
    %4191 = vmatprep.subr.bf16.mxu0 %v4055
    %4192 = vmatpush1.bf16.msra.mxu0 %v4054
    %4193 = vmatprep.subr.bf16.mxu0 %v4057
    %4194 = vmatpush1.bf16.msra.mxu0 %v4056
    %4195 = vmatprep.subr.bf16.mxu0 %v4059
    %4196 = vmatpush1.bf16.msra.mxu0 %v4058
    %4197 = vmatprep.mubr.bf16.mxu0 %v3727
    %4198 = vmatmul.mubr.bf16.gmra.mrb[0].mxu0 %v3726
    %v4199 = vpop.f32.mrb[0].mxu0
    %v4200 = vadd.f32 %v4159, %v4199
    %v4201 = vpop.f32.mrb[0].mxu0
    %v4202 = vadd.f32 %v4161, %v4201
    %v4203 = vpop.f32.mrb[0].mxu0
    %v4204 = vpop.f32.mrb[0].mxu0
    %4205 = vdwg.mxu0
    %v4206 = vmax.f32 %v4200, 0.0
    %v4207 = vmax.f32 %v4202, 0.0
    %v4208 = vpack.c.bf16 %v4206, %v4206
    %v4209 = vpack.c.bf16 %v4207, %v4207
    %v4210 = vld [vmem:[#allocation14] sm:$0xf]
    %v4211 = vld [vmem:[#allocation14 + $0x4] sm:$0xf]
    %v4212 = vld [vmem:[#allocation14 + $0x8] sm:$0xf]
    %v4213 = vld [vmem:[#allocation14 + $0xc] sm:$0xf]
    %v4214 = vld [vmem:[#allocation14 + $0x10] sm:$0xf]
    %v4215 = vld [vmem:[#allocation14 + $0x14] sm:$0xf]
    %v4216 = vld [vmem:[#allocation14 + $0x18] sm:$0xf]
    %v4217 = vld [vmem:[#allocation14 + $0x1c] sm:$0xf]
    %v4218 = vld [vmem:[#allocation14 + $0x20] sm:$0xf]
    %v4219 = vld [vmem:[#allocation14 + $0x24] sm:$0xf]
    %v4220 = vld [vmem:[#allocation14 + $0x28] sm:$0xf]
    %v4221 = vld [vmem:[#allocation14 + $0x2c] sm:$0xf]
    %v4222 = vld [vmem:[#allocation14 + $0x30] sm:$0xf]
    %v4223 = vld [vmem:[#allocation14 + $0x34] sm:$0xf]
    %v4224 = vld [vmem:[#allocation14 + $0x38] sm:$0xf]
    %v4225 = vld [vmem:[#allocation14 + $0x3c] sm:$0xf]
    %v4226 = vld [vmem:[#allocation14 + $0x40] sm:$0xf]
    %v4227 = vld [vmem:[#allocation14 + $0x44] sm:$0xf]
    %v4228 = vld [vmem:[#allocation14 + $0x48] sm:$0xf]
    %v4229 = vld [vmem:[#allocation14 + $0x4c] sm:$0xf]
    %v4230 = vld [vmem:[#allocation14 + $0x50] sm:$0xf]
    %v4231 = vld [vmem:[#allocation14 + $0x54] sm:$0xf]
    %v4232 = vld [vmem:[#allocation14 + $0x58] sm:$0xf]
    %v4233 = vld [vmem:[#allocation14 + $0x5c] sm:$0xf]
    %v4234 = vld [vmem:[#allocation14 + $0x60] sm:$0xf]
    %v4235 = vld [vmem:[#allocation14 + $0x64] sm:$0xf]
    %v4236 = vld [vmem:[#allocation14 + $0x68] sm:$0xf]
    %v4237 = vld [vmem:[#allocation14 + $0x6c] sm:$0xf]
    %v4238 = vld [vmem:[#allocation14 + $0x70] sm:$0xf]
    %v4239 = vld [vmem:[#allocation14 + $0x74] sm:$0xf]
    %v4240 = vld [vmem:[#allocation14 + $0x78] sm:$0xf]
    %v4241 = vld [vmem:[#allocation14 + $0x7c] sm:$0xf]
    %v4242 = vld [vmem:[#allocation16] sm:$0x1]
    %v4244 = vlaneseq
    %v4245 = vshrl.u32 %v4244, 7
    %v4246 = vsub.s32 0, %v4245
    %v4247 = vrot.slane %v4242, %v4246
    %v4281 = vunpack.c.l.b16 %v4210
    %v4282 = vunpack.c.l.b16 %v4211
    %v4283 = vunpack.c.l.b16 %v4212
    %v4284 = vunpack.c.l.b16 %v4213
    %v4285 = vunpack.c.l.b16 %v4214
    %v4286 = vunpack.c.l.b16 %v4215
    %v4287 = vunpack.c.l.b16 %v4216
    %v4288 = vunpack.c.l.b16 %v4217
    %v4289 = vunpack.c.l.b16 %v4218
    %v4290 = vunpack.c.l.b16 %v4219
    %v4291 = vunpack.c.l.b16 %v4220
    %v4292 = vunpack.c.l.b16 %v4221
    %v4293 = vunpack.c.l.b16 %v4222
    %v4294 = vunpack.c.l.b16 %v4223
    %v4295 = vunpack.c.l.b16 %v4224
    %v4296 = vunpack.c.l.b16 %v4225
    %v4297 = vunpack.c.l.b16 %v4226
    %v4298 = vunpack.c.l.b16 %v4227
    %v4299 = vunpack.c.l.b16 %v4228
    %v4300 = vunpack.c.l.b16 %v4229
    %v4301 = vunpack.c.l.b16 %v4230
    %v4302 = vunpack.c.l.b16 %v4231
    %v4303 = vunpack.c.l.b16 %v4232
    %v4304 = vunpack.c.l.b16 %v4233
    %v4305 = vunpack.c.l.b16 %v4234
    %v4306 = vunpack.c.l.b16 %v4235
    %v4307 = vunpack.c.l.b16 %v4236
    %v4308 = vunpack.c.l.b16 %v4237
    %v4309 = vunpack.c.l.b16 %v4238
    %v4310 = vunpack.c.l.b16 %v4239
    %v4311 = vunpack.c.l.b16 %v4240
    %v4312 = vunpack.c.l.b16 %v4241
    %v4313 = vpack.c.b16 %v4282, %v4281
    %v4314 = vpack.c.b16 %v4284, %v4283
    %v4315 = vpack.c.b16 %v4286, %v4285
    %v4316 = vpack.c.b16 %v4288, %v4287
    %v4317 = vpack.c.b16 %v4290, %v4289
    %v4318 = vpack.c.b16 %v4292, %v4291
    %v4319 = vpack.c.b16 %v4294, %v4293
    %v4320 = vpack.c.b16 %v4296, %v4295
    %v4321 = vpack.c.b16 %v4298, %v4297
    %v4322 = vpack.c.b16 %v4300, %v4299
    %v4323 = vpack.c.b16 %v4302, %v4301
    %v4324 = vpack.c.b16 %v4304, %v4303
    %v4325 = vpack.c.b16 %v4306, %v4305
    %v4326 = vpack.c.b16 %v4308, %v4307
    %v4327 = vpack.c.b16 %v4310, %v4309
    %v4328 = vpack.c.b16 %v4312, %v4311
    %4345 = vmatprep.subr.bf16.mxu0 0
    %4346 = vmatpush1.bf16.msra.mxu0 %v4313
    %4347 = vmatprep.subr.bf16.mxu0 0
    %4348 = vmatpush1.bf16.msra.mxu0 %v4314
    %4349 = vmatprep.subr.bf16.mxu0 0
    %4350 = vmatpush1.bf16.msra.mxu0 %v4315
    %4351 = vmatprep.subr.bf16.mxu0 0
    %4352 = vmatpush1.bf16.msra.mxu0 %v4316
    %4353 = vmatprep.subr.bf16.mxu0 0
    %4354 = vmatpush1.bf16.msra.mxu0 %v4317
    %4355 = vmatprep.subr.bf16.mxu0 0
    %4356 = vmatpush1.bf16.msra.mxu0 %v4318
    %4357 = vmatprep.subr.bf16.mxu0 0
    %4358 = vmatpush1.bf16.msra.mxu0 %v4319
    %4359 = vmatprep.subr.bf16.mxu0 0
    %4360 = vmatpush1.bf16.msra.mxu0 %v4320
    %4361 = vmatprep.subr.bf16.mxu0 0
    %4362 = vmatpush1.bf16.msra.mxu0 %v4321
    %4363 = vmatprep.subr.bf16.mxu0 0
    %4364 = vmatpush1.bf16.msra.mxu0 %v4322
    %4365 = vmatprep.subr.bf16.mxu0 0
    %4366 = vmatpush1.bf16.msra.mxu0 %v4323
    %4367 = vmatprep.subr.bf16.mxu0 0
    %4368 = vmatpush1.bf16.msra.mxu0 %v4324
    %4369 = vmatprep.subr.bf16.mxu0 0
    %4370 = vmatpush1.bf16.msra.mxu0 %v4325
    %4371 = vmatprep.subr.bf16.mxu0 0
    %4372 = vmatpush1.bf16.msra.mxu0 %v4326
    %4373 = vmatprep.subr.bf16.mxu0 0
    %4374 = vmatpush1.bf16.msra.mxu0 %v4327
    %4375 = vmatprep.subr.bf16.mxu0 0
    %4376 = vmatpush1.bf16.msra.mxu0 %v4328
    %4377 = vmatprep.mubr.bf16.mxu0 %v4209
    %4378 = vmatmul.mubr.bf16.gmra.mrb[0].mxu0 %v4208
    %v4379 = vpop.f32.mrb[0].mxu0
    %v4380 = vadd.f32 %v4247, %v4379
    %v4381 = vpop.f32.mrb[0].mxu0
    %v4382 = vpop.f32.mrb[0].mxu0
    %v4383 = vpop.f32.mrb[0].mxu0
    %4384 = vdwg.mxu0
    %4385 = vst [vmem:[#allocation17] sm:$0xff] %v4380
    // Predicated region
    $region74: #{tpu_custom_call.1} parent=1 // pred_check
      _
    $region75: #{tpu_custom_call.1} parent=1 // pred_check_branch
      %4387 = sbr.rel (0) target = $region77
    $region76: #{tpu_custom_call.1} parent=1 // pred_region
      %s4389 = ssub.s32 128, 128
      %4390 = vsyncadd [#allocation4], %s4389
      %s4392 = sshll.u32 [#allocation17], 4
      %s4393 = int_to_ptr.vmem [resolvable:$true] %s4392
      %4395 = dma.vmem_to_hbm [thread:$0]  %s4393, 128, %s9, [#allocation4]
    $region77: #{tpu_custom_call.1} parent=1 // pred_fallthru
      _
    // Predicated region
    $region78: #{tpu_custom_call.1} parent=1 // pred_check
      _
    $region79: #{tpu_custom_call.1} parent=1 // pred_check_branch
      %4397 = sbr.rel (0) target = $region81
    $region80: #{tpu_custom_call.1} parent=1 // pred_region
      %4398 = dma.done [#allocation4], 128
    $region81: #{tpu_custom_call.1} parent=1 // pred_fallthru
      _
    %4399 = vsyncpa [#allocation3], 1
    %4400 = vsyncpa [#allocation6], 1
    %4401 = vsyncpa [#allocation9], 1
    %4402 = vsyncpa [#allocation12], 1
    %4403 = vsyncpa [#allocation15], 1
    %4404 = vsyncpa [#allocation4], 1

</llo_original>
